<compile_context>
chip_gen: v5e
topology: v5e:2x2
jax: 0.10.0
libtpu: 0.0.40
codegen_flags: <defaults>
</compile_context>

<pallas_src>
import functools
import math

import jax
import jax.numpy as jnp
from jax import lax
from jax.experimental import pallas as pl
from jax.experimental.pallas import tpu as pltpu


HP = 128   # per-gate / hidden-state lane padding
SP = 128   # padded output (d_model) lane width


# ---------------------------------------------------------------------------
# Kernel 1: single-layer LSTM over all user histories, returns h_n per user.
# ---------------------------------------------------------------------------
def _lstm_kernel(T, N, x_ref, wih_ref, whh_ref, b_ref, hout_ref, xproj_ref):
    """x_ref:    (T*N, K)    time-major-flattened input embeddings
       wih_ref:  (K, 4*HP)   fused/padded input weights (g gate pre-scaled x2)
       whh_ref:  (HP, 4*HP)  fused/padded recurrent weights (g gate x2)
       b_ref:    (1, 4*HP)   fused bias b_ih + b_hh (g gate x2)
       hout_ref: (N, HP)     final hidden state per sequence
       xproj_ref:(T*N, 4*HP) VMEM scratch: hoisted input projection."""
    # Hoisted input projection + bias: one well-shaped matmul instead of many
    # tiny per-step dots inside the serial recurrence.
    xproj_ref[...] = (
        jnp.dot(x_ref[...], wih_ref[...], preferred_element_type=jnp.float32)
        + b_ref[...])

    h0 = jnp.zeros((N, HP), jnp.float32)
    c0 = jnp.zeros((N, HP), jnp.float32)

    def step(t, carry):
        h, c = carry
        off = pl.multiple_of(t * N, N)
        # Single fused-gate recurrent matmul; W_hh is read from its VMEM ref
        # at the use site (no hoisted weight values -> no spill/refill churn).
        pre = xproj_ref[pl.ds(off, N), :] + jnp.dot(
            h, whh_ref[...], preferred_element_type=jnp.float32)
        # One sigmoid over the fused (N, 4*HP) block; g-gate weights/bias were
        # pre-scaled by 2, so tanh(pre_g) == 2*sigmoid(2*pre_g) - 1 exactly.
        sig = jax.nn.sigmoid(pre)
        i_g = sig[:, 0 * HP:1 * HP]
        f_g = sig[:, 1 * HP:2 * HP]
        g_g = 2.0 * sig[:, 2 * HP:3 * HP] - 1.0
        o_g = sig[:, 3 * HP:4 * HP]
        c_new = f_g * c + i_g * g_g
        h_new = o_g * jnp.tanh(c_new)
        return h_new, c_new

    # T is small and static: unroll so MXU / EUP / VPU work of adjacent steps
    # can overlap instead of serializing per iteration.
    h, _ = lax.fori_loop(0, T, step, (h0, c0), unroll=True)
    hout_ref[...] = h


# ---------------------------------------------------------------------------
# Kernel 2: user-level scaled-dot-product attention per role + role-level
#           multi-head self-attention + mean over roles.
# ---------------------------------------------------------------------------
def _attention_kernel(d_feat, d, d_v, heads,
                      center_ref,        # (R, F)      cluster centers
                      ufea_ref,          # (R, U, F)   user feature vectors
                      usenti_ref,        # (R, U, HP)  per-user LSTM h_n (padded)
                      wq_ref, bq_ref,    # (HP, heads*d),   (1, heads*d)
                      wk_ref, bk_ref,    # (HP, heads*d),   (1, heads*d)
                      wv_ref, bv_ref,    # (HP, heads*d_v), (1, heads*d_v)
                      wo_ref, bo_ref,    # (heads*d_v, SP), (1, SP)
                      out_ref):          # (1, SP) padded public sentiment
    R = center_ref.shape[0]

    # ---- user-level attention: query = cluster center -----------------------
    center = center_ref[...]
    ufea = ufea_ref[...]
    scores = jnp.sum(center[:, None, :] * ufea, axis=-1) * (
        1.0 / math.sqrt(d_feat))                                    # (R, U)
    scores = scores - jnp.max(scores, axis=-1, keepdims=True)
    e = jnp.exp(scores)
    attn = e / jnp.sum(e, axis=-1, keepdims=True)                   # (R, U)
    # TODO(synk): nn.Dropout(0.1) after softmax -> identity (eval semantics).
    role = jnp.sum(attn[:, :, None] * usenti_ref[...], axis=1)      # (R, HP)

    # ---- role-level multi-head self-attention --------------------------------
    q = jnp.dot(role, wq_ref[...], preferred_element_type=jnp.float32) + bq_ref[...]
    k = jnp.dot(role, wk_ref[...], preferred_element_type=jnp.float32) + bk_ref[...]
    v = jnp.dot(role, wv_ref[...], preferred_element_type=jnp.float32) + bv_ref[...]

    inv_sqrt_d = 1.0 / math.sqrt(d)
    acc = jnp.zeros((R, SP), jnp.float32)
    for hh in range(heads):                       # heads is small and static
        qh = q[:, hh * d:(hh + 1) * d]            # (R, d)
        kh = k[:, hh * d:(hh + 1) * d]            # (R, d)
        vh = v[:, hh * d_v:(hh + 1) * d_v]        # (R, d_v)
        att = lax.dot_general(qh, kh, (((1,), (1,)), ((), ())),
                              preferred_element_type=jnp.float32) * inv_sqrt_d
        att = att - jnp.max(att, axis=-1, keepdims=True)
        ea = jnp.exp(att)
        att = ea / jnp.sum(ea, axis=-1, keepdims=True)              # (R, R)
        # TODO(synk): MHA dropout(0.1) on att -> identity (eval semantics).
        oh = jnp.dot(att, vh, preferred_element_type=jnp.float32)   # (R, d_v)
        # fold the head-concat + fc_o into per-head partial matmuls
        acc = acc + jnp.dot(oh, wo_ref[hh * d_v:(hh + 1) * d_v, :],
                            preferred_element_type=jnp.float32)
    role_out = acc + bo_ref[...]                                    # (R, SP)

    # public_senti = mean over roles (dim=1 in the PyTorch code)
    out_ref[...] = (jnp.sum(role_out, axis=0, keepdims=True) *
                    (1.0 / R)).astype(out_ref.dtype)


# ---------------------------------------------------------------------------
# Parameter preparation / init
# ---------------------------------------------------------------------------
def _fuse_lstm_params(w_ih, w_hh, b, senti):
    """w_ih: (4, K, senti), w_hh: (4, senti, senti), b: (4, senti), PyTorch
    gate order (i, f, g, o); returns 128-lane-per-gate padded fused weights
    with the g-gate block pre-scaled by 2 (tanh via sigmoid)."""
    K = w_ih.shape[1]
    wih_f = jnp.zeros((K, 4 * HP), jnp.float32)
    whh_f = jnp.zeros((HP, 4 * HP), jnp.float32)
    b_f = jnp.zeros((1, 4 * HP), jnp.float32)
    for g in range(4):
        s = 2.0 if g == 2 else 1.0
        wih_f = wih_f.at[:, g * HP:g * HP + senti].set(w_ih[g] * s)
        whh_f = whh_f.at[:senti, g * HP:g * HP + senti].set(w_hh[g] * s)
        b_f = b_f.at[:, g * HP:g * HP + senti].set(b[g][None, :] * s)
    return wih_f, whh_f, b_f


def init_params(key, *, skep, senti, d, d_v, heads):
    ks = jax.random.split(key, 8)
    # nn.LSTM default init: uniform(-1/sqrt(H), 1/sqrt(H)) for weights / biases.
    s = 1.0 / math.sqrt(senti)

    def u(k, shape):
        return jax.random.uniform(k, shape, jnp.float32, -s, s)

    w_ih = u(ks[0], (4, skep, senti))          # right-multiply (x @ W) form
    w_hh = u(ks[1], (4, senti, senti))
    b = u(ks[2], (4, senti)) + u(ks[3], (4, senti))   # b_ih + b_hh
    wih_f, whh_f, b_f = _fuse_lstm_params(w_ih, w_hh, b, senti)

    # MultiHeadAttention linears: init_weights -> normal(std=0.001), bias 0.
    def nrm(k, shape):
        return 0.001 * jax.random.normal(k, shape, jnp.float32)

    wq = jnp.zeros((HP, heads * d), jnp.float32).at[:senti].set(nrm(ks[4], (senti, heads * d)))
    wk = jnp.zeros((HP, heads * d), jnp.float32).at[:senti].set(nrm(ks[5], (senti, heads * d)))
    wv = jnp.zeros((HP, heads * d_v), jnp.float32).at[:senti].set(nrm(ks[6], (senti, heads * d_v)))
    wo = jnp.zeros((heads * d_v, SP), jnp.float32).at[:, :senti].set(nrm(ks[7], (heads * d_v, senti)))
    return {
        "wih": wih_f, "whh": whh_f, "b": b_f,
        "wq": wq, "bq": jnp.zeros((1, heads * d), jnp.float32),
        "wk": wk, "bk": jnp.zeros((1, heads * d), jnp.float32),
        "wv": wv, "bv": jnp.zeros((1, heads * d_v), jnp.float32),
        "wo": wo, "bo": jnp.zeros((1, SP), jnp.float32),
    }


# ---------------------------------------------------------------------------
# Forward wrapper
# ---------------------------------------------------------------------------
def user_forward(user_hist_emb, user_fea, cluster_center, params, *,
                 senti, d, d_v, heads):
    """user_hist_emb: (R, U, T, skep)  fixed-length user histories
       user_fea:      (R, U, d_feat)   cluster_result['user_vec'] grouped by role
       cluster_center:(R, d_feat)
       returns public_senti of shape (1, senti)."""
    R, U, T, skep = user_hist_emb.shape
    N = R * U
    d_feat = cluster_center.shape[-1]

    # time-major, flattened to (T*N, skep) for the LSTM kernel
    x_tm = jnp.transpose(user_hist_emb.reshape(N, T, skep), (1, 0, 2)).reshape(T * N, skep)

    vmem = pl.BlockSpec(memory_space=pltpu.MemorySpace.VMEM)

    # TODO(synk): variable-length pack_sequence / empty histories are replaced
    # by fixed-length padded histories; h_n is the state at t = T-1.
    h_n = pl.pallas_call(
        functools.partial(_lstm_kernel, T, N),
        out_shape=jax.ShapeDtypeStruct((N, HP), jnp.float32),
        in_specs=[vmem] * 4,
        out_specs=vmem,
        scratch_shapes=[pltpu.VMEM((T * N, 4 * HP), jnp.float32)],
    )(x_tm, params["wih"], params["whh"], params["b"])

    usenti = h_n.reshape(R, U, HP)

    public_p = pl.pallas_call(
        functools.partial(_attention_kernel, d_feat, d, d_v, heads),
        out_shape=jax.ShapeDtypeStruct((1, SP), jnp.float32),
        in_specs=[vmem] * 11,
        out_specs=vmem,
    )(cluster_center, user_fea, usenti,
      params["wq"], params["bq"], params["wk"], params["bk"],
      params["wv"], params["bv"], params["wo"], params["bo"])

    return public_p[:, :senti]


if __name__ == "__main__":
    R, U, T = 4, 4, 8           # roles (clusters), users per role, history len
    SKEP, SENTI = 16, 32        # args.skep_size, senti_size
    D, DV, HEADS = 16, 16, 4    # MultiHeadAttention d, d_v, h
    DFEAT = 32                  # user_vec / cluster_center feature dim

    key = jax.random.PRNGKey(0)
    k_hist, k_fea, k_ctr, k_p = jax.random.split(key, 4)
    user_hist_emb = jax.random.normal(k_hist, (R, U, T, SKEP), jnp.float32)
    user_fea = jax.random.normal(k_fea, (R, U, DFEAT), jnp.float32)
    cluster_center = jax.random.normal(k_ctr, (R, DFEAT), jnp.float32)
    params = init_params(k_p, skep=SKEP, senti=SENTI, d=D, d_v=DV, heads=HEADS)

    fwd = jax.jit(functools.partial(user_forward, senti=SENTI, d=D,
                                    d_v=DV, heads=HEADS))
    out = fwd(user_hist_emb, user_fea, cluster_center, params)
    jax.block_until_ready(out)
    assert out.shape == (1, SENTI), out.shape
    print("KERNEL_OK")
</pallas_src>

<mosaic_0001>
module attributes {stable_mosaic.version = 11 : i64} {
  func.func @_lstm_kernel(%arg0: memref<128x16xf32, #tpu.memory_space<vmem>>, %arg1: memref<16x512xf32, #tpu.memory_space<vmem>>, %arg2: memref<128x512xf32, #tpu.memory_space<vmem>>, %arg3: memref<1x512xf32, #tpu.memory_space<vmem>>, %arg4: memref<16x128xf32, #tpu.memory_space<vmem>>, %arg5: memref<128x512xf32, #tpu.memory_space<vmem>>) attributes {dimension_semantics = [], scalar_prefetch = 0 : i64, scratch_operands = 1 : i64, tpu.core_type = #tpu.core_type<tc>} {
    %c0 = arith.constant 0 : index
    %c0_0 = arith.constant 0 : index
    %0 = vector.load %arg0[%c0, %c0_0] : memref<128x16xf32, #tpu.memory_space<vmem>>, vector<128x16xf32>
    %c0_1 = arith.constant 0 : index
    %c0_2 = arith.constant 0 : index
    %1 = vector.load %arg1[%c0_1, %c0_2] : memref<16x512xf32, #tpu.memory_space<vmem>>, vector<16x512xf32>
    %cst = arith.constant dense<0.000000e+00> : vector<128x512xf32>
    %2 = tpu.matmul %0, %1, %cst {dimension_numbers = #tpu.dot_dimension_numbers<[1], [0], [0], [1], [0, 0, 1, 1], [], []>} : vector<128x16xf32>, vector<16x512xf32>, vector<128x512xf32> -> vector<128x512xf32>
    %c0_3 = arith.constant 0 : index
    %c0_4 = arith.constant 0 : index
    %3 = vector.load %arg3[%c0_3, %c0_4] : memref<1x512xf32, #tpu.memory_space<vmem>>, vector<1x512xf32>
    %4 = vector.broadcast %3 : vector<1x512xf32> to vector<128x512xf32>
    %5 = arith.addf %2, %4 : vector<128x512xf32>
    %c0_5 = arith.constant 0 : index
    %c0_6 = arith.constant 0 : index
    %6 = vector.load %arg5[%c0_5, %c0_6] : memref<128x512xf32, #tpu.memory_space<vmem>>, vector<128x512xf32>
    tpu.vector_store %arg5[%c0_5, %c0_6], %5 {strides = array<i32>} : memref<128x512xf32, #tpu.memory_space<vmem>>, vector<128x512xf32>,
    %cst_7 = arith.constant 0.000000e+00 : f32
    %7 = vector.broadcast %cst_7 : f32 to vector<16x128xf32>
    %cst_8 = arith.constant 0.000000e+00 : f32
    %8 = vector.broadcast %cst_8 : f32 to vector<16x128xf32>
    %c0_i32 = arith.constant 0 : i32
    %c16_i32 = arith.constant 16 : i32
    %9 = arith.muli %c0_i32, %c16_i32 : i32
    %10 = tpu.assume_multiple %9, 16 : i32
    %11 = arith.index_cast %10 : i32 to index
    %c0_9 = arith.constant 0 : index
    %12 = vector.load %arg5[%11, %c0_9] : memref<128x512xf32, #tpu.memory_space<vmem>>, vector<16x512xf32>
    %c0_10 = arith.constant 0 : index
    %c0_11 = arith.constant 0 : index
    %13 = vector.load %arg2[%c0_10, %c0_11] : memref<128x512xf32, #tpu.memory_space<vmem>>, vector<128x512xf32>
    %cst_12 = arith.constant dense<0.000000e+00> : vector<16x512xf32>
    %14 = tpu.matmul %7, %13, %cst_12 {dimension_numbers = #tpu.dot_dimension_numbers<[1], [0], [0], [1], [0, 0, 1, 1], [], []>} : vector<16x128xf32>, vector<128x512xf32>, vector<16x512xf32> -> vector<16x512xf32>
    %15 = arith.addf %12, %14 : vector<16x512xf32>
    %16 = arith.negf %15 : vector<16x512xf32>
    %17 = math.exp %16 : vector<16x512xf32>
    %cst_13 = arith.constant 1.000000e+00 : f32
    %18 = vector.broadcast %cst_13 : f32 to vector<16x512xf32>
    %19 = arith.addf %18, %17 : vector<16x512xf32>
    %20 = arith.divf %18, %19 : vector<16x512xf32>
    %21 = vector.extract_strided_slice %20 {offsets = [0, 0], sizes = [16, 128], strides = [1, 1]} : vector<16x512xf32> to vector<16x128xf32>
    %22 = vector.extract_strided_slice %20 {offsets = [0, 128], sizes = [16, 128], strides = [1, 1]} : vector<16x512xf32> to vector<16x128xf32>
    %23 = vector.extract_strided_slice %20 {offsets = [0, 256], sizes = [16, 128], strides = [1, 1]} : vector<16x512xf32> to vector<16x128xf32>
    %cst_14 = arith.constant 2.000000e+00 : f32
    %24 = vector.broadcast %cst_14 : f32 to vector<16x128xf32>
    %25 = arith.mulf %24, %23 : vector<16x128xf32>
    %cst_15 = arith.constant 1.000000e+00 : f32
    %26 = vector.broadcast %cst_15 : f32 to vector<16x128xf32>
    %27 = arith.subf %25, %26 : vector<16x128xf32>
    %28 = vector.extract_strided_slice %20 {offsets = [0, 384], sizes = [16, 128], strides = [1, 1]} : vector<16x512xf32> to vector<16x128xf32>
    %29 = arith.mulf %22, %8 : vector<16x128xf32>
    %30 = arith.mulf %21, %27 : vector<16x128xf32>
    %31 = arith.addf %29, %30 : vector<16x128xf32>
    %32 = math.tanh %31 : vector<16x128xf32>
    %33 = arith.mulf %28, %32 : vector<16x128xf32>
    %c1_i32 = arith.constant 1 : i32
    %c16_i32_16 = arith.constant 16 : i32
    %34 = arith.muli %c1_i32, %c16_i32_16 : i32
    %35 = tpu.assume_multiple %34, 16 : i32
    %36 = arith.index_cast %35 : i32 to index
    %c0_17 = arith.constant 0 : index
    %37 = vector.load %arg5[%36, %c0_17] : memref<128x512xf32, #tpu.memory_space<vmem>>, vector<16x512xf32>
    %c0_18 = arith.constant 0 : index
    %c0_19 = arith.constant 0 : index
    %38 = vector.load %arg2[%c0_18, %c0_19] : memref<128x512xf32, #tpu.memory_space<vmem>>, vector<128x512xf32>
    %cst_20 = arith.constant dense<0.000000e+00> : vector<16x512xf32>
    %39 = tpu.matmul %33, %38, %cst_20 {dimension_numbers = #tpu.dot_dimension_numbers<[1], [0], [0], [1], [0, 0, 1, 1], [], []>} : vector<16x128xf32>, vector<128x512xf32>, vector<16x512xf32> -> vector<16x512xf32>
    %40 = arith.addf %37, %39 : vector<16x512xf32>
    %41 = arith.negf %40 : vector<16x512xf32>
    %42 = math.exp %41 : vector<16x512xf32>
    %cst_21 = arith.constant 1.000000e+00 : f32
    %43 = vector.broadcast %cst_21 : f32 to vector<16x512xf32>
    %44 = arith.addf %43, %42 : vector<16x512xf32>
    %45 = arith.divf %43, %44 : vector<16x512xf32>
    %46 = vector.extract_strided_slice %45 {offsets = [0, 0], sizes = [16, 128], strides = [1, 1]} : vector<16x512xf32> to vector<16x128xf32>
    %47 = vector.extract_strided_slice %45 {offsets = [0, 128], sizes = [16, 128], strides = [1, 1]} : vector<16x512xf32> to vector<16x128xf32>
    %48 = vector.extract_strided_slice %45 {offsets = [0, 256], sizes = [16, 128], strides = [1, 1]} : vector<16x512xf32> to vector<16x128xf32>
    %cst_22 = arith.constant 2.000000e+00 : f32
    %49 = vector.broadcast %cst_22 : f32 to vector<16x128xf32>
    %50 = arith.mulf %49, %48 : vector<16x128xf32>
    %cst_23 = arith.constant 1.000000e+00 : f32
    %51 = vector.broadcast %cst_23 : f32 to vector<16x128xf32>
    %52 = arith.subf %50, %51 : vector<16x128xf32>
    %53 = vector.extract_strided_slice %45 {offsets = [0, 384], sizes = [16, 128], strides = [1, 1]} : vector<16x512xf32> to vector<16x128xf32>
    %54 = arith.mulf %47, %31 : vector<16x128xf32>
    %55 = arith.mulf %46, %52 : vector<16x128xf32>
    %56 = arith.addf %54, %55 : vector<16x128xf32>
    %57 = math.tanh %56 : vector<16x128xf32>
    %58 = arith.mulf %53, %57 : vector<16x128xf32>
    %c2_i32 = arith.constant 2 : i32
    %c16_i32_24 = arith.constant 16 : i32
    %59 = arith.muli %c2_i32, %c16_i32_24 : i32
    %60 = tpu.assume_multiple %59, 16 : i32
    %61 = arith.index_cast %60 : i32 to index
    %c0_25 = arith.constant 0 : index
    %62 = vector.load %arg5[%61, %c0_25] : memref<128x512xf32, #tpu.memory_space<vmem>>, vector<16x512xf32>
    %c0_26 = arith.constant 0 : index
    %c0_27 = arith.constant 0 : index
    %63 = vector.load %arg2[%c0_26, %c0_27] : memref<128x512xf32, #tpu.memory_space<vmem>>, vector<128x512xf32>
    %cst_28 = arith.constant dense<0.000000e+00> : vector<16x512xf32>
    %64 = tpu.matmul %58, %63, %cst_28 {dimension_numbers = #tpu.dot_dimension_numbers<[1], [0], [0], [1], [0, 0, 1, 1], [], []>} : vector<16x128xf32>, vector<128x512xf32>, vector<16x512xf32> -> vector<16x512xf32>
    %65 = arith.addf %62, %64 : vector<16x512xf32>
    %66 = arith.negf %65 : vector<16x512xf32>
    %67 = math.exp %66 : vector<16x512xf32>
    %cst_29 = arith.constant 1.000000e+00 : f32
    %68 = vector.broadcast %cst_29 : f32 to vector<16x512xf32>
    %69 = arith.addf %68, %67 : vector<16x512xf32>
    %70 = arith.divf %68, %69 : vector<16x512xf32>
    %71 = vector.extract_strided_slice %70 {offsets = [0, 0], sizes = [16, 128], strides = [1, 1]} : vector<16x512xf32> to vector<16x128xf32>
    %72 = vector.extract_strided_slice %70 {offsets = [0, 128], sizes = [16, 128], strides = [1, 1]} : vector<16x512xf32> to vector<16x128xf32>
    %73 = vector.extract_strided_slice %70 {offsets = [0, 256], sizes = [16, 128], strides = [1, 1]} : vector<16x512xf32> to vector<16x128xf32>
    %cst_30 = arith.constant 2.000000e+00 : f32
    %74 = vector.broadcast %cst_30 : f32 to vector<16x128xf32>
    %75 = arith.mulf %74, %73 : vector<16x128xf32>
    %cst_31 = arith.constant 1.000000e+00 : f32
    %76 = vector.broadcast %cst_31 : f32 to vector<16x128xf32>
    %77 = arith.subf %75, %76 : vector<16x128xf32>
    %78 = vector.extract_strided_slice %70 {offsets = [0, 384], sizes = [16, 128], strides = [1, 1]} : vector<16x512xf32> to vector<16x128xf32>
    %79 = arith.mulf %72, %56 : vector<16x128xf32>
    %80 = arith.mulf %71, %77 : vector<16x128xf32>
    %81 = arith.addf %79, %80 : vector<16x128xf32>
    %82 = math.tanh %81 : vector<16x128xf32>
    %83 = arith.mulf %78, %82 : vector<16x128xf32>
    %c3_i32 = arith.constant 3 : i32
    %c16_i32_32 = arith.constant 16 : i32
    %84 = arith.muli %c3_i32, %c16_i32_32 : i32
    %85 = tpu.assume_multiple %84, 16 : i32
    %86 = arith.index_cast %85 : i32 to index
    %c0_33 = arith.constant 0 : index
    %87 = vector.load %arg5[%86, %c0_33] : memref<128x512xf32, #tpu.memory_space<vmem>>, vector<16x512xf32>
    %c0_34 = arith.constant 0 : index
    %c0_35 = arith.constant 0 : index
    %88 = vector.load %arg2[%c0_34, %c0_35] : memref<128x512xf32, #tpu.memory_space<vmem>>, vector<128x512xf32>
    %cst_36 = arith.constant dense<0.000000e+00> : vector<16x512xf32>
    %89 = tpu.matmul %83, %88, %cst_36 {dimension_numbers = #tpu.dot_dimension_numbers<[1], [0], [0], [1], [0, 0, 1, 1], [], []>} : vector<16x128xf32>, vector<128x512xf32>, vector<16x512xf32> -> vector<16x512xf32>
    %90 = arith.addf %87, %89 : vector<16x512xf32>
    %91 = arith.negf %90 : vector<16x512xf32>
    %92 = math.exp %91 : vector<16x512xf32>
    %cst_37 = arith.constant 1.000000e+00 : f32
    %93 = vector.broadcast %cst_37 : f32 to vector<16x512xf32>
    %94 = arith.addf %93, %92 : vector<16x512xf32>
    %95 = arith.divf %93, %94 : vector<16x512xf32>
    %96 = vector.extract_strided_slice %95 {offsets = [0, 0], sizes = [16, 128], strides = [1, 1]} : vector<16x512xf32> to vector<16x128xf32>
    %97 = vector.extract_strided_slice %95 {offsets = [0, 128], sizes = [16, 128], strides = [1, 1]} : vector<16x512xf32> to vector<16x128xf32>
    %98 = vector.extract_strided_slice %95 {offsets = [0, 256], sizes = [16, 128], strides = [1, 1]} : vector<16x512xf32> to vector<16x128xf32>
    %cst_38 = arith.constant 2.000000e+00 : f32
    %99 = vector.broadcast %cst_38 : f32 to vector<16x128xf32>
    %100 = arith.mulf %99, %98 : vector<16x128xf32>
    %cst_39 = arith.constant 1.000000e+00 : f32
    %101 = vector.broadcast %cst_39 : f32 to vector<16x128xf32>
    %102 = arith.subf %100, %101 : vector<16x128xf32>
    %103 = vector.extract_strided_slice %95 {offsets = [0, 384], sizes = [16, 128], strides = [1, 1]} : vector<16x512xf32> to vector<16x128xf32>
    %104 = arith.mulf %97, %81 : vector<16x128xf32>
    %105 = arith.mulf %96, %102 : vector<16x128xf32>
    %106 = arith.addf %104, %105 : vector<16x128xf32>
    %107 = math.tanh %106 : vector<16x128xf32>
    %108 = arith.mulf %103, %107 : vector<16x128xf32>
    %c4_i32 = arith.constant 4 : i32
    %c16_i32_40 = arith.constant 16 : i32
    %109 = arith.muli %c4_i32, %c16_i32_40 : i32
    %110 = tpu.assume_multiple %109, 16 : i32
    %111 = arith.index_cast %110 : i32 to index
    %c0_41 = arith.constant 0 : index
    %112 = vector.load %arg5[%111, %c0_41] : memref<128x512xf32, #tpu.memory_space<vmem>>, vector<16x512xf32>
    %c0_42 = arith.constant 0 : index
    %c0_43 = arith.constant 0 : index
    %113 = vector.load %arg2[%c0_42, %c0_43] : memref<128x512xf32, #tpu.memory_space<vmem>>, vector<128x512xf32>
    %cst_44 = arith.constant dense<0.000000e+00> : vector<16x512xf32>
    %114 = tpu.matmul %108, %113, %cst_44 {dimension_numbers = #tpu.dot_dimension_numbers<[1], [0], [0], [1], [0, 0, 1, 1], [], []>} : vector<16x128xf32>, vector<128x512xf32>, vector<16x512xf32> -> vector<16x512xf32>
    %115 = arith.addf %112, %114 : vector<16x512xf32>
    %116 = arith.negf %115 : vector<16x512xf32>
    %117 = math.exp %116 : vector<16x512xf32>
    %cst_45 = arith.constant 1.000000e+00 : f32
    %118 = vector.broadcast %cst_45 : f32 to vector<16x512xf32>
    %119 = arith.addf %118, %117 : vector<16x512xf32>
    %120 = arith.divf %118, %119 : vector<16x512xf32>
    %121 = vector.extract_strided_slice %120 {offsets = [0, 0], sizes = [16, 128], strides = [1, 1]} : vector<16x512xf32> to vector<16x128xf32>
    %122 = vector.extract_strided_slice %120 {offsets = [0, 128], sizes = [16, 128], strides = [1, 1]} : vector<16x512xf32> to vector<16x128xf32>
    %123 = vector.extract_strided_slice %120 {offsets = [0, 256], sizes = [16, 128], strides = [1, 1]} : vector<16x512xf32> to vector<16x128xf32>
    %cst_46 = arith.constant 2.000000e+00 : f32
    %124 = vector.broadcast %cst_46 : f32 to vector<16x128xf32>
    %125 = arith.mulf %124, %123 : vector<16x128xf32>
    %cst_47 = arith.constant 1.000000e+00 : f32
    %126 = vector.broadcast %cst_47 : f32 to vector<16x128xf32>
    %127 = arith.subf %125, %126 : vector<16x128xf32>
    %128 = vector.extract_strided_slice %120 {offsets = [0, 384], sizes = [16, 128], strides = [1, 1]} : vector<16x512xf32> to vector<16x128xf32>
    %129 = arith.mulf %122, %106 : vector<16x128xf32>
    %130 = arith.mulf %121, %127 : vector<16x128xf32>
    %131 = arith.addf %129, %130 : vector<16x128xf32>
    %132 = math.tanh %131 : vector<16x128xf32>
    %133 = arith.mulf %128, %132 : vector<16x128xf32>
    %c5_i32 = arith.constant 5 : i32
    %c16_i32_48 = arith.constant 16 : i32
    %134 = arith.muli %c5_i32, %c16_i32_48 : i32
    %135 = tpu.assume_multiple %134, 16 : i32
    %136 = arith.index_cast %135 : i32 to index
    %c0_49 = arith.constant 0 : index
    %137 = vector.load %arg5[%136, %c0_49] : memref<128x512xf32, #tpu.memory_space<vmem>>, vector<16x512xf32>
    %c0_50 = arith.constant 0 : index
    %c0_51 = arith.constant 0 : index
    %138 = vector.load %arg2[%c0_50, %c0_51] : memref<128x512xf32, #tpu.memory_space<vmem>>, vector<128x512xf32>
    %cst_52 = arith.constant dense<0.000000e+00> : vector<16x512xf32>
    %139 = tpu.matmul %133, %138, %cst_52 {dimension_numbers = #tpu.dot_dimension_numbers<[1], [0], [0], [1], [0, 0, 1, 1], [], []>} : vector<16x128xf32>, vector<128x512xf32>, vector<16x512xf32> -> vector<16x512xf32>
    %140 = arith.addf %137, %139 : vector<16x512xf32>
    %141 = arith.negf %140 : vector<16x512xf32>
    %142 = math.exp %141 : vector<16x512xf32>
    %cst_53 = arith.constant 1.000000e+00 : f32
    %143 = vector.broadcast %cst_53 : f32 to vector<16x512xf32>
    %144 = arith.addf %143, %142 : vector<16x512xf32>
    %145 = arith.divf %143, %144 : vector<16x512xf32>
    %146 = vector.extract_strided_slice %145 {offsets = [0, 0], sizes = [16, 128], strides = [1, 1]} : vector<16x512xf32> to vector<16x128xf32>
    %147 = vector.extract_strided_slice %145 {offsets = [0, 128], sizes = [16, 128], strides = [1, 1]} : vector<16x512xf32> to vector<16x128xf32>
    %148 = vector.extract_strided_slice %145 {offsets = [0, 256], sizes = [16, 128], strides = [1, 1]} : vector<16x512xf32> to vector<16x128xf32>
    %cst_54 = arith.constant 2.000000e+00 : f32
    %149 = vector.broadcast %cst_54 : f32 to vector<16x128xf32>
    %150 = arith.mulf %149, %148 : vector<16x128xf32>
    %cst_55 = arith.constant 1.000000e+00 : f32
    %151 = vector.broadcast %cst_55 : f32 to vector<16x128xf32>
    %152 = arith.subf %150, %151 : vector<16x128xf32>
    %153 = vector.extract_strided_slice %145 {offsets = [0, 384], sizes = [16, 128], strides = [1, 1]} : vector<16x512xf32> to vector<16x128xf32>
    %154 = arith.mulf %147, %131 : vector<16x128xf32>
    %155 = arith.mulf %146, %152 : vector<16x128xf32>
    %156 = arith.addf %154, %155 : vector<16x128xf32>
    %157 = math.tanh %156 : vector<16x128xf32>
    %158 = arith.mulf %153, %157 : vector<16x128xf32>
    %c6_i32 = arith.constant 6 : i32
    %c16_i32_56 = arith.constant 16 : i32
    %159 = arith.muli %c6_i32, %c16_i32_56 : i32
    %160 = tpu.assume_multiple %159, 16 : i32
    %161 = arith.index_cast %160 : i32 to index
    %c0_57 = arith.constant 0 : index
    %162 = vector.load %arg5[%161, %c0_57] : memref<128x512xf32, #tpu.memory_space<vmem>>, vector<16x512xf32>
    %c0_58 = arith.constant 0 : index
    %c0_59 = arith.constant 0 : index
    %163 = vector.load %arg2[%c0_58, %c0_59] : memref<128x512xf32, #tpu.memory_space<vmem>>, vector<128x512xf32>
    %cst_60 = arith.constant dense<0.000000e+00> : vector<16x512xf32>
    %164 = tpu.matmul %158, %163, %cst_60 {dimension_numbers = #tpu.dot_dimension_numbers<[1], [0], [0], [1], [0, 0, 1, 1], [], []>} : vector<16x128xf32>, vector<128x512xf32>, vector<16x512xf32> -> vector<16x512xf32>
    %165 = arith.addf %162, %164 : vector<16x512xf32>
    %166 = arith.negf %165 : vector<16x512xf32>
    %167 = math.exp %166 : vector<16x512xf32>
    %cst_61 = arith.constant 1.000000e+00 : f32
    %168 = vector.broadcast %cst_61 : f32 to vector<16x512xf32>
    %169 = arith.addf %168, %167 : vector<16x512xf32>
    %170 = arith.divf %168, %169 : vector<16x512xf32>
    %171 = vector.extract_strided_slice %170 {offsets = [0, 0], sizes = [16, 128], strides = [1, 1]} : vector<16x512xf32> to vector<16x128xf32>
    %172 = vector.extract_strided_slice %170 {offsets = [0, 128], sizes = [16, 128], strides = [1, 1]} : vector<16x512xf32> to vector<16x128xf32>
    %173 = vector.extract_strided_slice %170 {offsets = [0, 256], sizes = [16, 128], strides = [1, 1]} : vector<16x512xf32> to vector<16x128xf32>
    %cst_62 = arith.constant 2.000000e+00 : f32
    %174 = vector.broadcast %cst_62 : f32 to vector<16x128xf32>
    %175 = arith.mulf %174, %173 : vector<16x128xf32>
    %cst_63 = arith.constant 1.000000e+00 : f32
    %176 = vector.broadcast %cst_63 : f32 to vector<16x128xf32>
    %177 = arith.subf %175, %176 : vector<16x128xf32>
    %178 = vector.extract_strided_slice %170 {offsets = [0, 384], sizes = [16, 128], strides = [1, 1]} : vector<16x512xf32> to vector<16x128xf32>
    %179 = arith.mulf %172, %156 : vector<16x128xf32>
    %180 = arith.mulf %171, %177 : vector<16x128xf32>
    %181 = arith.addf %179, %180 : vector<16x128xf32>
    %182 = math.tanh %181 : vector<16x128xf32>
    %183 = arith.mulf %178, %182 : vector<16x128xf32>
    %c7_i32 = arith.constant 7 : i32
    %c16_i32_64 = arith.constant 16 : i32
    %184 = arith.muli %c7_i32, %c16_i32_64 : i32
    %185 = tpu.assume_multiple %184, 16 : i32
    %186 = arith.index_cast %185 : i32 to index
    %c0_65 = arith.constant 0 : index
    %187 = vector.load %arg5[%186, %c0_65] : memref<128x512xf32, #tpu.memory_space<vmem>>, vector<16x512xf32>
    %c0_66 = arith.constant 0 : index
    %c0_67 = arith.constant 0 : index
    %188 = vector.load %arg2[%c0_66, %c0_67] : memref<128x512xf32, #tpu.memory_space<vmem>>, vector<128x512xf32>
    %cst_68 = arith.constant dense<0.000000e+00> : vector<16x512xf32>
    %189 = tpu.matmul %183, %188, %cst_68 {dimension_numbers = #tpu.dot_dimension_numbers<[1], [0], [0], [1], [0, 0, 1, 1], [], []>} : vector<16x128xf32>, vector<128x512xf32>, vector<16x512xf32> -> vector<16x512xf32>
    %190 = arith.addf %187, %189 : vector<16x512xf32>
    %191 = arith.negf %190 : vector<16x512xf32>
    %192 = math.exp %191 : vector<16x512xf32>
    %cst_69 = arith.constant 1.000000e+00 : f32
    %193 = vector.broadcast %cst_69 : f32 to vector<16x512xf32>
    %194 = arith.addf %193, %192 : vector<16x512xf32>
    %195 = arith.divf %193, %194 : vector<16x512xf32>
    %196 = vector.extract_strided_slice %195 {offsets = [0, 0], sizes = [16, 128], strides = [1, 1]} : vector<16x512xf32> to vector<16x128xf32>
    %197 = vector.extract_strided_slice %195 {offsets = [0, 128], sizes = [16, 128], strides = [1, 1]} : vector<16x512xf32> to vector<16x128xf32>
    %198 = vector.extract_strided_slice %195 {offsets = [0, 256], sizes = [16, 128], strides = [1, 1]} : vector<16x512xf32> to vector<16x128xf32>
    %cst_70 = arith.constant 2.000000e+00 : f32
    %199 = vector.broadcast %cst_70 : f32 to vector<16x128xf32>
    %200 = arith.mulf %199, %198 : vector<16x128xf32>
    %cst_71 = arith.constant 1.000000e+00 : f32
    %201 = vector.broadcast %cst_71 : f32 to vector<16x128xf32>
    %202 = arith.subf %200, %201 : vector<16x128xf32>
    %203 = vector.extract_strided_slice %195 {offsets = [0, 384], sizes = [16, 128], strides = [1, 1]} : vector<16x512xf32> to vector<16x128xf32>
    %204 = arith.mulf %197, %181 : vector<16x128xf32>
    %205 = arith.mulf %196, %202 : vector<16x128xf32>
    %206 = arith.addf %204, %205 : vector<16x128xf32>
    %207 = math.tanh %206 : vector<16x128xf32>
    %208 = arith.mulf %203, %207 : vector<16x128xf32>
    %c8_i32 = arith.constant 8 : i32
    %c0_72 = arith.constant 0 : index
    %c0_73 = arith.constant 0 : index
    %209 = vector.load %arg4[%c0_72, %c0_73] : memref<16x128xf32, #tpu.memory_space<vmem>>, vector<16x128xf32>
    tpu.vector_store %arg4[%c0_72, %c0_73], %208 {strides = array<i32>} : memref<16x128xf32, #tpu.memory_space<vmem>>, vector<16x128xf32>,
    return
  }
}

module attributes {stable_mosaic.version = 11 : i64} {
  func.func @_attention_kernel(%arg0: memref<4x32xf32, #tpu.memory_space<vmem>>, %arg1: memref<4x4x32xf32, #tpu.memory_space<vmem>>, %arg2: memref<4x4x128xf32, #tpu.memory_space<vmem>>, %arg3: memref<128x64xf32, #tpu.memory_space<vmem>>, %arg4: memref<1x64xf32, #tpu.memory_space<vmem>>, %arg5: memref<128x64xf32, #tpu.memory_space<vmem>>, %arg6: memref<1x64xf32, #tpu.memory_space<vmem>>, %arg7: memref<128x64xf32, #tpu.memory_space<vmem>>, %arg8: memref<1x64xf32, #tpu.memory_space<vmem>>, %arg9: memref<64x128xf32, #tpu.memory_space<vmem>>, %arg10: memref<1x128xf32, #tpu.memory_space<vmem>>, %arg11: memref<1x128xf32, #tpu.memory_space<vmem>>) attributes {dimension_semantics = [], scalar_prefetch = 0 : i64, scratch_operands = 0 : i64, tpu.core_type = #tpu.core_type<tc>} {
    %c0 = arith.constant 0 : index
    %c0_0 = arith.constant 0 : index
    %0 = vector.load %arg0[%c0, %c0_0] : memref<4x32xf32, #tpu.memory_space<vmem>>, vector<4x32xf32>
    %c0_1 = arith.constant 0 : index
    %c0_2 = arith.constant 0 : index
    %c0_3 = arith.constant 0 : index
    %1 = vector.load %arg1[%c0_1, %c0_2, %c0_3] : memref<4x4x32xf32, #tpu.memory_space<vmem>>, vector<4x4x32xf32>
    %2 = vector.shape_cast %0 : vector<4x32xf32> to vector<4x1x32xf32>
    %3 = vector.broadcast %2 : vector<4x1x32xf32> to vector<4x4x32xf32>
    %4 = arith.mulf %3, %1 : vector<4x4x32xf32>
    %cst = arith.constant dense<0.000000e+00> : vector<4x4xf32>
    %5 = vector.multi_reduction <add>, %4, %cst [2] : vector<4x4x32xf32> to vector<4x4xf32>
    %cst_4 = arith.constant 0.176776692 : f32
    %6 = vector.broadcast %cst_4 : f32 to vector<4x4xf32>
    %7 = arith.mulf %5, %6 : vector<4x4xf32>
    %cst_5 = arith.constant dense<0xFF800000> : vector<4xf32>
    %8 = vector.multi_reduction <maximumf>, %7, %cst_5 [1] : vector<4x4xf32> to vector<4xf32>
    %9 = vector.shape_cast %8 : vector<4xf32> to vector<4x1xf32>
    %10 = vector.broadcast %9 : vector<4x1xf32> to vector<4x4xf32>
    %11 = arith.subf %7, %10 : vector<4x4xf32>
    %12 = math.exp %11 : vector<4x4xf32>
    %cst_6 = arith.constant dense<0.000000e+00> : vector<4xf32>
    %13 = vector.multi_reduction <add>, %12, %cst_6 [1] : vector<4x4xf32> to vector<4xf32>
    %14 = vector.shape_cast %13 : vector<4xf32> to vector<4x1xf32>
    %15 = vector.broadcast %14 : vector<4x1xf32> to vector<4x4xf32>
    %16 = arith.divf %12, %15 : vector<4x4xf32>
    %17 = vector.shape_cast %16 : vector<4x4xf32> to vector<4x4x1xf32>
    %c0_7 = arith.constant 0 : index
    %c0_8 = arith.constant 0 : index
    %c0_9 = arith.constant 0 : index
    %18 = vector.load %arg2[%c0_7, %c0_8, %c0_9] : memref<4x4x128xf32, #tpu.memory_space<vmem>>, vector<4x4x128xf32>
    %19 = vector.broadcast %17 : vector<4x4x1xf32> to vector<4x4x128xf32>
    %20 = arith.mulf %19, %18 : vector<4x4x128xf32>
    %cst_10 = arith.constant dense<0.000000e+00> : vector<4x128xf32>
    %21 = vector.multi_reduction <add>, %20, %cst_10 [1] : vector<4x4x128xf32> to vector<4x128xf32>
    %c0_11 = arith.constant 0 : index
    %c0_12 = arith.constant 0 : index
    %22 = vector.load %arg3[%c0_11, %c0_12] : memref<128x64xf32, #tpu.memory_space<vmem>>, vector<128x64xf32>
    %cst_13 = arith.constant dense<0.000000e+00> : vector<4x64xf32>
    %23 = tpu.matmul %21, %22, %cst_13 {dimension_numbers = #tpu.dot_dimension_numbers<[1], [0], [0], [1], [0, 0, 1, 1], [], []>} : vector<4x128xf32>, vector<128x64xf32>, vector<4x64xf32> -> vector<4x64xf32>
    %c0_14 = arith.constant 0 : index
    %c0_15 = arith.constant 0 : index
    %24 = vector.load %arg4[%c0_14, %c0_15] : memref<1x64xf32, #tpu.memory_space<vmem>>, vector<1x64xf32>
    %25 = vector.broadcast %24 : vector<1x64xf32> to vector<4x64xf32>
    %26 = arith.addf %23, %25 : vector<4x64xf32>
    %c0_16 = arith.constant 0 : index
    %c0_17 = arith.constant 0 : index
    %27 = vector.load %arg5[%c0_16, %c0_17] : memref<128x64xf32, #tpu.memory_space<vmem>>, vector<128x64xf32>
    %cst_18 = arith.constant dense<0.000000e+00> : vector<4x64xf32>
    %28 = tpu.matmul %21, %27, %cst_18 {dimension_numbers = #tpu.dot_dimension_numbers<[1], [0], [0], [1], [0, 0, 1, 1], [], []>} : vector<4x128xf32>, vector<128x64xf32>, vector<4x64xf32> -> vector<4x64xf32>
    %c0_19 = arith.constant 0 : index
    %c0_20 = arith.constant 0 : index
    %29 = vector.load %arg6[%c0_19, %c0_20] : memref<1x64xf32, #tpu.memory_space<vmem>>, vector<1x64xf32>
    %30 = vector.broadcast %29 : vector<1x64xf32> to vector<4x64xf32>
    %31 = arith.addf %28, %30 : vector<4x64xf32>
    %c0_21 = arith.constant 0 : index
    %c0_22 = arith.constant 0 : index
    %32 = vector.load %arg7[%c0_21, %c0_22] : memref<128x64xf32, #tpu.memory_space<vmem>>, vector<128x64xf32>
    %cst_23 = arith.constant dense<0.000000e+00> : vector<4x64xf32>
    %33 = tpu.matmul %21, %32, %cst_23 {dimension_numbers = #tpu.dot_dimension_numbers<[1], [0], [0], [1], [0, 0, 1, 1], [], []>} : vector<4x128xf32>, vector<128x64xf32>, vector<4x64xf32> -> vector<4x64xf32>
    %c0_24 = arith.constant 0 : index
    %c0_25 = arith.constant 0 : index
    %34 = vector.load %arg8[%c0_24, %c0_25] : memref<1x64xf32, #tpu.memory_space<vmem>>, vector<1x64xf32>
    %35 = vector.broadcast %34 : vector<1x64xf32> to vector<4x64xf32>
    %36 = arith.addf %33, %35 : vector<4x64xf32>
    %cst_26 = arith.constant 0.000000e+00 : f32
    %37 = vector.broadcast %cst_26 : f32 to vector<4x128xf32>
    %38 = vector.extract_strided_slice %26 {offsets = [0, 0], sizes = [4, 16], strides = [1, 1]} : vector<4x64xf32> to vector<4x16xf32>
    %39 = vector.extract_strided_slice %31 {offsets = [0, 0], sizes = [4, 16], strides = [1, 1]} : vector<4x64xf32> to vector<4x16xf32>
    %40 = vector.extract_strided_slice %36 {offsets = [0, 0], sizes = [4, 16], strides = [1, 1]} : vector<4x64xf32> to vector<4x16xf32>
    %cst_27 = arith.constant dense<0.000000e+00> : vector<4x4xf32>
    %41 = tpu.matmul %38, %39, %cst_27 {dimension_numbers = #tpu.dot_dimension_numbers<[1], [1], [0], [0], [0, 0, 1, 0], [], []>} : vector<4x16xf32>, vector<4x16xf32>, vector<4x4xf32> -> vector<4x4xf32>
    %cst_28 = arith.constant 2.500000e-01 : f32
    %42 = vector.broadcast %cst_28 : f32 to vector<4x4xf32>
    %43 = arith.mulf %41, %42 : vector<4x4xf32>
    %cst_29 = arith.constant dense<0xFF800000> : vector<4xf32>
    %44 = vector.multi_reduction <maximumf>, %43, %cst_29 [1] : vector<4x4xf32> to vector<4xf32>
    %45 = vector.shape_cast %44 : vector<4xf32> to vector<4x1xf32>
    %46 = vector.broadcast %45 : vector<4x1xf32> to vector<4x4xf32>
    %47 = arith.subf %43, %46 : vector<4x4xf32>
    %48 = math.exp %47 : vector<4x4xf32>
    %cst_30 = arith.constant dense<0.000000e+00> : vector<4xf32>
    %49 = vector.multi_reduction <add>, %48, %cst_30 [1] : vector<4x4xf32> to vector<4xf32>
    %50 = vector.shape_cast %49 : vector<4xf32> to vector<4x1xf32>
    %51 = vector.broadcast %50 : vector<4x1xf32> to vector<4x4xf32>
    %52 = arith.divf %48, %51 : vector<4x4xf32>
    %cst_31 = arith.constant dense<0.000000e+00> : vector<4x16xf32>
    %53 = tpu.matmul %52, %40, %cst_31 {dimension_numbers = #tpu.dot_dimension_numbers<[1], [0], [0], [1], [0, 0, 1, 1], [], []>} : vector<4x4xf32>, vector<4x16xf32>, vector<4x16xf32> -> vector<4x16xf32>
    %c0_32 = arith.constant 0 : index
    %c0_33 = arith.constant 0 : index
    %54 = vector.load %arg9[%c0_32, %c0_33] : memref<64x128xf32, #tpu.memory_space<vmem>>, vector<16x128xf32>
    %cst_34 = arith.constant dense<0.000000e+00> : vector<4x128xf32>
    %55 = tpu.matmul %53, %54, %cst_34 {dimension_numbers = #tpu.dot_dimension_numbers<[1], [0], [0], [1], [0, 0, 1, 1], [], []>} : vector<4x16xf32>, vector<16x128xf32>, vector<4x128xf32> -> vector<4x128xf32>
    %56 = arith.addf %37, %55 : vector<4x128xf32>
    %57 = vector.extract_strided_slice %26 {offsets = [0, 16], sizes = [4, 16], strides = [1, 1]} : vector<4x64xf32> to vector<4x16xf32>
    %58 = vector.extract_strided_slice %31 {offsets = [0, 16], sizes = [4, 16], strides = [1, 1]} : vector<4x64xf32> to vector<4x16xf32>
    %59 = vector.extract_strided_slice %36 {offsets = [0, 16], sizes = [4, 16], strides = [1, 1]} : vector<4x64xf32> to vector<4x16xf32>
    %cst_35 = arith.constant dense<0.000000e+00> : vector<4x4xf32>
    %60 = tpu.matmul %57, %58, %cst_35 {dimension_numbers = #tpu.dot_dimension_numbers<[1], [1], [0], [0], [0, 0, 1, 0], [], []>} : vector<4x16xf32>, vector<4x16xf32>, vector<4x4xf32> -> vector<4x4xf32>
    %cst_36 = arith.constant 2.500000e-01 : f32
    %61 = vector.broadcast %cst_36 : f32 to vector<4x4xf32>
    %62 = arith.mulf %60, %61 : vector<4x4xf32>
    %cst_37 = arith.constant dense<0xFF800000> : vector<4xf32>
    %63 = vector.multi_reduction <maximumf>, %62, %cst_37 [1] : vector<4x4xf32> to vector<4xf32>
    %64 = vector.shape_cast %63 : vector<4xf32> to vector<4x1xf32>
    %65 = vector.broadcast %64 : vector<4x1xf32> to vector<4x4xf32>
    %66 = arith.subf %62, %65 : vector<4x4xf32>
    %67 = math.exp %66 : vector<4x4xf32>
    %cst_38 = arith.constant dense<0.000000e+00> : vector<4xf32>
    %68 = vector.multi_reduction <add>, %67, %cst_38 [1] : vector<4x4xf32> to vector<4xf32>
    %69 = vector.shape_cast %68 : vector<4xf32> to vector<4x1xf32>
    %70 = vector.broadcast %69 : vector<4x1xf32> to vector<4x4xf32>
    %71 = arith.divf %67, %70 : vector<4x4xf32>
    %cst_39 = arith.constant dense<0.000000e+00> : vector<4x16xf32>
    %72 = tpu.matmul %71, %59, %cst_39 {dimension_numbers = #tpu.dot_dimension_numbers<[1], [0], [0], [1], [0, 0, 1, 1], [], []>} : vector<4x4xf32>, vector<4x16xf32>, vector<4x16xf32> -> vector<4x16xf32>
    %c16 = arith.constant 16 : index
    %c0_40 = arith.constant 0 : index
    %73 = vector.load %arg9[%c16, %c0_40] : memref<64x128xf32, #tpu.memory_space<vmem>>, vector<16x128xf32>
    %cst_41 = arith.constant dense<0.000000e+00> : vector<4x128xf32>
    %74 = tpu.matmul %72, %73, %cst_41 {dimension_numbers = #tpu.dot_dimension_numbers<[1], [0], [0], [1], [0, 0, 1, 1], [], []>} : vector<4x16xf32>, vector<16x128xf32>, vector<4x128xf32> -> vector<4x128xf32>
    %75 = arith.addf %56, %74 : vector<4x128xf32>
    %76 = vector.extract_strided_slice %26 {offsets = [0, 32], sizes = [4, 16], strides = [1, 1]} : vector<4x64xf32> to vector<4x16xf32>
    %77 = vector.extract_strided_slice %31 {offsets = [0, 32], sizes = [4, 16], strides = [1, 1]} : vector<4x64xf32> to vector<4x16xf32>
    %78 = vector.extract_strided_slice %36 {offsets = [0, 32], sizes = [4, 16], strides = [1, 1]} : vector<4x64xf32> to vector<4x16xf32>
    %cst_42 = arith.constant dense<0.000000e+00> : vector<4x4xf32>
    %79 = tpu.matmul %76, %77, %cst_42 {dimension_numbers = #tpu.dot_dimension_numbers<[1], [1], [0], [0], [0, 0, 1, 0], [], []>} : vector<4x16xf32>, vector<4x16xf32>, vector<4x4xf32> -> vector<4x4xf32>
    %cst_43 = arith.constant 2.500000e-01 : f32
    %80 = vector.broadcast %cst_43 : f32 to vector<4x4xf32>
    %81 = arith.mulf %79, %80 : vector<4x4xf32>
    %cst_44 = arith.constant dense<0xFF800000> : vector<4xf32>
    %82 = vector.multi_reduction <maximumf>, %81, %cst_44 [1] : vector<4x4xf32> to vector<4xf32>
    %83 = vector.shape_cast %82 : vector<4xf32> to vector<4x1xf32>
    %84 = vector.broadcast %83 : vector<4x1xf32> to vector<4x4xf32>
    %85 = arith.subf %81, %84 : vector<4x4xf32>
    %86 = math.exp %85 : vector<4x4xf32>
    %cst_45 = arith.constant dense<0.000000e+00> : vector<4xf32>
    %87 = vector.multi_reduction <add>, %86, %cst_45 [1] : vector<4x4xf32> to vector<4xf32>
    %88 = vector.shape_cast %87 : vector<4xf32> to vector<4x1xf32>
    %89 = vector.broadcast %88 : vector<4x1xf32> to vector<4x4xf32>
    %90 = arith.divf %86, %89 : vector<4x4xf32>
    %cst_46 = arith.constant dense<0.000000e+00> : vector<4x16xf32>
    %91 = tpu.matmul %90, %78, %cst_46 {dimension_numbers = #tpu.dot_dimension_numbers<[1], [0], [0], [1], [0, 0, 1, 1], [], []>} : vector<4x4xf32>, vector<4x16xf32>, vector<4x16xf32> -> vector<4x16xf32>
    %c32 = arith.constant 32 : index
    %c0_47 = arith.constant 0 : index
    %92 = vector.load %arg9[%c32, %c0_47] : memref<64x128xf32, #tpu.memory_space<vmem>>, vector<16x128xf32>
    %cst_48 = arith.constant dense<0.000000e+00> : vector<4x128xf32>
    %93 = tpu.matmul %91, %92, %cst_48 {dimension_numbers = #tpu.dot_dimension_numbers<[1], [0], [0], [1], [0, 0, 1, 1], [], []>} : vector<4x16xf32>, vector<16x128xf32>, vector<4x128xf32> -> vector<4x128xf32>
    %94 = arith.addf %75, %93 : vector<4x128xf32>
    %95 = vector.extract_strided_slice %26 {offsets = [0, 48], sizes = [4, 16], strides = [1, 1]} : vector<4x64xf32> to vector<4x16xf32>
    %96 = vector.extract_strided_slice %31 {offsets = [0, 48], sizes = [4, 16], strides = [1, 1]} : vector<4x64xf32> to vector<4x16xf32>
    %97 = vector.extract_strided_slice %36 {offsets = [0, 48], sizes = [4, 16], strides = [1, 1]} : vector<4x64xf32> to vector<4x16xf32>
    %cst_49 = arith.constant dense<0.000000e+00> : vector<4x4xf32>
    %98 = tpu.matmul %95, %96, %cst_49 {dimension_numbers = #tpu.dot_dimension_numbers<[1], [1], [0], [0], [0, 0, 1, 0], [], []>} : vector<4x16xf32>, vector<4x16xf32>, vector<4x4xf32> -> vector<4x4xf32>
    %cst_50 = arith.constant 2.500000e-01 : f32
    %99 = vector.broadcast %cst_50 : f32 to vector<4x4xf32>
    %100 = arith.mulf %98, %99 : vector<4x4xf32>
    %cst_51 = arith.constant dense<0xFF800000> : vector<4xf32>
    %101 = vector.multi_reduction <maximumf>, %100, %cst_51 [1] : vector<4x4xf32> to vector<4xf32>
    %102 = vector.shape_cast %101 : vector<4xf32> to vector<4x1xf32>
    %103 = vector.broadcast %102 : vector<4x1xf32> to vector<4x4xf32>
    %104 = arith.subf %100, %103 : vector<4x4xf32>
    %105 = math.exp %104 : vector<4x4xf32>
    %cst_52 = arith.constant dense<0.000000e+00> : vector<4xf32>
    %106 = vector.multi_reduction <add>, %105, %cst_52 [1] : vector<4x4xf32> to vector<4xf32>
    %107 = vector.shape_cast %106 : vector<4xf32> to vector<4x1xf32>
    %108 = vector.broadcast %107 : vector<4x1xf32> to vector<4x4xf32>
    %109 = arith.divf %105, %108 : vector<4x4xf32>
    %cst_53 = arith.constant dense<0.000000e+00> : vector<4x16xf32>
    %110 = tpu.matmul %109, %97, %cst_53 {dimension_numbers = #tpu.dot_dimension_numbers<[1], [0], [0], [1], [0, 0, 1, 1], [], []>} : vector<4x4xf32>, vector<4x16xf32>, vector<4x16xf32> -> vector<4x16xf32>
    %c48 = arith.constant 48 : index
    %c0_54 = arith.constant 0 : index
    %111 = vector.load %arg9[%c48, %c0_54] : memref<64x128xf32, #tpu.memory_space<vmem>>, vector<16x128xf32>
    %cst_55 = arith.constant dense<0.000000e+00> : vector<4x128xf32>
    %112 = tpu.matmul %110, %111, %cst_55 {dimension_numbers = #tpu.dot_dimension_numbers<[1], [0], [0], [1], [0, 0, 1, 1], [], []>} : vector<4x16xf32>, vector<16x128xf32>, vector<4x128xf32> -> vector<4x128xf32>
    %113 = arith.addf %94, %112 : vector<4x128xf32>
    %c0_56 = arith.constant 0 : index
    %c0_57 = arith.constant 0 : index
    %114 = vector.load %arg10[%c0_56, %c0_57] : memref<1x128xf32, #tpu.memory_space<vmem>>, vector<1x128xf32>
    %115 = vector.broadcast %114 : vector<1x128xf32> to vector<4x128xf32>
    %116 = arith.addf %113, %115 : vector<4x128xf32>
    %cst_58 = arith.constant dense<0.000000e+00> : vector<128xf32>
    %117 = vector.multi_reduction <add>, %116, %cst_58 [0] : vector<4x128xf32> to vector<128xf32>
    %118 = vector.shape_cast %117 : vector<128xf32> to vector<1x128xf32>
    %cst_59 = arith.constant 2.500000e-01 : f32
    %119 = vector.broadcast %cst_59 : f32 to vector<1x128xf32>
    %120 = arith.mulf %118, %119 : vector<1x128xf32>
    %c0_60 = arith.constant 0 : index
    %c0_61 = arith.constant 0 : index
    %121 = vector.load %arg11[%c0_60, %c0_61] : memref<1x128xf32, #tpu.memory_space<vmem>>, vector<1x128xf32>
    tpu.vector_store %arg11[%c0_60, %c0_61], %120 {strides = array<i32>} : memref<1x128xf32, #tpu.memory_space<vmem>>, vector<1x128xf32>,
    return
  }
}

</mosaic_0001>

<llo_original>
// kernel: user_forward.3
$region0: #{user_forward.3}
  #allocation0 [shape = 'u32[]', space=smem, size = 0x4, offset = 0x4, fixed_abs, tag = 'smem constant byte address 0x4 - core index']
  #allocation1 [shape = 'u32[72,128]{1,0:T(1,128)}', space=vmem, size = 0x9000, scoped, tag = 'internal scratch']
  %s0 = inlined_call_operand.vmem [shape: f32[4,32], index: 0, kind: input, shape index: {}]
  %s1 = inlined_call_operand.vmem [shape: f32[4,4,32], index: 1, kind: input, shape index: {}]
  %s2 = inlined_call_operand.vmem [shape: f32[4,4,128], index: 2, kind: input, shape index: {}]
  %s3 = inlined_call_operand.vmem [shape: f32[128,64], index: 3, kind: input, shape index: {}]
  %s4 = inlined_call_operand.vmem [shape: f32[1,64], index: 4, kind: input, shape index: {}]
  %s5 = inlined_call_operand.vmem [shape: f32[128,64], index: 5, kind: input, shape index: {}]
  %s6 = inlined_call_operand.vmem [shape: f32[1,64], index: 6, kind: input, shape index: {}]
  %s7 = inlined_call_operand.vmem [shape: f32[128,64], index: 7, kind: input, shape index: {}]
  %s8 = inlined_call_operand.vmem [shape: f32[1,64], index: 8, kind: input, shape index: {}]
  %s9 = inlined_call_operand.vmem [shape: f32[64,128], index: 9, kind: input, shape index: {}]
  %s10 = inlined_call_operand.vmem [shape: f32[1,128], index: 10, kind: input, shape index: {}]
  %s11 = inlined_call_operand.hbm [shape: f32[1,128], index: 11, kind: output, shape index: {}]
  %s12 = sld [smem:[#allocation0]]
  $region54: #{user_forward.3} parent=0
    _
  %s14 = ssub.s32 1, %s12
  %s15 = scalar_select 0, %s14, %s12
  $region1: #{user_forward.3} parent=0
    #allocation2 [shape = 'u8[512]{0}', space=vmem, size = 0x400, scoped, tag = 'output window, operand 0, single buffered']
    #allocation3 [shape = 's32[1]{0}', space=sflag, size = 0x4, scoped, tag = 'scoped memory for user_forward.3']
    %16 = vsyncpa [#allocation3], 0
    // Predicated region
    $region2: #{user_forward.3} parent=1 // pred_check
      _
    $region3: #{user_forward.3} parent=1 // pred_check_branch
      %18 = sbr.rel (0) target = $region5
    $region4: #{user_forward.3} parent=1 // pred_region
      _
    $region5: #{user_forward.3} parent=1 // pred_fallthru
      _
    // Predicated region
    $region6: #{user_forward.3} parent=1 // pred_check
      _
    $region7: #{user_forward.3} parent=1 // pred_check_branch
      %20 = sbr.rel (0) target = $region9
    $region8: #{user_forward.3} parent=1 // pred_region
      _
    $region9: #{user_forward.3} parent=1 // pred_fallthru
      _
    // Predicated region
    $region10: #{user_forward.3} parent=1 // pred_check
      _
    $region11: #{user_forward.3} parent=1 // pred_check_branch
      %22 = sbr.rel (0) target = $region13
    $region12: #{user_forward.3} parent=1 // pred_region
      _
    $region13: #{user_forward.3} parent=1 // pred_fallthru
      _
    // Predicated region
    $region14: #{user_forward.3} parent=1 // pred_check
      _
    $region15: #{user_forward.3} parent=1 // pred_check_branch
      %24 = sbr.rel (0) target = $region17
    $region16: #{user_forward.3} parent=1 // pred_region
      _
    $region17: #{user_forward.3} parent=1 // pred_fallthru
      _
    // Predicated region
    $region18: #{user_forward.3} parent=1 // pred_check
      _
    $region19: #{user_forward.3} parent=1 // pred_check_branch
      %26 = sbr.rel (0) target = $region21
    $region20: #{user_forward.3} parent=1 // pred_region
      _
    $region21: #{user_forward.3} parent=1 // pred_fallthru
      _
    // Predicated region
    $region22: #{user_forward.3} parent=1 // pred_check
      _
    $region23: #{user_forward.3} parent=1 // pred_check_branch
      %28 = sbr.rel (0) target = $region25
    $region24: #{user_forward.3} parent=1 // pred_region
      _
    $region25: #{user_forward.3} parent=1 // pred_fallthru
      _
    // Predicated region
    $region26: #{user_forward.3} parent=1 // pred_check
      _
    $region27: #{user_forward.3} parent=1 // pred_check_branch
      %30 = sbr.rel (0) target = $region29
    $region28: #{user_forward.3} parent=1 // pred_region
      _
    $region29: #{user_forward.3} parent=1 // pred_fallthru
      _
    // Predicated region
    $region30: #{user_forward.3} parent=1 // pred_check
      _
    $region31: #{user_forward.3} parent=1 // pred_check_branch
      %32 = sbr.rel (0) target = $region33
    $region32: #{user_forward.3} parent=1 // pred_region
      _
    $region33: #{user_forward.3} parent=1 // pred_fallthru
      _
    // Predicated region
    $region34: #{user_forward.3} parent=1 // pred_check
      _
    $region35: #{user_forward.3} parent=1 // pred_check_branch
      %34 = sbr.rel (0) target = $region37
    $region36: #{user_forward.3} parent=1 // pred_region
      _
    $region37: #{user_forward.3} parent=1 // pred_fallthru
      _
    // Predicated region
    $region38: #{user_forward.3} parent=1 // pred_check
      _
    $region39: #{user_forward.3} parent=1 // pred_check_branch
      %36 = sbr.rel (0) target = $region41
    $region40: #{user_forward.3} parent=1 // pred_region
      _
    $region41: #{user_forward.3} parent=1 // pred_fallthru
      _
    // Predicated region
    $region42: #{user_forward.3} parent=1 // pred_check
      _
    $region43: #{user_forward.3} parent=1 // pred_check_branch
      %38 = sbr.rel (0) target = $region45
    $region44: #{user_forward.3} parent=1 // pred_region
      _
    $region45: #{user_forward.3} parent=1 // pred_fallthru
      _
    %v39 = vld [vmem:[%s0] sm:$0xf]
    %v40 = vld [vmem:[%s1] sm:$0xf]
    %v41 = vld [vmem:[%s1 + $0x4] sm:$0xf]
    %v42 = vld [vmem:[%s1 + $0x8] sm:$0xf]
    %v43 = vld [vmem:[%s1 + $0xc] sm:$0xf]
    %v45 = vrot.slane %v39, 1
    %v46 = vrot.slane %v39, 2
    %v47 = vrot.slane %v39, 3
    %v48 = vperm.slane %v39, 0
    %v49 = vperm.slane %v45, 0
    %v50 = vperm.slane %v46, 0
    %v51 = vperm.slane %v47, 0
    %v56 = vmul.f32 %v48, %v40
    %v57 = vmul.f32 %v49, %v41
    %v58 = vmul.f32 %v50, %v42
    %v59 = vmul.f32 %v51, %v43
    %vm60 = vcmask 257024
    %v61 = vsel %vm60, %v56, 0.0
    %62 = vadd.xlane.f32.xlu0 %v61
    %v63 = vpop.xlane.xlu0 %62
    %v64 = vsel %vm60, %v57, 0.0
    %65 = vadd.xlane.f32.xlu0 %v64
    %v66 = vpop.xlane.xlu0 %65
    %v67 = vsel %vm60, %v58, 0.0
    %68 = vadd.xlane.f32.xlu0 %v67
    %v69 = vpop.xlane.xlu0 %68
    %v70 = vsel %vm60, %v59, 0.0
    %71 = vadd.xlane.f32.xlu0 %v70
    %v72 = vpop.xlane.xlu0 %71
    %v73 = vmul.f32 %v63, 0.17677669
    %v74 = vmul.f32 %v66, 0.17677669
    %v75 = vmul.f32 %v69, 0.17677669
    %v76 = vmul.f32 %v72, 0.17677669
    %v81 = vlaneseq
    %v82 = vand.u32 %v81, 127
    %v83 = vperm.slane %v73, %v82
    %v84 = vperm.slane %v74, %v82
    %v85 = vperm.slane %v75, %v82
    %v86 = vperm.slane %v76, %v82
    %vm87 = vcmask 1041409
    %v88 = vsel %vm87, %v84, %v83
    %vm89 = vcmask 1042434
    %v90 = vsel %vm89, %v85, %v88
    %vm91 = vcmask 1043459
    %v92 = vsel %vm91, %v86, %v90
    %vm94 = vcmask 27648
    %v95 = vsel %vm94, %v92, -inf
    %96 = vmax.xlane.f32.xlu0 %v95
    %v97 = vpop.xlane.xlu0 %96
    %v99 = vperm.slane %v97, 0
    %v100 = vperm.slane %v97, 1
    %v101 = vperm.slane %v97, 2
    %v102 = vperm.slane %v97, 3
    %v107 = vsub.f32 %v73, %v99
    %v108 = vsub.f32 %v74, %v100
    %v109 = vsub.f32 %v75, %v101
    %v110 = vsub.f32 %v76, %v102
    %v111 = vmul.f32 %v107, 1.442695
    %v112 = vpow.pop %v111
    %v113 = vmul.f32 %v108, 1.442695
    %v114 = vpow.pop %v113
    %v115 = vmul.f32 %v109, 1.442695
    %v116 = vpow.pop %v115
    %v117 = vmul.f32 %v110, 1.442695
    %v118 = vpow.pop %v117
    %123 = vset.pattern.permute.xlu0 0
    %124 = vperm.xlu0 %123, %v112
    %v125 = vpop.permute.xlu0 %124
    %126 = vset.pattern.permute.xlu0 0
    %127 = vperm.xlu0 %126, %v114
    %v128 = vpop.permute.xlu0 %127
    %129 = vset.pattern.permute.xlu0 0
    %130 = vperm.xlu0 %129, %v116
    %v131 = vpop.permute.xlu0 %130
    %132 = vset.pattern.permute.xlu0 0
    %133 = vperm.xlu0 %132, %v118
    %v134 = vpop.permute.xlu0 %133
    %v135 = vperm.slane %v125, %v82
    %v136 = vperm.slane %v128, %v82
    %v137 = vperm.slane %v131, %v82
    %v138 = vperm.slane %v134, %v82
    %v139 = vsel %vm87, %v136, %v135
    %v140 = vsel %vm89, %v137, %v139
    %v141 = vsel %vm91, %v138, %v140
    %v143 = vsel %vm94, %v141, 0.0
    %144 = vadd.xlane.f32.xlu0 %v143
    %v145 = vpop.xlane.xlu0 %144
    %v147 = vperm.slane %v145, 0
    %v148 = vperm.slane %v145, 1
    %v149 = vperm.slane %v145, 2
    %v150 = vperm.slane %v145, 3
    %v155 = vrcp.pop %v147
    %v156 = vmul.f32 %v147, %v155
    %v157 = vsub.f32 1.0, %v156
    %v158 = vmul.f32 %v155, %v157
    %v159 = vadd.f32 %v155, %v158
    %vm160 = vweird.f32 %v147
    %vm161 = vweird.f32 %v155
    %vm162 = vmor %vm160, %vm161
    %v163 = vsel %vm162, %v155, %v159
    %v164 = vand.u32 2147483647, %v147
    %vm165 = vcmp.eq.f32.partialorder %v164, 8.507059e+37
    %v166 = vand.u32 %v147, 2147483648
    %v167 = vor.u32 1.1754944e-38, %v166
    %v168 = vsel %vm165, %v167, %v163
    %v169 = vmul.f32 %v112, %v168
    %v170 = vrcp.pop %v148
    %v171 = vmul.f32 %v148, %v170
    %v172 = vsub.f32 1.0, %v171
    %v173 = vmul.f32 %v170, %v172
    %v174 = vadd.f32 %v170, %v173
    %vm175 = vweird.f32 %v148
    %vm176 = vweird.f32 %v170
    %vm177 = vmor %vm175, %vm176
    %v178 = vsel %vm177, %v170, %v174
    %v179 = vand.u32 2147483647, %v148
    %vm180 = vcmp.eq.f32.partialorder %v179, 8.507059e+37
    %v181 = vand.u32 %v148, 2147483648
    %v182 = vor.u32 1.1754944e-38, %v181
    %v183 = vsel %vm180, %v182, %v178
    %v184 = vmul.f32 %v114, %v183
    %v185 = vrcp.pop %v149
    %v186 = vmul.f32 %v149, %v185
    %v187 = vsub.f32 1.0, %v186
    %v188 = vmul.f32 %v185, %v187
    %v189 = vadd.f32 %v185, %v188
    %vm190 = vweird.f32 %v149
    %vm191 = vweird.f32 %v185
    %vm192 = vmor %vm190, %vm191
    %v193 = vsel %vm192, %v185, %v189
    %v194 = vand.u32 2147483647, %v149
    %vm195 = vcmp.eq.f32.partialorder %v194, 8.507059e+37
    %v196 = vand.u32 %v149, 2147483648
    %v197 = vor.u32 1.1754944e-38, %v196
    %v198 = vsel %vm195, %v197, %v193
    %v199 = vmul.f32 %v116, %v198
    %v200 = vrcp.pop %v150
    %v201 = vmul.f32 %v150, %v200
    %v202 = vsub.f32 1.0, %v201
    %v203 = vmul.f32 %v200, %v202
    %v204 = vadd.f32 %v200, %v203
    %vm205 = vweird.f32 %v150
    %vm206 = vweird.f32 %v200
    %vm207 = vmor %vm205, %vm206
    %v208 = vsel %vm207, %v200, %v204
    %v209 = vand.u32 2147483647, %v150
    %vm210 = vcmp.eq.f32.partialorder %v209, 8.507059e+37
    %v211 = vand.u32 %v150, 2147483648
    %v212 = vor.u32 1.1754944e-38, %v211
    %v213 = vsel %vm210, %v212, %v208
    %v214 = vmul.f32 %v118, %v213
    %v215 = vld [vmem:[%s2] sm:$0xf]
    %v216 = vld [vmem:[%s2 + $0x4] sm:$0xf]
    %v217 = vld [vmem:[%s2 + $0x8] sm:$0xf]
    %v218 = vld [vmem:[%s2 + $0xc] sm:$0xf]
    %220 = vset.pattern.permute.xlu0 0
    %221 = vperm.xlu0 %220, %v169
    %v222 = vpop.permute.xlu0 %221
    %225 = vset.pattern.permute.xlu0 0
    %226 = vperm.xlu0 %225, %v184
    %v227 = vpop.permute.xlu0 %226
    %230 = vset.pattern.permute.xlu0 0
    %231 = vperm.xlu0 %230, %v199
    %v232 = vpop.permute.xlu0 %231
    %235 = vset.pattern.permute.xlu0 0
    %236 = vperm.xlu0 %235, %v214
    %v237 = vpop.permute.xlu0 %236
    %v239 = vmul.f32 %v222, %v215
    %v240 = vmul.f32 %v227, %v216
    %v241 = vmul.f32 %v232, %v217
    %v242 = vmul.f32 %v237, %v218
    %vm243 = vcmask 1043456
    %v244 = vsel %vm243, %v239, 0.0
    %v245 = vrot.slane %v244, 4
    %v246 = vadd.f32 %v244, %v245
    %v247 = vrot.slane %v246, 2
    %v248 = vadd.f32 %v246, %v247
    %v249 = vrot.slane %v248, 1
    %v250 = vadd.f32 %v248, %v249
    %v251 = vsel %vm243, %v240, 0.0
    %v252 = vrot.slane %v251, 4
    %v253 = vadd.f32 %v251, %v252
    %v254 = vrot.slane %v253, 2
    %v255 = vadd.f32 %v253, %v254
    %v256 = vrot.slane %v255, 1
    %v257 = vadd.f32 %v255, %v256
    %v258 = vsel %vm243, %v241, 0.0
    %v259 = vrot.slane %v258, 4
    %v260 = vadd.f32 %v258, %v259
    %v261 = vrot.slane %v260, 2
    %v262 = vadd.f32 %v260, %v261
    %v263 = vrot.slane %v262, 1
    %v264 = vadd.f32 %v262, %v263
    %v265 = vsel %vm243, %v242, 0.0
    %v266 = vrot.slane %v265, 4
    %v267 = vadd.f32 %v265, %v266
    %v268 = vrot.slane %v267, 2
    %v269 = vadd.f32 %v267, %v268
    %v270 = vrot.slane %v269, 1
    %v271 = vadd.f32 %v269, %v270
    %v272 = vld [vmem:[%s3] sm:$0xff]
    %v273 = vld [vmem:[%s3 + $0x8] sm:$0xff]
    %v274 = vld [vmem:[%s3 + $0x10] sm:$0xff]
    %v275 = vld [vmem:[%s3 + $0x18] sm:$0xff]
    %v276 = vld [vmem:[%s3 + $0x20] sm:$0xff]
    %v277 = vld [vmem:[%s3 + $0x28] sm:$0xff]
    %v278 = vld [vmem:[%s3 + $0x30] sm:$0xff]
    %v279 = vld [vmem:[%s3 + $0x38] sm:$0xff]
    %v280 = vld [vmem:[%s3 + $0x40] sm:$0xff]
    %v281 = vld [vmem:[%s3 + $0x48] sm:$0xff]
    %v282 = vld [vmem:[%s3 + $0x50] sm:$0xff]
    %v283 = vld [vmem:[%s3 + $0x58] sm:$0xff]
    %v284 = vld [vmem:[%s3 + $0x60] sm:$0xff]
    %v285 = vld [vmem:[%s3 + $0x68] sm:$0xff]
    %v286 = vld [vmem:[%s3 + $0x70] sm:$0xff]
    %v287 = vld [vmem:[%s3 + $0x78] sm:$0xff]
    %v288 = vld [vmem:[%s4] sm:$0x1]
    %v290 = vperm.slane %v288, 0
    %v296 = vsel %vm87, %v257, %v250
    %v297 = vsel %vm89, %v264, %v296
    %v298 = vsel %vm91, %v271, %v297
    %300 = vmatpush.msra.mxu0 %v287
    %301 = vmatpush.msra.mxu0 %v286
    %302 = vmatpush.msra.mxu0 %v285
    %303 = vmatpush.msra.mxu0 %v284
    %304 = vmatpush.msra.mxu0 %v283
    %305 = vmatpush.msra.mxu0 %v282
    %306 = vmatpush.msra.mxu0 %v281
    %307 = vmatpush.msra.mxu0 %v280
    %308 = vmatpush.msra.mxu0 %v279
    %309 = vmatpush.msra.mxu0 %v278
    %310 = vmatpush.msra.mxu0 %v277
    %311 = vmatpush.msra.mxu0 %v276
    %312 = vmatpush.msra.mxu0 %v275
    %313 = vmatpush.msra.mxu0 %v274
    %314 = vmatpush.msra.mxu0 %v273
    %315 = vmatpush.msra.mxu0 %v272
    %316 = vmatmul.f32.gmra.mxu0 %v298
    %v317 = vpop.f32.mrf.mxu0
    %v318 = vadd.f32 %v290, %v317
    %319 = vdwg.mxu0
    %v320 = vld [vmem:[%s5] sm:$0xff]
    %v321 = vld [vmem:[%s5 + $0x8] sm:$0xff]
    %v322 = vld [vmem:[%s5 + $0x10] sm:$0xff]
    %v323 = vld [vmem:[%s5 + $0x18] sm:$0xff]
    %v324 = vld [vmem:[%s5 + $0x20] sm:$0xff]
    %v325 = vld [vmem:[%s5 + $0x28] sm:$0xff]
    %v326 = vld [vmem:[%s5 + $0x30] sm:$0xff]
    %v327 = vld [vmem:[%s5 + $0x38] sm:$0xff]
    %v328 = vld [vmem:[%s5 + $0x40] sm:$0xff]
    %v329 = vld [vmem:[%s5 + $0x48] sm:$0xff]
    %v330 = vld [vmem:[%s5 + $0x50] sm:$0xff]
    %v331 = vld [vmem:[%s5 + $0x58] sm:$0xff]
    %v332 = vld [vmem:[%s5 + $0x60] sm:$0xff]
    %v333 = vld [vmem:[%s5 + $0x68] sm:$0xff]
    %v334 = vld [vmem:[%s5 + $0x70] sm:$0xff]
    %v335 = vld [vmem:[%s5 + $0x78] sm:$0xff]
    %v336 = vld [vmem:[%s6] sm:$0x1]
    %v338 = vperm.slane %v336, 0
    %340 = vmatpush.msra.mxu0 %v335
    %341 = vmatpush.msra.mxu0 %v334
    %342 = vmatpush.msra.mxu0 %v333
    %343 = vmatpush.msra.mxu0 %v332
    %344 = vmatpush.msra.mxu0 %v331
    %345 = vmatpush.msra.mxu0 %v330
    %346 = vmatpush.msra.mxu0 %v329
    %347 = vmatpush.msra.mxu0 %v328
    %348 = vmatpush.msra.mxu0 %v327
    %349 = vmatpush.msra.mxu0 %v326
    %350 = vmatpush.msra.mxu0 %v325
    %351 = vmatpush.msra.mxu0 %v324
    %352 = vmatpush.msra.mxu0 %v323
    %353 = vmatpush.msra.mxu0 %v322
    %354 = vmatpush.msra.mxu0 %v321
    %355 = vmatpush.msra.mxu0 %v320
    %356 = vmatmul.f32.gmra.mxu0 %v298
    %v357 = vpop.f32.mrf.mxu0
    %v358 = vadd.f32 %v338, %v357
    %359 = vdwg.mxu0
    %v360 = vld [vmem:[%s7] sm:$0xff]
    %v361 = vld [vmem:[%s7 + $0x8] sm:$0xff]
    %v362 = vld [vmem:[%s7 + $0x10] sm:$0xff]
    %v363 = vld [vmem:[%s7 + $0x18] sm:$0xff]
    %v364 = vld [vmem:[%s7 + $0x20] sm:$0xff]
    %v365 = vld [vmem:[%s7 + $0x28] sm:$0xff]
    %v366 = vld [vmem:[%s7 + $0x30] sm:$0xff]
    %v367 = vld [vmem:[%s7 + $0x38] sm:$0xff]
    %v368 = vld [vmem:[%s7 + $0x40] sm:$0xff]
    %v369 = vld [vmem:[%s7 + $0x48] sm:$0xff]
    %v370 = vld [vmem:[%s7 + $0x50] sm:$0xff]
    %v371 = vld [vmem:[%s7 + $0x58] sm:$0xff]
    %v372 = vld [vmem:[%s7 + $0x60] sm:$0xff]
    %v373 = vld [vmem:[%s7 + $0x68] sm:$0xff]
    %v374 = vld [vmem:[%s7 + $0x70] sm:$0xff]
    %v375 = vld [vmem:[%s7 + $0x78] sm:$0xff]
    %v376 = vld [vmem:[%s8] sm:$0x1]
    %v378 = vperm.slane %v376, 0
    %380 = vmatpush.msra.mxu0 %v375
    %381 = vmatpush.msra.mxu0 %v374
    %382 = vmatpush.msra.mxu0 %v373
    %383 = vmatpush.msra.mxu0 %v372
    %384 = vmatpush.msra.mxu0 %v371
    %385 = vmatpush.msra.mxu0 %v370
    %386 = vmatpush.msra.mxu0 %v369
    %387 = vmatpush.msra.mxu0 %v368
    %388 = vmatpush.msra.mxu0 %v367
    %389 = vmatpush.msra.mxu0 %v366
    %390 = vmatpush.msra.mxu0 %v365
    %391 = vmatpush.msra.mxu0 %v364
    %392 = vmatpush.msra.mxu0 %v363
    %393 = vmatpush.msra.mxu0 %v362
    %394 = vmatpush.msra.mxu0 %v361
    %395 = vmatpush.msra.mxu0 %v360
    %396 = vmatmul.f32.gmra.mxu0 %v298
    %v397 = vpop.f32.mrf.mxu0
    %v398 = vadd.f32 %v378, %v397
    %399 = vdwg.mxu0
    %vm400 = vcmask 130048
    %v402 = vsel %vm400, %v318, 0
    %v405 = vsel %vm400, %v358, 0
    %407 = vmatpush.xpose.msra.mxu0 0.0
    %408 = vmatpush.xpose.msra.mxu0 0.0
    %409 = vmatpush.xpose.msra.mxu0 0.0
    %410 = vmatpush.xpose.msra.mxu0 0.0
    %411 = vmatpush.xpose.msra.mxu0 0.0
    %412 = vmatpush.xpose.msra.mxu0 0.0
    %413 = vmatpush.xpose.msra.mxu0 0.0
    %414 = vmatpush.xpose.msra.mxu0 0.0
    %415 = vmatpush.xpose.msra.mxu0 0.0
    %416 = vmatpush.xpose.msra.mxu0 0.0
    %417 = vmatpush.xpose.msra.mxu0 0.0
    %418 = vmatpush.xpose.msra.mxu0 0.0
    %419 = vmatpush.xpose.msra.mxu0 0.0
    %420 = vmatpush.xpose.msra.mxu0 0.0
    %421 = vmatpush.xpose.msra.mxu0 0.0
    %422 = vmatpush.xpose.msra.mxu0 %v405
    %423 = vmatmul.f32.gmra.mxu0 %v402
    %v424 = vpop.f32.mrf.mxu0
    %v425 = vadd.f32 0.0, %v424
    %426 = vdwg.mxu0
    %v427 = vmul.f32 %v425, 0.25
    %v428 = vsel %vm94, %v427, -inf
    %429 = vmax.xlane.f32.xlu0 %v428
    %v430 = vpop.xlane.xlu0 %429
    %v431 = vsub.f32 %v427, %v430
    %v432 = vmul.f32 %v431, 1.442695
    %v433 = vpow.pop %v432
    %v434 = vsel %vm94, %v433, 0.0
    %435 = vadd.xlane.f32.xlu0 %v434
    %v436 = vpop.xlane.xlu0 %435
    %v437 = vrcp.pop %v436
    %v438 = vmul.f32 %v436, %v437
    %v439 = vsub.f32 1.0, %v438
    %v440 = vmul.f32 %v437, %v439
    %v441 = vadd.f32 %v437, %v440
    %vm442 = vweird.f32 %v436
    %vm443 = vweird.f32 %v437
    %vm444 = vmor %vm442, %vm443
    %v445 = vsel %vm444, %v437, %v441
    %v446 = vand.u32 2147483647, %v436
    %vm447 = vcmp.eq.f32.partialorder %v446, 8.507059e+37
    %v448 = vand.u32 %v436, 2147483648
    %v449 = vor.u32 1.1754944e-38, %v448
    %v450 = vsel %vm447, %v449, %v445
    %v451 = vmul.f32 %v433, %v450
    %vm452 = vcmask 31744
    %v454 = vsel %vm452, %v451, 0
    %v457 = vsel %vm243, %v398, 0
    %459 = vmatpush.msra.mxu0 0.0
    %460 = vmatpush.msra.mxu0 0.0
    %461 = vmatpush.msra.mxu0 0.0
    %462 = vmatpush.msra.mxu0 0.0
    %463 = vmatpush.msra.mxu0 0.0
    %464 = vmatpush.msra.mxu0 0.0
    %465 = vmatpush.msra.mxu0 0.0
    %466 = vmatpush.msra.mxu0 0.0
    %467 = vmatpush.msra.mxu0 0.0
    %468 = vmatpush.msra.mxu0 0.0
    %469 = vmatpush.msra.mxu0 0.0
    %470 = vmatpush.msra.mxu0 0.0
    %471 = vmatpush.msra.mxu0 0.0
    %472 = vmatpush.msra.mxu0 0.0
    %473 = vmatpush.msra.mxu0 0.0
    %474 = vmatpush.msra.mxu0 %v457
    %475 = vmatmul.f32.gmra.mxu0 %v454
    %v476 = vpop.f32.mrf.mxu0
    %v477 = vadd.f32 0.0, %v476
    %478 = vdwg.mxu0
    %v479 = vld [vmem:[%s9] sm:$0xff]
    %v480 = vld [vmem:[%s9 + $0x8] sm:$0xff]
    %481 = vrot.lane.b32.xlu0 %v318, 112
    %v482 = vpop.permute.xlu0 %481
    %483 = vrot.lane.b32.xlu0 %v358, 112
    %v484 = vpop.permute.xlu0 %483
    %v485 = vsel %vm400, %v482, 0
    %v487 = vsel %vm400, %v484, 0
    %489 = vmatpush.xpose.msra.mxu0 0.0
    %490 = vmatpush.xpose.msra.mxu0 0.0
    %491 = vmatpush.xpose.msra.mxu0 0.0
    %492 = vmatpush.xpose.msra.mxu0 0.0
    %493 = vmatpush.xpose.msra.mxu0 0.0
    %494 = vmatpush.xpose.msra.mxu0 0.0
    %495 = vmatpush.xpose.msra.mxu0 0.0
    %496 = vmatpush.xpose.msra.mxu0 0.0
    %497 = vmatpush.xpose.msra.mxu0 0.0
    %498 = vmatpush.xpose.msra.mxu0 0.0
    %499 = vmatpush.xpose.msra.mxu0 0.0
    %500 = vmatpush.xpose.msra.mxu0 0.0
    %501 = vmatpush.xpose.msra.mxu0 0.0
    %502 = vmatpush.xpose.msra.mxu0 0.0
    %503 = vmatpush.xpose.msra.mxu0 0.0
    %504 = vmatpush.xpose.msra.mxu0 %v487
    %505 = vmatmul.f32.gmra.mxu0 %v485
    %v506 = vpop.f32.mrf.mxu0
    %v507 = vadd.f32 0.0, %v506
    %508 = vdwg.mxu0
    %v509 = vmul.f32 %v507, 0.25
    %v510 = vsel %vm94, %v509, -inf
    %511 = vmax.xlane.f32.xlu0 %v510
    %v512 = vpop.xlane.xlu0 %511
    %v513 = vsub.f32 %v509, %v512
    %v514 = vmul.f32 %v513, 1.442695
    %v515 = vpow.pop %v514
    %v516 = vsel %vm94, %v515, 0.0
    %517 = vadd.xlane.f32.xlu0 %v516
    %v518 = vpop.xlane.xlu0 %517
    %v519 = vrcp.pop %v518
    %v520 = vmul.f32 %v518, %v519
    %v521 = vsub.f32 1.0, %v520
    %v522 = vmul.f32 %v519, %v521
    %v523 = vadd.f32 %v519, %v522
    %vm524 = vweird.f32 %v518
    %vm525 = vweird.f32 %v519
    %vm526 = vmor %vm524, %vm525
    %v527 = vsel %vm526, %v519, %v523
    %v528 = vand.u32 2147483647, %v518
    %vm529 = vcmp.eq.f32.partialorder %v528, 8.507059e+37
    %v530 = vand.u32 %v518, 2147483648
    %v531 = vor.u32 1.1754944e-38, %v530
    %v532 = vsel %vm529, %v531, %v527
    %v533 = vmul.f32 %v515, %v532
    %534 = vrot.lane.b32.xlu0 %v398, 112
    %v535 = vpop.permute.xlu0 %534
    %v537 = vsel %vm452, %v533, 0
    %v539 = vsel %vm243, %v535, 0
    %541 = vmatpush.msra.mxu0 0.0
    %542 = vmatpush.msra.mxu0 0.0
    %543 = vmatpush.msra.mxu0 0.0
    %544 = vmatpush.msra.mxu0 0.0
    %545 = vmatpush.msra.mxu0 0.0
    %546 = vmatpush.msra.mxu0 0.0
    %547 = vmatpush.msra.mxu0 0.0
    %548 = vmatpush.msra.mxu0 0.0
    %549 = vmatpush.msra.mxu0 0.0
    %550 = vmatpush.msra.mxu0 0.0
    %551 = vmatpush.msra.mxu0 0.0
    %552 = vmatpush.msra.mxu0 0.0
    %553 = vmatpush.msra.mxu0 0.0
    %554 = vmatpush.msra.mxu0 0.0
    %555 = vmatpush.msra.mxu0 0.0
    %556 = vmatpush.msra.mxu0 %v539
    %557 = vmatmul.f32.gmra.mxu0 %v537
    %v558 = vpop.f32.mrf.mxu0
    %v559 = vadd.f32 0.0, %v558
    %560 = vdwg.mxu0
    %v561 = vld [vmem:[%s9 + $0x10] sm:$0xff]
    %v562 = vld [vmem:[%s9 + $0x18] sm:$0xff]
    %v564 = vsel %vm400, %v559, 0
    %566 = vmatpush.msra.mxu0 0.0
    %567 = vmatpush.msra.mxu0 0.0
    %568 = vmatpush.msra.mxu0 0.0
    %569 = vmatpush.msra.mxu0 0.0
    %570 = vmatpush.msra.mxu0 0.0
    %571 = vmatpush.msra.mxu0 0.0
    %572 = vmatpush.msra.mxu0 0.0
    %573 = vmatpush.msra.mxu0 0.0
    %574 = vmatpush.msra.mxu0 0.0
    %575 = vmatpush.msra.mxu0 0.0
    %576 = vmatpush.msra.mxu0 0.0
    %577 = vmatpush.msra.mxu0 0.0
    %578 = vmatpush.msra.mxu0 0.0
    %579 = vmatpush.msra.mxu0 0.0
    %580 = vmatpush.msra.mxu0 %v562
    %581 = vmatpush.msra.mxu0 %v561
    %582 = vmatmul.f32.gmra.mxu0 %v564
    %v583 = vpop.f32.mrf.mxu0
    %v584 = vadd.f32 0.0, %v583
    %585 = vdwg.mxu0
    %v587 = vsel %vm400, %v477, 0
    %589 = vmatpush.msra.mxu0 0.0
    %590 = vmatpush.msra.mxu0 0.0
    %591 = vmatpush.msra.mxu0 0.0
    %592 = vmatpush.msra.mxu0 0.0
    %593 = vmatpush.msra.mxu0 0.0
    %594 = vmatpush.msra.mxu0 0.0
    %595 = vmatpush.msra.mxu0 0.0
    %596 = vmatpush.msra.mxu0 0.0
    %597 = vmatpush.msra.mxu0 0.0
    %598 = vmatpush.msra.mxu0 0.0
    %599 = vmatpush.msra.mxu0 0.0
    %600 = vmatpush.msra.mxu0 0.0
    %601 = vmatpush.msra.mxu0 0.0
    %602 = vmatpush.msra.mxu0 0.0
    %603 = vmatpush.msra.mxu0 %v480
    %604 = vmatpush.msra.mxu0 %v479
    %605 = vmatmul.f32.gmra.mxu0 %v587
    %v606 = vpop.f32.mrf.mxu0
    %v607 = vadd.f32 %v584, %v606
    %608 = vdwg.mxu0
    %609 = vrot.lane.b32.xlu0 %v318, 96
    %v610 = vpop.permute.xlu0 %609
    %611 = vrot.lane.b32.xlu0 %v358, 96
    %v612 = vpop.permute.xlu0 %611
    %v613 = vsel %vm400, %v610, 0
    %v615 = vsel %vm400, %v612, 0
    %617 = vmatpush.xpose.msra.mxu0 0.0
    %618 = vmatpush.xpose.msra.mxu0 0.0
    %619 = vmatpush.xpose.msra.mxu0 0.0
    %620 = vmatpush.xpose.msra.mxu0 0.0
    %621 = vmatpush.xpose.msra.mxu0 0.0
    %622 = vmatpush.xpose.msra.mxu0 0.0
    %623 = vmatpush.xpose.msra.mxu0 0.0
    %624 = vmatpush.xpose.msra.mxu0 0.0
    %625 = vmatpush.xpose.msra.mxu0 0.0
    %626 = vmatpush.xpose.msra.mxu0 0.0
    %627 = vmatpush.xpose.msra.mxu0 0.0
    %628 = vmatpush.xpose.msra.mxu0 0.0
    %629 = vmatpush.xpose.msra.mxu0 0.0
    %630 = vmatpush.xpose.msra.mxu0 0.0
    %631 = vmatpush.xpose.msra.mxu0 0.0
    %632 = vmatpush.xpose.msra.mxu0 %v615
    %633 = vmatmul.f32.gmra.mxu0 %v613
    %v634 = vpop.f32.mrf.mxu0
    %v635 = vadd.f32 0.0, %v634
    %636 = vdwg.mxu0
    %v637 = vmul.f32 %v635, 0.25
    %v638 = vsel %vm94, %v637, -inf
    %639 = vmax.xlane.f32.xlu0 %v638
    %v640 = vpop.xlane.xlu0 %639
    %v641 = vsub.f32 %v637, %v640
    %v642 = vmul.f32 %v641, 1.442695
    %v643 = vpow.pop %v642
    %v644 = vsel %vm94, %v643, 0.0
    %645 = vadd.xlane.f32.xlu0 %v644
    %v646 = vpop.xlane.xlu0 %645
    %v647 = vrcp.pop %v646
    %v648 = vmul.f32 %v646, %v647
    %v649 = vsub.f32 1.0, %v648
    %v650 = vmul.f32 %v647, %v649
    %v651 = vadd.f32 %v647, %v650
    %vm652 = vweird.f32 %v646
    %vm653 = vweird.f32 %v647
    %vm654 = vmor %vm652, %vm653
    %v655 = vsel %vm654, %v647, %v651
    %v656 = vand.u32 2147483647, %v646
    %vm657 = vcmp.eq.f32.partialorder %v656, 8.507059e+37
    %v658 = vand.u32 %v646, 2147483648
    %v659 = vor.u32 1.1754944e-38, %v658
    %v660 = vsel %vm657, %v659, %v655
    %v661 = vmul.f32 %v643, %v660
    %662 = vrot.lane.b32.xlu0 %v398, 96
    %v663 = vpop.permute.xlu0 %662
    %v665 = vsel %vm452, %v661, 0
    %v667 = vsel %vm243, %v663, 0
    %669 = vmatpush.msra.mxu0 0.0
    %670 = vmatpush.msra.mxu0 0.0
    %671 = vmatpush.msra.mxu0 0.0
    %672 = vmatpush.msra.mxu0 0.0
    %673 = vmatpush.msra.mxu0 0.0
    %674 = vmatpush.msra.mxu0 0.0
    %675 = vmatpush.msra.mxu0 0.0
    %676 = vmatpush.msra.mxu0 0.0
    %677 = vmatpush.msra.mxu0 0.0
    %678 = vmatpush.msra.mxu0 0.0
    %679 = vmatpush.msra.mxu0 0.0
    %680 = vmatpush.msra.mxu0 0.0
    %681 = vmatpush.msra.mxu0 0.0
    %682 = vmatpush.msra.mxu0 0.0
    %683 = vmatpush.msra.mxu0 0.0
    %684 = vmatpush.msra.mxu0 %v667
    %685 = vmatmul.f32.gmra.mxu0 %v665
    %v686 = vpop.f32.mrf.mxu0
    %v687 = vadd.f32 0.0, %v686
    %688 = vdwg.mxu0
    %v689 = vld [vmem:[%s9 + $0x20] sm:$0xff]
    %v690 = vld [vmem:[%s9 + $0x28] sm:$0xff]
    %v692 = vsel %vm400, %v687, 0
    %694 = vmatpush.msra.mxu0 0.0
    %695 = vmatpush.msra.mxu0 0.0
    %696 = vmatpush.msra.mxu0 0.0
    %697 = vmatpush.msra.mxu0 0.0
    %698 = vmatpush.msra.mxu0 0.0
    %699 = vmatpush.msra.mxu0 0.0
    %700 = vmatpush.msra.mxu0 0.0
    %701 = vmatpush.msra.mxu0 0.0
    %702 = vmatpush.msra.mxu0 0.0
    %703 = vmatpush.msra.mxu0 0.0
    %704 = vmatpush.msra.mxu0 0.0
    %705 = vmatpush.msra.mxu0 0.0
    %706 = vmatpush.msra.mxu0 0.0
    %707 = vmatpush.msra.mxu0 0.0
    %708 = vmatpush.msra.mxu0 %v690
    %709 = vmatpush.msra.mxu0 %v689
    %710 = vmatmul.f32.gmra.mxu0 %v692
    %v711 = vpop.f32.mrf.mxu0
    %v712 = vadd.f32 0.0, %v711
    %713 = vdwg.mxu0
    %v714 = vadd.f32 %v607, %v712
    %715 = vrot.lane.b32.xlu0 %v318, 80
    %v716 = vpop.permute.xlu0 %715
    %717 = vrot.lane.b32.xlu0 %v358, 80
    %v718 = vpop.permute.xlu0 %717
    %v719 = vsel %vm400, %v716, 0
    %v721 = vsel %vm400, %v718, 0
    %723 = vmatpush.xpose.msra.mxu0 0.0
    %724 = vmatpush.xpose.msra.mxu0 0.0
    %725 = vmatpush.xpose.msra.mxu0 0.0
    %726 = vmatpush.xpose.msra.mxu0 0.0
    %727 = vmatpush.xpose.msra.mxu0 0.0
    %728 = vmatpush.xpose.msra.mxu0 0.0
    %729 = vmatpush.xpose.msra.mxu0 0.0
    %730 = vmatpush.xpose.msra.mxu0 0.0
    %731 = vmatpush.xpose.msra.mxu0 0.0
    %732 = vmatpush.xpose.msra.mxu0 0.0
    %733 = vmatpush.xpose.msra.mxu0 0.0
    %734 = vmatpush.xpose.msra.mxu0 0.0
    %735 = vmatpush.xpose.msra.mxu0 0.0
    %736 = vmatpush.xpose.msra.mxu0 0.0
    %737 = vmatpush.xpose.msra.mxu0 0.0
    %738 = vmatpush.xpose.msra.mxu0 %v721
    %739 = vmatmul.f32.gmra.mxu0 %v719
    %v740 = vpop.f32.mrf.mxu0
    %v741 = vadd.f32 0.0, %v740
    %742 = vdwg.mxu0
    %v743 = vmul.f32 %v741, 0.25
    %v744 = vsel %vm94, %v743, -inf
    %745 = vmax.xlane.f32.xlu0 %v744
    %v746 = vpop.xlane.xlu0 %745
    %v747 = vsub.f32 %v743, %v746
    %v748 = vmul.f32 %v747, 1.442695
    %v749 = vpow.pop %v748
    %v750 = vsel %vm94, %v749, 0.0
    %751 = vadd.xlane.f32.xlu0 %v750
    %v752 = vpop.xlane.xlu0 %751
    %v753 = vrcp.pop %v752
    %v754 = vmul.f32 %v752, %v753
    %v755 = vsub.f32 1.0, %v754
    %v756 = vmul.f32 %v753, %v755
    %v757 = vadd.f32 %v753, %v756
    %vm758 = vweird.f32 %v752
    %vm759 = vweird.f32 %v753
    %vm760 = vmor %vm758, %vm759
    %v761 = vsel %vm760, %v753, %v757
    %v762 = vand.u32 2147483647, %v752
    %vm763 = vcmp.eq.f32.partialorder %v762, 8.507059e+37
    %v764 = vand.u32 %v752, 2147483648
    %v765 = vor.u32 1.1754944e-38, %v764
    %v766 = vsel %vm763, %v765, %v761
    %v767 = vmul.f32 %v749, %v766
    %768 = vrot.lane.b32.xlu0 %v398, 80
    %v769 = vpop.permute.xlu0 %768
    %v771 = vsel %vm452, %v767, 0
    %v773 = vsel %vm243, %v769, 0
    %775 = vmatpush.msra.mxu0 0.0
    %776 = vmatpush.msra.mxu0 0.0
    %777 = vmatpush.msra.mxu0 0.0
    %778 = vmatpush.msra.mxu0 0.0
    %779 = vmatpush.msra.mxu0 0.0
    %780 = vmatpush.msra.mxu0 0.0
    %781 = vmatpush.msra.mxu0 0.0
    %782 = vmatpush.msra.mxu0 0.0
    %783 = vmatpush.msra.mxu0 0.0
    %784 = vmatpush.msra.mxu0 0.0
    %785 = vmatpush.msra.mxu0 0.0
    %786 = vmatpush.msra.mxu0 0.0
    %787 = vmatpush.msra.mxu0 0.0
    %788 = vmatpush.msra.mxu0 0.0
    %789 = vmatpush.msra.mxu0 0.0
    %790 = vmatpush.msra.mxu0 %v773
    %791 = vmatmul.f32.gmra.mxu0 %v771
    %v792 = vpop.f32.mrf.mxu0
    %v793 = vadd.f32 0.0, %v792
    %794 = vdwg.mxu0
    %v795 = vld [vmem:[%s9 + $0x30] sm:$0xff]
    %v796 = vld [vmem:[%s9 + $0x38] sm:$0xff]
    %v798 = vsel %vm400, %v793, 0
    %800 = vmatpush.msra.mxu0 0.0
    %801 = vmatpush.msra.mxu0 0.0
    %802 = vmatpush.msra.mxu0 0.0
    %803 = vmatpush.msra.mxu0 0.0
    %804 = vmatpush.msra.mxu0 0.0
    %805 = vmatpush.msra.mxu0 0.0
    %806 = vmatpush.msra.mxu0 0.0
    %807 = vmatpush.msra.mxu0 0.0
    %808 = vmatpush.msra.mxu0 0.0
    %809 = vmatpush.msra.mxu0 0.0
    %810 = vmatpush.msra.mxu0 0.0
    %811 = vmatpush.msra.mxu0 0.0
    %812 = vmatpush.msra.mxu0 0.0
    %813 = vmatpush.msra.mxu0 0.0
    %814 = vmatpush.msra.mxu0 %v796
    %815 = vmatpush.msra.mxu0 %v795
    %816 = vmatmul.f32.gmra.mxu0 %v798
    %v817 = vpop.f32.mrf.mxu0
    %v818 = vadd.f32 0.0, %v817
    %819 = vdwg.mxu0
    %v820 = vadd.f32 %v714, %v818
    %v821 = vld [vmem:[%s10] sm:$0x1]
    %v823 = vperm.slane %v821, 0
    %v825 = vadd.f32 %v820, %v823
    %v826 = vsel %vm243, %v825, 0.0
    %v827 = vrot.slane %v826, 4
    %v828 = vadd.f32 %v826, %v827
    %v829 = vrot.slane %v828, 2
    %v830 = vadd.f32 %v828, %v829
    %v831 = vrot.slane %v830, 1
    %v832 = vadd.f32 %v830, %v831
    %v833 = vmul.f32 %v832, 0.25
    %834 = vst [vmem:[#allocation2] sm:$0x1] %v833
    // Predicated region
    $region46: #{user_forward.3} parent=1 // pred_check
      _
    $region47: #{user_forward.3} parent=1 // pred_check_branch
      %836 = sbr.rel (0) target = $region49
    $region48: #{user_forward.3} parent=1 // pred_region
      %838 = vsyncadd [#allocation3], 0
      %s840 = sshll.u32 [#allocation2], 4
      %s841 = int_to_ptr.vmem [resolvable:$true] %s840
      %s842 = sshll.u32 %s11, 4
      %s843 = int_to_ptr.hbm [resolvable:$true] %s842
      %845 = dma.vmem_to_hbm [thread:$0]  %s841, 16, %s843, [#allocation3]
    $region49: #{user_forward.3} parent=1 // pred_fallthru
      _
    // Predicated region
    $region50: #{user_forward.3} parent=1 // pred_check
      _
    $region51: #{user_forward.3} parent=1 // pred_check_branch
      %847 = sbr.rel (0) target = $region53
    $region52: #{user_forward.3} parent=1 // pred_region
      %849 = dma.done [#allocation3], 16
    $region53: #{user_forward.3} parent=1 // pred_fallthru
      _
    %850 = vsyncpa [#allocation3], 1

// kernel: user_forward.2
$region0: #{user_forward.2}
  #allocation0 [shape = 'u32[]', space=smem, size = 0x4, offset = 0x4, fixed_abs, tag = 'smem constant byte address 0x4 - core index']
  #allocation1 [shape = 'u32[72,128]{1,0:T(1,128)}', space=vmem, size = 0x9000, scoped, tag = 'internal scratch']
  #allocation2 [shape = 'f32[128,512]{1,0:T(8,128)}', space=vmem, size = 0x40000, scoped, tag = 'scratch operand']
  %s0 = inlined_call_operand.vmem [shape: f32[128,16], index: 0, kind: input, shape index: {}]
  %s1 = inlined_call_operand.vmem [shape: f32[16,512], index: 1, kind: input, shape index: {}]
  %s2 = inlined_call_operand.hbm [shape: f32[128,512], index: 2, kind: input, shape index: {}]
  %s3 = inlined_call_operand.vmem [shape: f32[1,512], index: 3, kind: input, shape index: {}]
  %s4 = inlined_call_operand.vmem [shape: f32[16,128], index: 4, kind: output, shape index: {}]
  %s5 = sld [smem:[#allocation0]]
  $region30: #{user_forward.2} parent=0
    _
  %s7 = ssub.s32 1, %s5
  %s8 = scalar_select 0, %s7, %s5
  $region1: #{user_forward.2} parent=0
    #allocation3 [shape = 'u8[262144]{0}', space=vmem, size = 0x40000, scoped, tag = 'input window, operand 2, single buffered']
    #allocation4 [shape = 's32[1]{0}', space=sflag, size = 0x4, scoped, tag = 'scoped memory for user_forward.2']
    %9 = vsyncpa [#allocation4], 0
    // Predicated region
    $region2: #{user_forward.2} parent=1 // pred_check
      _
    $region3: #{user_forward.2} parent=1 // pred_check_branch
      %11 = sbr.rel (0) target = $region5
    $region4: #{user_forward.2} parent=1 // pred_region
      _
    $region5: #{user_forward.2} parent=1 // pred_fallthru
      _
    // Predicated region
    $region6: #{user_forward.2} parent=1 // pred_check
      _
    $region7: #{user_forward.2} parent=1 // pred_check_branch
      %13 = sbr.rel (0) target = $region9
    $region8: #{user_forward.2} parent=1 // pred_region
      _
    $region9: #{user_forward.2} parent=1 // pred_fallthru
      _
    // Predicated region
    $region10: #{user_forward.2} parent=1 // pred_check
      _
    $region11: #{user_forward.2} parent=1 // pred_check_branch
      %15 = sbr.rel (0) target = $region13
    $region12: #{user_forward.2} parent=1 // pred_region
      %17 = vsyncadd [#allocation4], 0
      %s18 = sshll.u32 %s2, 4
      %s19 = int_to_ptr.hbm [resolvable:$true] %s18
      %s20 = sshll.u32 [#allocation3], 4
      %s21 = int_to_ptr.vmem [resolvable:$true] %s20
      %26 = dma.hbm_to_vmem [thread:$0]  %s19, 8192, %s21, [#allocation4], 512, 512, 32
    $region13: #{user_forward.2} parent=1 // pred_fallthru
      _
    // Predicated region
    $region14: #{user_forward.2} parent=1 // pred_check
      _
    $region15: #{user_forward.2} parent=1 // pred_check_branch
      %28 = sbr.rel (0) target = $region17
    $region16: #{user_forward.2} parent=1 // pred_region
      _
    $region17: #{user_forward.2} parent=1 // pred_fallthru
      _
    // Predicated region
    $region18: #{user_forward.2} parent=1 // pred_check
      _
    $region19: #{user_forward.2} parent=1 // pred_check_branch
      %30 = sbr.rel (0) target = $region21
    $region20: #{user_forward.2} parent=1 // pred_region
      %32 = dma.done [#allocation4], 8192
    $region21: #{user_forward.2} parent=1 // pred_fallthru
      _
    %v33 = vld [vmem:[%s0] sm:$0xff]
    %v34 = vld [vmem:[%s0 + $0x8] sm:$0xff]
    %v35 = vld [vmem:[%s0 + $0x10] sm:$0xff]
    %v36 = vld [vmem:[%s0 + $0x18] sm:$0xff]
    %v37 = vld [vmem:[%s0 + $0x20] sm:$0xff]
    %v38 = vld [vmem:[%s0 + $0x28] sm:$0xff]
    %v39 = vld [vmem:[%s0 + $0x30] sm:$0xff]
    %v40 = vld [vmem:[%s0 + $0x38] sm:$0xff]
    %v41 = vld [vmem:[%s0 + $0x40] sm:$0xff]
    %v42 = vld [vmem:[%s0 + $0x48] sm:$0xff]
    %v43 = vld [vmem:[%s0 + $0x50] sm:$0xff]
    %v44 = vld [vmem:[%s0 + $0x58] sm:$0xff]
    %v45 = vld [vmem:[%s0 + $0x60] sm:$0xff]
    %v46 = vld [vmem:[%s0 + $0x68] sm:$0xff]
    %v47 = vld [vmem:[%s0 + $0x70] sm:$0xff]
    %v48 = vld [vmem:[%s0 + $0x78] sm:$0xff]
    %v49 = vld [vmem:[%s1] sm:$0xff]
    %v50 = vld [vmem:[%s1 + $0x8] sm:$0xff]
    %v51 = vld [vmem:[%s1 + $0x10] sm:$0xff]
    %v52 = vld [vmem:[%s1 + $0x18] sm:$0xff]
    %v53 = vld [vmem:[%s1 + $0x20] sm:$0xff]
    %v54 = vld [vmem:[%s1 + $0x28] sm:$0xff]
    %v55 = vld [vmem:[%s1 + $0x30] sm:$0xff]
    %v56 = vld [vmem:[%s1 + $0x38] sm:$0xff]
    %v57 = vld [vmem:[%s3] sm:$0xf]
    %v59 = vperm.slane %v57, 0
    %v60 = vperm.slane %v57, 1
    %v61 = vperm.slane %v57, 2
    %v62 = vperm.slane %v57, 3
    %vm67 = vcmask 130048
    %v69 = vsel %vm67, %v33, 0
    %v72 = vsel %vm67, %v34, 0
    %v75 = vsel %vm67, %v35, 0
    %v78 = vsel %vm67, %v36, 0
    %v81 = vsel %vm67, %v37, 0
    %v84 = vsel %vm67, %v38, 0
    %v87 = vsel %vm67, %v39, 0
    %v90 = vsel %vm67, %v40, 0
    %v93 = vsel %vm67, %v41, 0
    %v96 = vsel %vm67, %v42, 0
    %v99 = vsel %vm67, %v43, 0
    %v102 = vsel %vm67, %v44, 0
    %v105 = vsel %vm67, %v45, 0
    %v108 = vsel %vm67, %v46, 0
    %v111 = vsel %vm67, %v47, 0
    %v114 = vsel %vm67, %v48, 0
    %116 = vmatpush.msra.mxu0 0.0
    %117 = vmatpush.msra.mxu0 0.0
    %118 = vmatpush.msra.mxu0 0.0
    %119 = vmatpush.msra.mxu0 0.0
    %120 = vmatpush.msra.mxu0 0.0
    %121 = vmatpush.msra.mxu0 0.0
    %122 = vmatpush.msra.mxu0 0.0
    %123 = vmatpush.msra.mxu0 0.0
    %124 = vmatpush.msra.mxu0 0.0
    %125 = vmatpush.msra.mxu0 0.0
    %126 = vmatpush.msra.mxu0 0.0
    %127 = vmatpush.msra.mxu0 0.0
    %128 = vmatpush.msra.mxu0 0.0
    %129 = vmatpush.msra.mxu0 0.0
    %130 = vmatpush.msra.mxu0 %v53
    %131 = vmatpush.msra.mxu0 %v49
    %132 = vmatmul.f32.gmra.mxu0 %v69
    %v133 = vpop.f32.mrf.mxu0
    %v134 = vadd.f32 %v59, %v133
    %135 = vmatmul.f32.gmra.mxu0 %v72
    %v136 = vpop.f32.mrf.mxu0
    %v137 = vadd.f32 %v59, %v136
    %138 = vmatmul.f32.gmra.mxu0 %v75
    %v139 = vpop.f32.mrf.mxu0
    %v140 = vadd.f32 %v59, %v139
    %141 = vmatmul.f32.gmra.mxu0 %v78
    %v142 = vpop.f32.mrf.mxu0
    %v143 = vadd.f32 %v59, %v142
    %144 = vmatmul.f32.gmra.mxu0 %v81
    %v145 = vpop.f32.mrf.mxu0
    %v146 = vadd.f32 %v59, %v145
    %147 = vmatmul.f32.gmra.mxu0 %v84
    %v148 = vpop.f32.mrf.mxu0
    %v149 = vadd.f32 %v59, %v148
    %150 = vmatmul.f32.gmra.mxu0 %v87
    %v151 = vpop.f32.mrf.mxu0
    %v152 = vadd.f32 %v59, %v151
    %153 = vmatmul.f32.gmra.mxu0 %v90
    %v154 = vpop.f32.mrf.mxu0
    %v155 = vadd.f32 %v59, %v154
    %156 = vmatmul.f32.gmra.mxu0 %v93
    %v157 = vpop.f32.mrf.mxu0
    %v158 = vadd.f32 %v59, %v157
    %159 = vmatmul.f32.gmra.mxu0 %v96
    %v160 = vpop.f32.mrf.mxu0
    %v161 = vadd.f32 %v59, %v160
    %162 = vmatmul.f32.gmra.mxu0 %v99
    %v163 = vpop.f32.mrf.mxu0
    %v164 = vadd.f32 %v59, %v163
    %165 = vmatmul.f32.gmra.mxu0 %v102
    %v166 = vpop.f32.mrf.mxu0
    %v167 = vadd.f32 %v59, %v166
    %168 = vmatmul.f32.gmra.mxu0 %v105
    %v169 = vpop.f32.mrf.mxu0
    %v170 = vadd.f32 %v59, %v169
    %171 = vmatmul.f32.gmra.mxu0 %v108
    %v172 = vpop.f32.mrf.mxu0
    %v173 = vadd.f32 %v59, %v172
    %174 = vmatmul.f32.gmra.mxu0 %v111
    %v175 = vpop.f32.mrf.mxu0
    %v176 = vadd.f32 %v59, %v175
    %177 = vmatmul.f32.gmra.mxu0 %v114
    %v178 = vpop.f32.mrf.mxu0
    %v179 = vadd.f32 %v59, %v178
    %180 = vdwg.mxu0
    %181 = vmatpush.msra.mxu0 0.0
    %182 = vmatpush.msra.mxu0 0.0
    %183 = vmatpush.msra.mxu0 0.0
    %184 = vmatpush.msra.mxu0 0.0
    %185 = vmatpush.msra.mxu0 0.0
    %186 = vmatpush.msra.mxu0 0.0
    %187 = vmatpush.msra.mxu0 0.0
    %188 = vmatpush.msra.mxu0 0.0
    %189 = vmatpush.msra.mxu0 0.0
    %190 = vmatpush.msra.mxu0 0.0
    %191 = vmatpush.msra.mxu0 0.0
    %192 = vmatpush.msra.mxu0 0.0
    %193 = vmatpush.msra.mxu0 0.0
    %194 = vmatpush.msra.mxu0 0.0
    %195 = vmatpush.msra.mxu0 %v54
    %196 = vmatpush.msra.mxu0 %v50
    %197 = vmatmul.f32.gmra.mxu0 %v69
    %v198 = vpop.f32.mrf.mxu0
    %v199 = vadd.f32 %v60, %v198
    %200 = vmatmul.f32.gmra.mxu0 %v72
    %v201 = vpop.f32.mrf.mxu0
    %v202 = vadd.f32 %v60, %v201
    %203 = vmatmul.f32.gmra.mxu0 %v75
    %v204 = vpop.f32.mrf.mxu0
    %v205 = vadd.f32 %v60, %v204
    %206 = vmatmul.f32.gmra.mxu0 %v78
    %v207 = vpop.f32.mrf.mxu0
    %v208 = vadd.f32 %v60, %v207
    %209 = vmatmul.f32.gmra.mxu0 %v81
    %v210 = vpop.f32.mrf.mxu0
    %v211 = vadd.f32 %v60, %v210
    %212 = vmatmul.f32.gmra.mxu0 %v84
    %v213 = vpop.f32.mrf.mxu0
    %v214 = vadd.f32 %v60, %v213
    %215 = vmatmul.f32.gmra.mxu0 %v87
    %v216 = vpop.f32.mrf.mxu0
    %v217 = vadd.f32 %v60, %v216
    %218 = vmatmul.f32.gmra.mxu0 %v90
    %v219 = vpop.f32.mrf.mxu0
    %v220 = vadd.f32 %v60, %v219
    %221 = vmatmul.f32.gmra.mxu0 %v93
    %v222 = vpop.f32.mrf.mxu0
    %v223 = vadd.f32 %v60, %v222
    %224 = vmatmul.f32.gmra.mxu0 %v96
    %v225 = vpop.f32.mrf.mxu0
    %v226 = vadd.f32 %v60, %v225
    %227 = vmatmul.f32.gmra.mxu0 %v99
    %v228 = vpop.f32.mrf.mxu0
    %v229 = vadd.f32 %v60, %v228
    %230 = vmatmul.f32.gmra.mxu0 %v102
    %v231 = vpop.f32.mrf.mxu0
    %v232 = vadd.f32 %v60, %v231
    %233 = vmatmul.f32.gmra.mxu0 %v105
    %v234 = vpop.f32.mrf.mxu0
    %v235 = vadd.f32 %v60, %v234
    %236 = vmatmul.f32.gmra.mxu0 %v108
    %v237 = vpop.f32.mrf.mxu0
    %v238 = vadd.f32 %v60, %v237
    %239 = vmatmul.f32.gmra.mxu0 %v111
    %v240 = vpop.f32.mrf.mxu0
    %v241 = vadd.f32 %v60, %v240
    %242 = vmatmul.f32.gmra.mxu0 %v114
    %v243 = vpop.f32.mrf.mxu0
    %v244 = vadd.f32 %v60, %v243
    %245 = vdwg.mxu0
    %246 = vmatpush.msra.mxu0 0.0
    %247 = vmatpush.msra.mxu0 0.0
    %248 = vmatpush.msra.mxu0 0.0
    %249 = vmatpush.msra.mxu0 0.0
    %250 = vmatpush.msra.mxu0 0.0
    %251 = vmatpush.msra.mxu0 0.0
    %252 = vmatpush.msra.mxu0 0.0
    %253 = vmatpush.msra.mxu0 0.0
    %254 = vmatpush.msra.mxu0 0.0
    %255 = vmatpush.msra.mxu0 0.0
    %256 = vmatpush.msra.mxu0 0.0
    %257 = vmatpush.msra.mxu0 0.0
    %258 = vmatpush.msra.mxu0 0.0
    %259 = vmatpush.msra.mxu0 0.0
    %260 = vmatpush.msra.mxu0 %v55
    %261 = vmatpush.msra.mxu0 %v51
    %262 = vmatmul.f32.gmra.mxu0 %v69
    %v263 = vpop.f32.mrf.mxu0
    %v264 = vadd.f32 %v61, %v263
    %265 = vmatmul.f32.gmra.mxu0 %v72
    %v266 = vpop.f32.mrf.mxu0
    %v267 = vadd.f32 %v61, %v266
    %268 = vmatmul.f32.gmra.mxu0 %v75
    %v269 = vpop.f32.mrf.mxu0
    %v270 = vadd.f32 %v61, %v269
    %271 = vmatmul.f32.gmra.mxu0 %v78
    %v272 = vpop.f32.mrf.mxu0
    %v273 = vadd.f32 %v61, %v272
    %274 = vmatmul.f32.gmra.mxu0 %v81
    %v275 = vpop.f32.mrf.mxu0
    %v276 = vadd.f32 %v61, %v275
    %277 = vmatmul.f32.gmra.mxu0 %v84
    %v278 = vpop.f32.mrf.mxu0
    %v279 = vadd.f32 %v61, %v278
    %280 = vmatmul.f32.gmra.mxu0 %v87
    %v281 = vpop.f32.mrf.mxu0
    %v282 = vadd.f32 %v61, %v281
    %283 = vmatmul.f32.gmra.mxu0 %v90
    %v284 = vpop.f32.mrf.mxu0
    %v285 = vadd.f32 %v61, %v284
    %286 = vmatmul.f32.gmra.mxu0 %v93
    %v287 = vpop.f32.mrf.mxu0
    %v288 = vadd.f32 %v61, %v287
    %289 = vmatmul.f32.gmra.mxu0 %v96
    %v290 = vpop.f32.mrf.mxu0
    %v291 = vadd.f32 %v61, %v290
    %292 = vmatmul.f32.gmra.mxu0 %v99
    %v293 = vpop.f32.mrf.mxu0
    %v294 = vadd.f32 %v61, %v293
    %295 = vmatmul.f32.gmra.mxu0 %v102
    %v296 = vpop.f32.mrf.mxu0
    %v297 = vadd.f32 %v61, %v296
    %298 = vmatmul.f32.gmra.mxu0 %v105
    %v299 = vpop.f32.mrf.mxu0
    %v300 = vadd.f32 %v61, %v299
    %301 = vmatmul.f32.gmra.mxu0 %v108
    %v302 = vpop.f32.mrf.mxu0
    %v303 = vadd.f32 %v61, %v302
    %304 = vmatmul.f32.gmra.mxu0 %v111
    %v305 = vpop.f32.mrf.mxu0
    %v306 = vadd.f32 %v61, %v305
    %307 = vmatmul.f32.gmra.mxu0 %v114
    %v308 = vpop.f32.mrf.mxu0
    %v309 = vadd.f32 %v61, %v308
    %310 = vdwg.mxu0
    %311 = vmatpush.msra.mxu0 0.0
    %312 = vmatpush.msra.mxu0 0.0
    %313 = vmatpush.msra.mxu0 0.0
    %314 = vmatpush.msra.mxu0 0.0
    %315 = vmatpush.msra.mxu0 0.0
    %316 = vmatpush.msra.mxu0 0.0
    %317 = vmatpush.msra.mxu0 0.0
    %318 = vmatpush.msra.mxu0 0.0
    %319 = vmatpush.msra.mxu0 0.0
    %320 = vmatpush.msra.mxu0 0.0
    %321 = vmatpush.msra.mxu0 0.0
    %322 = vmatpush.msra.mxu0 0.0
    %323 = vmatpush.msra.mxu0 0.0
    %324 = vmatpush.msra.mxu0 0.0
    %325 = vmatpush.msra.mxu0 %v56
    %326 = vmatpush.msra.mxu0 %v52
    %327 = vmatmul.f32.gmra.mxu0 %v69
    %v328 = vpop.f32.mrf.mxu0
    %v329 = vadd.f32 %v62, %v328
    %330 = vmatmul.f32.gmra.mxu0 %v72
    %v331 = vpop.f32.mrf.mxu0
    %v332 = vadd.f32 %v62, %v331
    %333 = vmatmul.f32.gmra.mxu0 %v75
    %v334 = vpop.f32.mrf.mxu0
    %v335 = vadd.f32 %v62, %v334
    %336 = vmatmul.f32.gmra.mxu0 %v78
    %v337 = vpop.f32.mrf.mxu0
    %v338 = vadd.f32 %v62, %v337
    %339 = vmatmul.f32.gmra.mxu0 %v81
    %v340 = vpop.f32.mrf.mxu0
    %v341 = vadd.f32 %v62, %v340
    %342 = vmatmul.f32.gmra.mxu0 %v84
    %v343 = vpop.f32.mrf.mxu0
    %v344 = vadd.f32 %v62, %v343
    %345 = vmatmul.f32.gmra.mxu0 %v87
    %v346 = vpop.f32.mrf.mxu0
    %v347 = vadd.f32 %v62, %v346
    %348 = vmatmul.f32.gmra.mxu0 %v90
    %v349 = vpop.f32.mrf.mxu0
    %v350 = vadd.f32 %v62, %v349
    %351 = vmatmul.f32.gmra.mxu0 %v93
    %v352 = vpop.f32.mrf.mxu0
    %v353 = vadd.f32 %v62, %v352
    %354 = vmatmul.f32.gmra.mxu0 %v96
    %v355 = vpop.f32.mrf.mxu0
    %v356 = vadd.f32 %v62, %v355
    %357 = vmatmul.f32.gmra.mxu0 %v99
    %v358 = vpop.f32.mrf.mxu0
    %v359 = vadd.f32 %v62, %v358
    %360 = vmatmul.f32.gmra.mxu0 %v102
    %v361 = vpop.f32.mrf.mxu0
    %v362 = vadd.f32 %v62, %v361
    %363 = vmatmul.f32.gmra.mxu0 %v105
    %v364 = vpop.f32.mrf.mxu0
    %v365 = vadd.f32 %v62, %v364
    %366 = vmatmul.f32.gmra.mxu0 %v108
    %v367 = vpop.f32.mrf.mxu0
    %v368 = vadd.f32 %v62, %v367
    %369 = vmatmul.f32.gmra.mxu0 %v111
    %v370 = vpop.f32.mrf.mxu0
    %v371 = vadd.f32 %v62, %v370
    %372 = vmatmul.f32.gmra.mxu0 %v114
    %v373 = vpop.f32.mrf.mxu0
    %v374 = vadd.f32 %v62, %v373
    %375 = vdwg.mxu0
    %376 = vst [vmem:[#allocation2] sm:$0xff] %v134
    %377 = vst [vmem:[#allocation2 + $0x8] sm:$0xff] %v199
    %378 = vst [vmem:[#allocation2 + $0x10] sm:$0xff] %v264
    %379 = vst [vmem:[#allocation2 + $0x18] sm:$0xff] %v329
    %380 = vst [vmem:[#allocation2 + $0x20] sm:$0xff] %v137
    %381 = vst [vmem:[#allocation2 + $0x28] sm:$0xff] %v202
    %382 = vst [vmem:[#allocation2 + $0x30] sm:$0xff] %v267
    %383 = vst [vmem:[#allocation2 + $0x38] sm:$0xff] %v332
    %384 = vst [vmem:[#allocation2 + $0x40] sm:$0xff] %v140
    %385 = vst [vmem:[#allocation2 + $0x48] sm:$0xff] %v205
    %386 = vst [vmem:[#allocation2 + $0x50] sm:$0xff] %v270
    %387 = vst [vmem:[#allocation2 + $0x58] sm:$0xff] %v335
    %388 = vst [vmem:[#allocation2 + $0x60] sm:$0xff] %v143
    %389 = vst [vmem:[#allocation2 + $0x68] sm:$0xff] %v208
    %390 = vst [vmem:[#allocation2 + $0x70] sm:$0xff] %v273
    %391 = vst [vmem:[#allocation2 + $0x78] sm:$0xff] %v338
    %392 = vst [vmem:[#allocation2 + $0x80] sm:$0xff] %v146
    %393 = vst [vmem:[#allocation2 + $0x88] sm:$0xff] %v211
    %394 = vst [vmem:[#allocation2 + $0x90] sm:$0xff] %v276
    %395 = vst [vmem:[#allocation2 + $0x98] sm:$0xff] %v341
    %396 = vst [vmem:[#allocation2 + $0xa0] sm:$0xff] %v149
    %397 = vst [vmem:[#allocation2 + $0xa8] sm:$0xff] %v214
    %398 = vst [vmem:[#allocation2 + $0xb0] sm:$0xff] %v279
    %399 = vst [vmem:[#allocation2 + $0xb8] sm:$0xff] %v344
    %400 = vst [vmem:[#allocation2 + $0xc0] sm:$0xff] %v152
    %401 = vst [vmem:[#allocation2 + $0xc8] sm:$0xff] %v217
    %402 = vst [vmem:[#allocation2 + $0xd0] sm:$0xff] %v282
    %403 = vst [vmem:[#allocation2 + $0xd8] sm:$0xff] %v347
    %404 = vst [vmem:[#allocation2 + $0xe0] sm:$0xff] %v155
    %405 = vst [vmem:[#allocation2 + $0xe8] sm:$0xff] %v220
    %406 = vst [vmem:[#allocation2 + $0xf0] sm:$0xff] %v285
    %407 = vst [vmem:[#allocation2 + $0xf8] sm:$0xff] %v350
    %408 = vst [vmem:[#allocation2 + $0x100] sm:$0xff] %v158
    %409 = vst [vmem:[#allocation2 + $0x108] sm:$0xff] %v223
    %410 = vst [vmem:[#allocation2 + $0x110] sm:$0xff] %v288
    %411 = vst [vmem:[#allocation2 + $0x118] sm:$0xff] %v353
    %412 = vst [vmem:[#allocation2 + $0x120] sm:$0xff] %v161
    %413 = vst [vmem:[#allocation2 + $0x128] sm:$0xff] %v226
    %414 = vst [vmem:[#allocation2 + $0x130] sm:$0xff] %v291
    %415 = vst [vmem:[#allocation2 + $0x138] sm:$0xff] %v356
    %416 = vst [vmem:[#allocation2 + $0x140] sm:$0xff] %v164
    %417 = vst [vmem:[#allocation2 + $0x148] sm:$0xff] %v229
    %418 = vst [vmem:[#allocation2 + $0x150] sm:$0xff] %v294
    %419 = vst [vmem:[#allocation2 + $0x158] sm:$0xff] %v359
    %420 = vst [vmem:[#allocation2 + $0x160] sm:$0xff] %v167
    %421 = vst [vmem:[#allocation2 + $0x168] sm:$0xff] %v232
    %422 = vst [vmem:[#allocation2 + $0x170] sm:$0xff] %v297
    %423 = vst [vmem:[#allocation2 + $0x178] sm:$0xff] %v362
    %424 = vst [vmem:[#allocation2 + $0x180] sm:$0xff] %v170
    %425 = vst [vmem:[#allocation2 + $0x188] sm:$0xff] %v235
    %426 = vst [vmem:[#allocation2 + $0x190] sm:$0xff] %v300
    %427 = vst [vmem:[#allocation2 + $0x198] sm:$0xff] %v365
    %428 = vst [vmem:[#allocation2 + $0x1a0] sm:$0xff] %v173
    %429 = vst [vmem:[#allocation2 + $0x1a8] sm:$0xff] %v238
    %430 = vst [vmem:[#allocation2 + $0x1b0] sm:$0xff] %v303
    %431 = vst [vmem:[#allocation2 + $0x1b8] sm:$0xff] %v368
    %432 = vst [vmem:[#allocation2 + $0x1c0] sm:$0xff] %v176
    %433 = vst [vmem:[#allocation2 + $0x1c8] sm:$0xff] %v241
    %434 = vst [vmem:[#allocation2 + $0x1d0] sm:$0xff] %v306
    %435 = vst [vmem:[#allocation2 + $0x1d8] sm:$0xff] %v371
    %436 = vst [vmem:[#allocation2 + $0x1e0] sm:$0xff] %v179
    %437 = vst [vmem:[#allocation2 + $0x1e8] sm:$0xff] %v244
    %438 = vst [vmem:[#allocation2 + $0x1f0] sm:$0xff] %v309
    %439 = vst [vmem:[#allocation2 + $0x1f8] sm:$0xff] %v374
    %s440 = smul.u32 0, 4
    %s441 = smul.addr %s440, 8
    %s442 = scalar_lea.vmem [#allocation2], %s441
    %v443 = vld [vmem:[%s442] sm:$0xff]
    %v444 = vld [vmem:[%s442 + $0x8] sm:$0xff]
    %v445 = vld [vmem:[%s442 + $0x10] sm:$0xff]
    %v446 = vld [vmem:[%s442 + $0x18] sm:$0xff]
    %v447 = vld [vmem:[%s442 + $0x20] sm:$0xff]
    %v448 = vld [vmem:[%s442 + $0x28] sm:$0xff]
    %v449 = vld [vmem:[%s442 + $0x30] sm:$0xff]
    %v450 = vld [vmem:[%s442 + $0x38] sm:$0xff]
    %v451 = vld [vmem:[#allocation3] sm:$0xff]
    %v452 = vld [vmem:[#allocation3 + $0x8] sm:$0xff]
    %v453 = vld [vmem:[#allocation3 + $0x10] sm:$0xff]
    %v454 = vld [vmem:[#allocation3 + $0x18] sm:$0xff]
    %v455 = vld [vmem:[#allocation3 + $0x20] sm:$0xff]
    %v456 = vld [vmem:[#allocation3 + $0x28] sm:$0xff]
    %v457 = vld [vmem:[#allocation3 + $0x30] sm:$0xff]
    %v458 = vld [vmem:[#allocation3 + $0x38] sm:$0xff]
    %v459 = vld [vmem:[#allocation3 + $0x40] sm:$0xff]
    %v460 = vld [vmem:[#allocation3 + $0x48] sm:$0xff]
    %v461 = vld [vmem:[#allocation3 + $0x50] sm:$0xff]
    %v462 = vld [vmem:[#allocation3 + $0x58] sm:$0xff]
    %v463 = vld [vmem:[#allocation3 + $0x60] sm:$0xff]
    %v464 = vld [vmem:[#allocation3 + $0x68] sm:$0xff]
    %v465 = vld [vmem:[#allocation3 + $0x70] sm:$0xff]
    %v466 = vld [vmem:[#allocation3 + $0x78] sm:$0xff]
    %v467 = vld [vmem:[#allocation3 + $0x80] sm:$0xff]
    %v468 = vld [vmem:[#allocation3 + $0x88] sm:$0xff]
    %v469 = vld [vmem:[#allocation3 + $0x90] sm:$0xff]
    %v470 = vld [vmem:[#allocation3 + $0x98] sm:$0xff]
    %v471 = vld [vmem:[#allocation3 + $0xa0] sm:$0xff]
    %v472 = vld [vmem:[#allocation3 + $0xa8] sm:$0xff]
    %v473 = vld [vmem:[#allocation3 + $0xb0] sm:$0xff]
    %v474 = vld [vmem:[#allocation3 + $0xb8] sm:$0xff]
    %v475 = vld [vmem:[#allocation3 + $0xc0] sm:$0xff]
    %v476 = vld [vmem:[#allocation3 + $0xc8] sm:$0xff]
    %v477 = vld [vmem:[#allocation3 + $0xd0] sm:$0xff]
    %v478 = vld [vmem:[#allocation3 + $0xd8] sm:$0xff]
    %v479 = vld [vmem:[#allocation3 + $0xe0] sm:$0xff]
    %v480 = vld [vmem:[#allocation3 + $0xe8] sm:$0xff]
    %v481 = vld [vmem:[#allocation3 + $0xf0] sm:$0xff]
    %v482 = vld [vmem:[#allocation3 + $0xf8] sm:$0xff]
    %v483 = vld [vmem:[#allocation3 + $0x100] sm:$0xff]
    %v484 = vld [vmem:[#allocation3 + $0x108] sm:$0xff]
    %v485 = vld [vmem:[#allocation3 + $0x110] sm:$0xff]
    %v486 = vld [vmem:[#allocation3 + $0x118] sm:$0xff]
    %v487 = vld [vmem:[#allocation3 + $0x120] sm:$0xff]
    %v488 = vld [vmem:[#allocation3 + $0x128] sm:$0xff]
    %v489 = vld [vmem:[#allocation3 + $0x130] sm:$0xff]
    %v490 = vld [vmem:[#allocation3 + $0x138] sm:$0xff]
    %v491 = vld [vmem:[#allocation3 + $0x140] sm:$0xff]
    %v492 = vld [vmem:[#allocation3 + $0x148] sm:$0xff]
    %v493 = vld [vmem:[#allocation3 + $0x150] sm:$0xff]
    %v494 = vld [vmem:[#allocation3 + $0x158] sm:$0xff]
    %v495 = vld [vmem:[#allocation3 + $0x160] sm:$0xff]
    %v496 = vld [vmem:[#allocation3 + $0x168] sm:$0xff]
    %v497 = vld [vmem:[#allocation3 + $0x170] sm:$0xff]
    %v498 = vld [vmem:[#allocation3 + $0x178] sm:$0xff]
    %v499 = vld [vmem:[#allocation3 + $0x180] sm:$0xff]
    %v500 = vld [vmem:[#allocation3 + $0x188] sm:$0xff]
    %v501 = vld [vmem:[#allocation3 + $0x190] sm:$0xff]
    %v502 = vld [vmem:[#allocation3 + $0x198] sm:$0xff]
    %v503 = vld [vmem:[#allocation3 + $0x1a0] sm:$0xff]
    %v504 = vld [vmem:[#allocation3 + $0x1a8] sm:$0xff]
    %v505 = vld [vmem:[#allocation3 + $0x1b0] sm:$0xff]
    %v506 = vld [vmem:[#allocation3 + $0x1b8] sm:$0xff]
    %v507 = vld [vmem:[#allocation3 + $0x1c0] sm:$0xff]
    %v508 = vld [vmem:[#allocation3 + $0x1c8] sm:$0xff]
    %v509 = vld [vmem:[#allocation3 + $0x1d0] sm:$0xff]
    %v510 = vld [vmem:[#allocation3 + $0x1d8] sm:$0xff]
    %v511 = vld [vmem:[#allocation3 + $0x1e0] sm:$0xff]
    %v512 = vld [vmem:[#allocation3 + $0x1e8] sm:$0xff]
    %v513 = vld [vmem:[#allocation3 + $0x1f0] sm:$0xff]
    %v514 = vld [vmem:[#allocation3 + $0x1f8] sm:$0xff]
    %515 = vmatpush.msra.mxu0 %v511
    %516 = vmatpush.msra.mxu0 %v507
    %517 = vmatpush.msra.mxu0 %v503
    %518 = vmatpush.msra.mxu0 %v499
    %519 = vmatpush.msra.mxu0 %v495
    %520 = vmatpush.msra.mxu0 %v491
    %521 = vmatpush.msra.mxu0 %v487
    %522 = vmatpush.msra.mxu0 %v483
    %523 = vmatpush.msra.mxu0 %v479
    %524 = vmatpush.msra.mxu0 %v475
    %525 = vmatpush.msra.mxu0 %v471
    %526 = vmatpush.msra.mxu0 %v467
    %527 = vmatpush.msra.mxu0 %v463
    %528 = vmatpush.msra.mxu0 %v459
    %529 = vmatpush.msra.mxu0 %v455
    %530 = vmatpush.msra.mxu0 %v451
    %531 = vmatmul.f32.gmra.mxu0 0.0
    %v532 = vpop.f32.mrf.mxu0
    %v533 = vadd.f32 0.0, %v532
    %534 = vmatmul.f32.gmra.mxu0 0.0
    %v535 = vpop.f32.mrf.mxu0
    %v536 = vadd.f32 0.0, %v535
    %537 = vdwg.mxu0
    %538 = vmatpush.msra.mxu0 %v512
    %539 = vmatpush.msra.mxu0 %v508
    %540 = vmatpush.msra.mxu0 %v504
    %541 = vmatpush.msra.mxu0 %v500
    %542 = vmatpush.msra.mxu0 %v496
    %543 = vmatpush.msra.mxu0 %v492
    %544 = vmatpush.msra.mxu0 %v488
    %545 = vmatpush.msra.mxu0 %v484
    %546 = vmatpush.msra.mxu0 %v480
    %547 = vmatpush.msra.mxu0 %v476
    %548 = vmatpush.msra.mxu0 %v472
    %549 = vmatpush.msra.mxu0 %v468
    %550 = vmatpush.msra.mxu0 %v464
    %551 = vmatpush.msra.mxu0 %v460
    %552 = vmatpush.msra.mxu0 %v456
    %553 = vmatpush.msra.mxu0 %v452
    %554 = vmatmul.f32.gmra.mxu0 0.0
    %v555 = vpop.f32.mrf.mxu0
    %v556 = vadd.f32 0.0, %v555
    %557 = vmatmul.f32.gmra.mxu0 0.0
    %v558 = vpop.f32.mrf.mxu0
    %v559 = vadd.f32 0.0, %v558
    %560 = vdwg.mxu0
    %561 = vmatpush.msra.mxu0 %v513
    %562 = vmatpush.msra.mxu0 %v509
    %563 = vmatpush.msra.mxu0 %v505
    %564 = vmatpush.msra.mxu0 %v501
    %565 = vmatpush.msra.mxu0 %v497
    %566 = vmatpush.msra.mxu0 %v493
    %567 = vmatpush.msra.mxu0 %v489
    %568 = vmatpush.msra.mxu0 %v485
    %569 = vmatpush.msra.mxu0 %v481
    %570 = vmatpush.msra.mxu0 %v477
    %571 = vmatpush.msra.mxu0 %v473
    %572 = vmatpush.msra.mxu0 %v469
    %573 = vmatpush.msra.mxu0 %v465
    %574 = vmatpush.msra.mxu0 %v461
    %575 = vmatpush.msra.mxu0 %v457
    %576 = vmatpush.msra.mxu0 %v453
    %577 = vmatmul.f32.gmra.mxu0 0.0
    %v578 = vpop.f32.mrf.mxu0
    %v579 = vadd.f32 0.0, %v578
    %580 = vmatmul.f32.gmra.mxu0 0.0
    %v581 = vpop.f32.mrf.mxu0
    %v582 = vadd.f32 0.0, %v581
    %583 = vdwg.mxu0
    %584 = vmatpush.msra.mxu0 %v514
    %585 = vmatpush.msra.mxu0 %v510
    %586 = vmatpush.msra.mxu0 %v506
    %587 = vmatpush.msra.mxu0 %v502
    %588 = vmatpush.msra.mxu0 %v498
    %589 = vmatpush.msra.mxu0 %v494
    %590 = vmatpush.msra.mxu0 %v490
    %591 = vmatpush.msra.mxu0 %v486
    %592 = vmatpush.msra.mxu0 %v482
    %593 = vmatpush.msra.mxu0 %v478
    %594 = vmatpush.msra.mxu0 %v474
    %595 = vmatpush.msra.mxu0 %v470
    %596 = vmatpush.msra.mxu0 %v466
    %597 = vmatpush.msra.mxu0 %v462
    %598 = vmatpush.msra.mxu0 %v458
    %599 = vmatpush.msra.mxu0 %v454
    %600 = vmatmul.f32.gmra.mxu0 0.0
    %v601 = vpop.f32.mrf.mxu0
    %v602 = vadd.f32 0.0, %v601
    %603 = vmatmul.f32.gmra.mxu0 0.0
    %v604 = vpop.f32.mrf.mxu0
    %v605 = vadd.f32 0.0, %v604
    %606 = vdwg.mxu0
    %v607 = vadd.f32 %v443, %v533
    %v608 = vadd.f32 %v444, %v556
    %v609 = vadd.f32 %v445, %v579
    %v610 = vadd.f32 %v446, %v602
    %v611 = vadd.f32 %v447, %v536
    %v612 = vadd.f32 %v448, %v559
    %v613 = vadd.f32 %v449, %v582
    %v614 = vadd.f32 %v450, %v605
    %v615 = vxor.u32 %v607, 2147483648
    %v616 = vxor.u32 %v608, 2147483648
    %v617 = vxor.u32 %v609, 2147483648
    %v618 = vxor.u32 %v610, 2147483648
    %v619 = vxor.u32 %v611, 2147483648
    %v620 = vxor.u32 %v612, 2147483648
    %v621 = vxor.u32 %v613, 2147483648
    %v622 = vxor.u32 %v614, 2147483648
    %v623 = vmul.f32 %v615, 1.442695
    %v624 = vpow.pop %v623
    %v625 = vmul.f32 %v616, 1.442695
    %v626 = vpow.pop %v625
    %v627 = vmul.f32 %v617, 1.442695
    %v628 = vpow.pop %v627
    %v629 = vmul.f32 %v618, 1.442695
    %v630 = vpow.pop %v629
    %v631 = vmul.f32 %v619, 1.442695
    %v632 = vpow.pop %v631
    %v633 = vmul.f32 %v620, 1.442695
    %v634 = vpow.pop %v633
    %v635 = vmul.f32 %v621, 1.442695
    %v636 = vpow.pop %v635
    %v637 = vmul.f32 %v622, 1.442695
    %v638 = vpow.pop %v637
    %v639 = vadd.f32 %v624, 1.0
    %v640 = vadd.f32 %v626, 1.0
    %v641 = vadd.f32 %v628, 1.0
    %v642 = vadd.f32 %v630, 1.0
    %v643 = vadd.f32 %v632, 1.0
    %v644 = vadd.f32 %v634, 1.0
    %v645 = vadd.f32 %v636, 1.0
    %v646 = vadd.f32 %v638, 1.0
    %v647 = vrcp.pop %v639
    %v648 = vmul.f32 %v639, %v647
    %v649 = vsub.f32 1.0, %v648
    %v650 = vmul.f32 %v647, %v649
    %v651 = vadd.f32 %v647, %v650
    %vm652 = vweird.f32 %v639
    %vm653 = vweird.f32 %v647
    %vm654 = vmor %vm652, %vm653
    %v655 = vsel %vm654, %v647, %v651
    %v656 = vand.u32 2147483647, %v639
    %vm657 = vcmp.eq.f32.partialorder %v656, 8.507059e+37
    %v658 = vand.u32 %v639, 2147483648
    %v659 = vor.u32 1.1754944e-38, %v658
    %v660 = vsel %vm657, %v659, %v655
    %v661 = vmul.f32 1.0, %v660
    %v662 = vrcp.pop %v640
    %v663 = vmul.f32 %v640, %v662
    %v664 = vsub.f32 1.0, %v663
    %v665 = vmul.f32 %v662, %v664
    %v666 = vadd.f32 %v662, %v665
    %vm667 = vweird.f32 %v640
    %vm668 = vweird.f32 %v662
    %vm669 = vmor %vm667, %vm668
    %v670 = vsel %vm669, %v662, %v666
    %v671 = vand.u32 2147483647, %v640
    %vm672 = vcmp.eq.f32.partialorder %v671, 8.507059e+37
    %v673 = vand.u32 %v640, 2147483648
    %v674 = vor.u32 1.1754944e-38, %v673
    %v675 = vsel %vm672, %v674, %v670
    %v676 = vmul.f32 1.0, %v675
    %v677 = vrcp.pop %v641
    %v678 = vmul.f32 %v641, %v677
    %v679 = vsub.f32 1.0, %v678
    %v680 = vmul.f32 %v677, %v679
    %v681 = vadd.f32 %v677, %v680
    %vm682 = vweird.f32 %v641
    %vm683 = vweird.f32 %v677
    %vm684 = vmor %vm682, %vm683
    %v685 = vsel %vm684, %v677, %v681
    %v686 = vand.u32 2147483647, %v641
    %vm687 = vcmp.eq.f32.partialorder %v686, 8.507059e+37
    %v688 = vand.u32 %v641, 2147483648
    %v689 = vor.u32 1.1754944e-38, %v688
    %v690 = vsel %vm687, %v689, %v685
    %v691 = vmul.f32 1.0, %v690
    %v692 = vrcp.pop %v642
    %v693 = vmul.f32 %v642, %v692
    %v694 = vsub.f32 1.0, %v693
    %v695 = vmul.f32 %v692, %v694
    %v696 = vadd.f32 %v692, %v695
    %vm697 = vweird.f32 %v642
    %vm698 = vweird.f32 %v692
    %vm699 = vmor %vm697, %vm698
    %v700 = vsel %vm699, %v692, %v696
    %v701 = vand.u32 2147483647, %v642
    %vm702 = vcmp.eq.f32.partialorder %v701, 8.507059e+37
    %v703 = vand.u32 %v642, 2147483648
    %v704 = vor.u32 1.1754944e-38, %v703
    %v705 = vsel %vm702, %v704, %v700
    %v706 = vmul.f32 1.0, %v705
    %v707 = vrcp.pop %v643
    %v708 = vmul.f32 %v643, %v707
    %v709 = vsub.f32 1.0, %v708
    %v710 = vmul.f32 %v707, %v709
    %v711 = vadd.f32 %v707, %v710
    %vm712 = vweird.f32 %v643
    %vm713 = vweird.f32 %v707
    %vm714 = vmor %vm712, %vm713
    %v715 = vsel %vm714, %v707, %v711
    %v716 = vand.u32 2147483647, %v643
    %vm717 = vcmp.eq.f32.partialorder %v716, 8.507059e+37
    %v718 = vand.u32 %v643, 2147483648
    %v719 = vor.u32 1.1754944e-38, %v718
    %v720 = vsel %vm717, %v719, %v715
    %v721 = vmul.f32 1.0, %v720
    %v722 = vrcp.pop %v644
    %v723 = vmul.f32 %v644, %v722
    %v724 = vsub.f32 1.0, %v723
    %v725 = vmul.f32 %v722, %v724
    %v726 = vadd.f32 %v722, %v725
    %vm727 = vweird.f32 %v644
    %vm728 = vweird.f32 %v722
    %vm729 = vmor %vm727, %vm728
    %v730 = vsel %vm729, %v722, %v726
    %v731 = vand.u32 2147483647, %v644
    %vm732 = vcmp.eq.f32.partialorder %v731, 8.507059e+37
    %v733 = vand.u32 %v644, 2147483648
    %v734 = vor.u32 1.1754944e-38, %v733
    %v735 = vsel %vm732, %v734, %v730
    %v736 = vmul.f32 1.0, %v735
    %v737 = vrcp.pop %v645
    %v738 = vmul.f32 %v645, %v737
    %v739 = vsub.f32 1.0, %v738
    %v740 = vmul.f32 %v737, %v739
    %v741 = vadd.f32 %v737, %v740
    %vm742 = vweird.f32 %v645
    %vm743 = vweird.f32 %v737
    %vm744 = vmor %vm742, %vm743
    %v745 = vsel %vm744, %v737, %v741
    %v746 = vand.u32 2147483647, %v645
    %vm747 = vcmp.eq.f32.partialorder %v746, 8.507059e+37
    %v748 = vand.u32 %v645, 2147483648
    %v749 = vor.u32 1.1754944e-38, %v748
    %v750 = vsel %vm747, %v749, %v745
    %v751 = vmul.f32 1.0, %v750
    %v752 = vrcp.pop %v646
    %v753 = vmul.f32 %v646, %v752
    %v754 = vsub.f32 1.0, %v753
    %v755 = vmul.f32 %v752, %v754
    %v756 = vadd.f32 %v752, %v755
    %vm757 = vweird.f32 %v646
    %vm758 = vweird.f32 %v752
    %vm759 = vmor %vm757, %vm758
    %v760 = vsel %vm759, %v752, %v756
    %v761 = vand.u32 2147483647, %v646
    %vm762 = vcmp.eq.f32.partialorder %v761, 8.507059e+37
    %v763 = vand.u32 %v646, 2147483648
    %v764 = vor.u32 1.1754944e-38, %v763
    %v765 = vsel %vm762, %v764, %v760
    %v766 = vmul.f32 1.0, %v765
    %v767 = vmul.f32 %v691, 2.0
    %v768 = vmul.f32 %v751, 2.0
    %v769 = vsub.f32 %v767, 1.0
    %v770 = vsub.f32 %v768, 1.0
    %v771 = vmul.f32 %v676, 0.0
    %v772 = vmul.f32 %v736, 0.0
    %v773 = vmul.f32 %v661, %v769
    %v774 = vmul.f32 %v721, %v770
    %v775 = vadd.f32 %v771, %v773
    %v776 = vadd.f32 %v772, %v774
    %v777 = vtanh.pop %v775
    %v778 = vtanh.pop %v776
    %v779 = vmul.f32 %v706, %v777
    %v780 = vmul.f32 %v766, %v778
    %s781 = smul.u32 2, 4
    %s782 = smul.addr %s781, 8
    %s783 = scalar_lea.vmem [#allocation2], %s782
    %v784 = vld [vmem:[%s783] sm:$0xff]
    %v785 = vld [vmem:[%s783 + $0x8] sm:$0xff]
    %v786 = vld [vmem:[%s783 + $0x10] sm:$0xff]
    %v787 = vld [vmem:[%s783 + $0x18] sm:$0xff]
    %v788 = vld [vmem:[%s783 + $0x20] sm:$0xff]
    %v789 = vld [vmem:[%s783 + $0x28] sm:$0xff]
    %v790 = vld [vmem:[%s783 + $0x30] sm:$0xff]
    %v791 = vld [vmem:[%s783 + $0x38] sm:$0xff]
    %792 = vmatpush.msra.mxu0 %v511
    %793 = vmatpush.msra.mxu0 %v507
    %794 = vmatpush.msra.mxu0 %v503
    %795 = vmatpush.msra.mxu0 %v499
    %796 = vmatpush.msra.mxu0 %v495
    %797 = vmatpush.msra.mxu0 %v491
    %798 = vmatpush.msra.mxu0 %v487
    %799 = vmatpush.msra.mxu0 %v483
    %800 = vmatpush.msra.mxu0 %v479
    %801 = vmatpush.msra.mxu0 %v475
    %802 = vmatpush.msra.mxu0 %v471
    %803 = vmatpush.msra.mxu0 %v467
    %804 = vmatpush.msra.mxu0 %v463
    %805 = vmatpush.msra.mxu0 %v459
    %806 = vmatpush.msra.mxu0 %v455
    %807 = vmatpush.msra.mxu0 %v451
    %808 = vmatmul.f32.gmra.mxu0 %v779
    %v809 = vpop.f32.mrf.mxu0
    %v810 = vadd.f32 0.0, %v809
    %811 = vmatmul.f32.gmra.mxu0 %v780
    %v812 = vpop.f32.mrf.mxu0
    %v813 = vadd.f32 0.0, %v812
    %814 = vdwg.mxu0
    %815 = vmatpush.msra.mxu0 %v512
    %816 = vmatpush.msra.mxu0 %v508
    %817 = vmatpush.msra.mxu0 %v504
    %818 = vmatpush.msra.mxu0 %v500
    %819 = vmatpush.msra.mxu0 %v496
    %820 = vmatpush.msra.mxu0 %v492
    %821 = vmatpush.msra.mxu0 %v488
    %822 = vmatpush.msra.mxu0 %v484
    %823 = vmatpush.msra.mxu0 %v480
    %824 = vmatpush.msra.mxu0 %v476
    %825 = vmatpush.msra.mxu0 %v472
    %826 = vmatpush.msra.mxu0 %v468
    %827 = vmatpush.msra.mxu0 %v464
    %828 = vmatpush.msra.mxu0 %v460
    %829 = vmatpush.msra.mxu0 %v456
    %830 = vmatpush.msra.mxu0 %v452
    %831 = vmatmul.f32.gmra.mxu0 %v779
    %v832 = vpop.f32.mrf.mxu0
    %v833 = vadd.f32 0.0, %v832
    %834 = vmatmul.f32.gmra.mxu0 %v780
    %v835 = vpop.f32.mrf.mxu0
    %v836 = vadd.f32 0.0, %v835
    %837 = vdwg.mxu0
    %838 = vmatpush.msra.mxu0 %v513
    %839 = vmatpush.msra.mxu0 %v509
    %840 = vmatpush.msra.mxu0 %v505
    %841 = vmatpush.msra.mxu0 %v501
    %842 = vmatpush.msra.mxu0 %v497
    %843 = vmatpush.msra.mxu0 %v493
    %844 = vmatpush.msra.mxu0 %v489
    %845 = vmatpush.msra.mxu0 %v485
    %846 = vmatpush.msra.mxu0 %v481
    %847 = vmatpush.msra.mxu0 %v477
    %848 = vmatpush.msra.mxu0 %v473
    %849 = vmatpush.msra.mxu0 %v469
    %850 = vmatpush.msra.mxu0 %v465
    %851 = vmatpush.msra.mxu0 %v461
    %852 = vmatpush.msra.mxu0 %v457
    %853 = vmatpush.msra.mxu0 %v453
    %854 = vmatmul.f32.gmra.mxu0 %v779
    %v855 = vpop.f32.mrf.mxu0
    %v856 = vadd.f32 0.0, %v855
    %857 = vmatmul.f32.gmra.mxu0 %v780
    %v858 = vpop.f32.mrf.mxu0
    %v859 = vadd.f32 0.0, %v858
    %860 = vdwg.mxu0
    %861 = vmatpush.msra.mxu0 %v514
    %862 = vmatpush.msra.mxu0 %v510
    %863 = vmatpush.msra.mxu0 %v506
    %864 = vmatpush.msra.mxu0 %v502
    %865 = vmatpush.msra.mxu0 %v498
    %866 = vmatpush.msra.mxu0 %v494
    %867 = vmatpush.msra.mxu0 %v490
    %868 = vmatpush.msra.mxu0 %v486
    %869 = vmatpush.msra.mxu0 %v482
    %870 = vmatpush.msra.mxu0 %v478
    %871 = vmatpush.msra.mxu0 %v474
    %872 = vmatpush.msra.mxu0 %v470
    %873 = vmatpush.msra.mxu0 %v466
    %874 = vmatpush.msra.mxu0 %v462
    %875 = vmatpush.msra.mxu0 %v458
    %876 = vmatpush.msra.mxu0 %v454
    %877 = vmatmul.f32.gmra.mxu0 %v779
    %v878 = vpop.f32.mrf.mxu0
    %v879 = vadd.f32 0.0, %v878
    %880 = vmatmul.f32.gmra.mxu0 %v780
    %v881 = vpop.f32.mrf.mxu0
    %v882 = vadd.f32 0.0, %v881
    %883 = vdwg.mxu0
    %v884 = vadd.f32 %v784, %v810
    %v885 = vadd.f32 %v785, %v833
    %v886 = vadd.f32 %v786, %v856
    %v887 = vadd.f32 %v787, %v879
    %v888 = vadd.f32 %v788, %v813
    %v889 = vadd.f32 %v789, %v836
    %v890 = vadd.f32 %v790, %v859
    %v891 = vadd.f32 %v791, %v882
    %v892 = vxor.u32 %v884, 2147483648
    %v893 = vxor.u32 %v885, 2147483648
    %v894 = vxor.u32 %v886, 2147483648
    %v895 = vxor.u32 %v887, 2147483648
    %v896 = vxor.u32 %v888, 2147483648
    %v897 = vxor.u32 %v889, 2147483648
    %v898 = vxor.u32 %v890, 2147483648
    %v899 = vxor.u32 %v891, 2147483648
    %v900 = vmul.f32 %v892, 1.442695
    %v901 = vpow.pop %v900
    %v902 = vmul.f32 %v893, 1.442695
    %v903 = vpow.pop %v902
    %v904 = vmul.f32 %v894, 1.442695
    %v905 = vpow.pop %v904
    %v906 = vmul.f32 %v895, 1.442695
    %v907 = vpow.pop %v906
    %v908 = vmul.f32 %v896, 1.442695
    %v909 = vpow.pop %v908
    %v910 = vmul.f32 %v897, 1.442695
    %v911 = vpow.pop %v910
    %v912 = vmul.f32 %v898, 1.442695
    %v913 = vpow.pop %v912
    %v914 = vmul.f32 %v899, 1.442695
    %v915 = vpow.pop %v914
    %v916 = vadd.f32 %v901, 1.0
    %v917 = vadd.f32 %v903, 1.0
    %v918 = vadd.f32 %v905, 1.0
    %v919 = vadd.f32 %v907, 1.0
    %v920 = vadd.f32 %v909, 1.0
    %v921 = vadd.f32 %v911, 1.0
    %v922 = vadd.f32 %v913, 1.0
    %v923 = vadd.f32 %v915, 1.0
    %v924 = vrcp.pop %v916
    %v925 = vmul.f32 %v916, %v924
    %v926 = vsub.f32 1.0, %v925
    %v927 = vmul.f32 %v924, %v926
    %v928 = vadd.f32 %v924, %v927
    %vm929 = vweird.f32 %v916
    %vm930 = vweird.f32 %v924
    %vm931 = vmor %vm929, %vm930
    %v932 = vsel %vm931, %v924, %v928
    %v933 = vand.u32 2147483647, %v916
    %vm934 = vcmp.eq.f32.partialorder %v933, 8.507059e+37
    %v935 = vand.u32 %v916, 2147483648
    %v936 = vor.u32 1.1754944e-38, %v935
    %v937 = vsel %vm934, %v936, %v932
    %v938 = vmul.f32 1.0, %v937
    %v939 = vrcp.pop %v917
    %v940 = vmul.f32 %v917, %v939
    %v941 = vsub.f32 1.0, %v940
    %v942 = vmul.f32 %v939, %v941
    %v943 = vadd.f32 %v939, %v942
    %vm944 = vweird.f32 %v917
    %vm945 = vweird.f32 %v939
    %vm946 = vmor %vm944, %vm945
    %v947 = vsel %vm946, %v939, %v943
    %v948 = vand.u32 2147483647, %v917
    %vm949 = vcmp.eq.f32.partialorder %v948, 8.507059e+37
    %v950 = vand.u32 %v917, 2147483648
    %v951 = vor.u32 1.1754944e-38, %v950
    %v952 = vsel %vm949, %v951, %v947
    %v953 = vmul.f32 1.0, %v952
    %v954 = vrcp.pop %v918
    %v955 = vmul.f32 %v918, %v954
    %v956 = vsub.f32 1.0, %v955
    %v957 = vmul.f32 %v954, %v956
    %v958 = vadd.f32 %v954, %v957
    %vm959 = vweird.f32 %v918
    %vm960 = vweird.f32 %v954
    %vm961 = vmor %vm959, %vm960
    %v962 = vsel %vm961, %v954, %v958
    %v963 = vand.u32 2147483647, %v918
    %vm964 = vcmp.eq.f32.partialorder %v963, 8.507059e+37
    %v965 = vand.u32 %v918, 2147483648
    %v966 = vor.u32 1.1754944e-38, %v965
    %v967 = vsel %vm964, %v966, %v962
    %v968 = vmul.f32 1.0, %v967
    %v969 = vrcp.pop %v919
    %v970 = vmul.f32 %v919, %v969
    %v971 = vsub.f32 1.0, %v970
    %v972 = vmul.f32 %v969, %v971
    %v973 = vadd.f32 %v969, %v972
    %vm974 = vweird.f32 %v919
    %vm975 = vweird.f32 %v969
    %vm976 = vmor %vm974, %vm975
    %v977 = vsel %vm976, %v969, %v973
    %v978 = vand.u32 2147483647, %v919
    %vm979 = vcmp.eq.f32.partialorder %v978, 8.507059e+37
    %v980 = vand.u32 %v919, 2147483648
    %v981 = vor.u32 1.1754944e-38, %v980
    %v982 = vsel %vm979, %v981, %v977
    %v983 = vmul.f32 1.0, %v982
    %v984 = vrcp.pop %v920
    %v985 = vmul.f32 %v920, %v984
    %v986 = vsub.f32 1.0, %v985
    %v987 = vmul.f32 %v984, %v986
    %v988 = vadd.f32 %v984, %v987
    %vm989 = vweird.f32 %v920
    %vm990 = vweird.f32 %v984
    %vm991 = vmor %vm989, %vm990
    %v992 = vsel %vm991, %v984, %v988
    %v993 = vand.u32 2147483647, %v920
    %vm994 = vcmp.eq.f32.partialorder %v993, 8.507059e+37
    %v995 = vand.u32 %v920, 2147483648
    %v996 = vor.u32 1.1754944e-38, %v995
    %v997 = vsel %vm994, %v996, %v992
    %v998 = vmul.f32 1.0, %v997
    %v999 = vrcp.pop %v921
    %v1000 = vmul.f32 %v921, %v999
    %v1001 = vsub.f32 1.0, %v1000
    %v1002 = vmul.f32 %v999, %v1001
    %v1003 = vadd.f32 %v999, %v1002
    %vm1004 = vweird.f32 %v921
    %vm1005 = vweird.f32 %v999
    %vm1006 = vmor %vm1004, %vm1005
    %v1007 = vsel %vm1006, %v999, %v1003
    %v1008 = vand.u32 2147483647, %v921
    %vm1009 = vcmp.eq.f32.partialorder %v1008, 8.507059e+37
    %v1010 = vand.u32 %v921, 2147483648
    %v1011 = vor.u32 1.1754944e-38, %v1010
    %v1012 = vsel %vm1009, %v1011, %v1007
    %v1013 = vmul.f32 1.0, %v1012
    %v1014 = vrcp.pop %v922
    %v1015 = vmul.f32 %v922, %v1014
    %v1016 = vsub.f32 1.0, %v1015
    %v1017 = vmul.f32 %v1014, %v1016
    %v1018 = vadd.f32 %v1014, %v1017
    %vm1019 = vweird.f32 %v922
    %vm1020 = vweird.f32 %v1014
    %vm1021 = vmor %vm1019, %vm1020
    %v1022 = vsel %vm1021, %v1014, %v1018
    %v1023 = vand.u32 2147483647, %v922
    %vm1024 = vcmp.eq.f32.partialorder %v1023, 8.507059e+37
    %v1025 = vand.u32 %v922, 2147483648
    %v1026 = vor.u32 1.1754944e-38, %v1025
    %v1027 = vsel %vm1024, %v1026, %v1022
    %v1028 = vmul.f32 1.0, %v1027
    %v1029 = vrcp.pop %v923
    %v1030 = vmul.f32 %v923, %v1029
    %v1031 = vsub.f32 1.0, %v1030
    %v1032 = vmul.f32 %v1029, %v1031
    %v1033 = vadd.f32 %v1029, %v1032
    %vm1034 = vweird.f32 %v923
    %vm1035 = vweird.f32 %v1029
    %vm1036 = vmor %vm1034, %vm1035
    %v1037 = vsel %vm1036, %v1029, %v1033
    %v1038 = vand.u32 2147483647, %v923
    %vm1039 = vcmp.eq.f32.partialorder %v1038, 8.507059e+37
    %v1040 = vand.u32 %v923, 2147483648
    %v1041 = vor.u32 1.1754944e-38, %v1040
    %v1042 = vsel %vm1039, %v1041, %v1037
    %v1043 = vmul.f32 1.0, %v1042
    %v1044 = vmul.f32 %v968, 2.0
    %v1045 = vmul.f32 %v1028, 2.0
    %v1046 = vsub.f32 %v1044, 1.0
    %v1047 = vsub.f32 %v1045, 1.0
    %v1048 = vmul.f32 %v953, %v775
    %v1049 = vmul.f32 %v1013, %v776
    %v1050 = vmul.f32 %v938, %v1046
    %v1051 = vmul.f32 %v998, %v1047
    %v1052 = vadd.f32 %v1048, %v1050
    %v1053 = vadd.f32 %v1049, %v1051
    %v1054 = vtanh.pop %v1052
    %v1055 = vtanh.pop %v1053
    %v1056 = vmul.f32 %v983, %v1054
    %v1057 = vmul.f32 %v1043, %v1055
    %s1058 = smul.u32 4, 4
    %s1059 = smul.addr %s1058, 8
    %s1060 = scalar_lea.vmem [#allocation2], %s1059
    %v1061 = vld [vmem:[%s1060] sm:$0xff]
    %v1062 = vld [vmem:[%s1060 + $0x8] sm:$0xff]
    %v1063 = vld [vmem:[%s1060 + $0x10] sm:$0xff]
    %v1064 = vld [vmem:[%s1060 + $0x18] sm:$0xff]
    %v1065 = vld [vmem:[%s1060 + $0x20] sm:$0xff]
    %v1066 = vld [vmem:[%s1060 + $0x28] sm:$0xff]
    %v1067 = vld [vmem:[%s1060 + $0x30] sm:$0xff]
    %v1068 = vld [vmem:[%s1060 + $0x38] sm:$0xff]
    %1069 = vmatpush.msra.mxu0 %v511
    %1070 = vmatpush.msra.mxu0 %v507
    %1071 = vmatpush.msra.mxu0 %v503
    %1072 = vmatpush.msra.mxu0 %v499
    %1073 = vmatpush.msra.mxu0 %v495
    %1074 = vmatpush.msra.mxu0 %v491
    %1075 = vmatpush.msra.mxu0 %v487
    %1076 = vmatpush.msra.mxu0 %v483
    %1077 = vmatpush.msra.mxu0 %v479
    %1078 = vmatpush.msra.mxu0 %v475
    %1079 = vmatpush.msra.mxu0 %v471
    %1080 = vmatpush.msra.mxu0 %v467
    %1081 = vmatpush.msra.mxu0 %v463
    %1082 = vmatpush.msra.mxu0 %v459
    %1083 = vmatpush.msra.mxu0 %v455
    %1084 = vmatpush.msra.mxu0 %v451
    %1085 = vmatmul.f32.gmra.mxu0 %v1056
    %v1086 = vpop.f32.mrf.mxu0
    %v1087 = vadd.f32 0.0, %v1086
    %1088 = vmatmul.f32.gmra.mxu0 %v1057
    %v1089 = vpop.f32.mrf.mxu0
    %v1090 = vadd.f32 0.0, %v1089
    %1091 = vdwg.mxu0
    %1092 = vmatpush.msra.mxu0 %v512
    %1093 = vmatpush.msra.mxu0 %v508
    %1094 = vmatpush.msra.mxu0 %v504
    %1095 = vmatpush.msra.mxu0 %v500
    %1096 = vmatpush.msra.mxu0 %v496
    %1097 = vmatpush.msra.mxu0 %v492
    %1098 = vmatpush.msra.mxu0 %v488
    %1099 = vmatpush.msra.mxu0 %v484
    %1100 = vmatpush.msra.mxu0 %v480
    %1101 = vmatpush.msra.mxu0 %v476
    %1102 = vmatpush.msra.mxu0 %v472
    %1103 = vmatpush.msra.mxu0 %v468
    %1104 = vmatpush.msra.mxu0 %v464
    %1105 = vmatpush.msra.mxu0 %v460
    %1106 = vmatpush.msra.mxu0 %v456
    %1107 = vmatpush.msra.mxu0 %v452
    %1108 = vmatmul.f32.gmra.mxu0 %v1056
    %v1109 = vpop.f32.mrf.mxu0
    %v1110 = vadd.f32 0.0, %v1109
    %1111 = vmatmul.f32.gmra.mxu0 %v1057
    %v1112 = vpop.f32.mrf.mxu0
    %v1113 = vadd.f32 0.0, %v1112
    %1114 = vdwg.mxu0
    %1115 = vmatpush.msra.mxu0 %v513
    %1116 = vmatpush.msra.mxu0 %v509
    %1117 = vmatpush.msra.mxu0 %v505
    %1118 = vmatpush.msra.mxu0 %v501
    %1119 = vmatpush.msra.mxu0 %v497
    %1120 = vmatpush.msra.mxu0 %v493
    %1121 = vmatpush.msra.mxu0 %v489
    %1122 = vmatpush.msra.mxu0 %v485
    %1123 = vmatpush.msra.mxu0 %v481
    %1124 = vmatpush.msra.mxu0 %v477
    %1125 = vmatpush.msra.mxu0 %v473
    %1126 = vmatpush.msra.mxu0 %v469
    %1127 = vmatpush.msra.mxu0 %v465
    %1128 = vmatpush.msra.mxu0 %v461
    %1129 = vmatpush.msra.mxu0 %v457
    %1130 = vmatpush.msra.mxu0 %v453
    %1131 = vmatmul.f32.gmra.mxu0 %v1056
    %v1132 = vpop.f32.mrf.mxu0
    %v1133 = vadd.f32 0.0, %v1132
    %1134 = vmatmul.f32.gmra.mxu0 %v1057
    %v1135 = vpop.f32.mrf.mxu0
    %v1136 = vadd.f32 0.0, %v1135
    %1137 = vdwg.mxu0
    %1138 = vmatpush.msra.mxu0 %v514
    %1139 = vmatpush.msra.mxu0 %v510
    %1140 = vmatpush.msra.mxu0 %v506
    %1141 = vmatpush.msra.mxu0 %v502
    %1142 = vmatpush.msra.mxu0 %v498
    %1143 = vmatpush.msra.mxu0 %v494
    %1144 = vmatpush.msra.mxu0 %v490
    %1145 = vmatpush.msra.mxu0 %v486
    %1146 = vmatpush.msra.mxu0 %v482
    %1147 = vmatpush.msra.mxu0 %v478
    %1148 = vmatpush.msra.mxu0 %v474
    %1149 = vmatpush.msra.mxu0 %v470
    %1150 = vmatpush.msra.mxu0 %v466
    %1151 = vmatpush.msra.mxu0 %v462
    %1152 = vmatpush.msra.mxu0 %v458
    %1153 = vmatpush.msra.mxu0 %v454
    %1154 = vmatmul.f32.gmra.mxu0 %v1056
    %v1155 = vpop.f32.mrf.mxu0
    %v1156 = vadd.f32 0.0, %v1155
    %1157 = vmatmul.f32.gmra.mxu0 %v1057
    %v1158 = vpop.f32.mrf.mxu0
    %v1159 = vadd.f32 0.0, %v1158
    %1160 = vdwg.mxu0
    %v1161 = vadd.f32 %v1061, %v1087
    %v1162 = vadd.f32 %v1062, %v1110
    %v1163 = vadd.f32 %v1063, %v1133
    %v1164 = vadd.f32 %v1064, %v1156
    %v1165 = vadd.f32 %v1065, %v1090
    %v1166 = vadd.f32 %v1066, %v1113
    %v1167 = vadd.f32 %v1067, %v1136
    %v1168 = vadd.f32 %v1068, %v1159
    %v1169 = vxor.u32 %v1161, 2147483648
    %v1170 = vxor.u32 %v1162, 2147483648
    %v1171 = vxor.u32 %v1163, 2147483648
    %v1172 = vxor.u32 %v1164, 2147483648
    %v1173 = vxor.u32 %v1165, 2147483648
    %v1174 = vxor.u32 %v1166, 2147483648
    %v1175 = vxor.u32 %v1167, 2147483648
    %v1176 = vxor.u32 %v1168, 2147483648
    %v1177 = vmul.f32 %v1169, 1.442695
    %v1178 = vpow.pop %v1177
    %v1179 = vmul.f32 %v1170, 1.442695
    %v1180 = vpow.pop %v1179
    %v1181 = vmul.f32 %v1171, 1.442695
    %v1182 = vpow.pop %v1181
    %v1183 = vmul.f32 %v1172, 1.442695
    %v1184 = vpow.pop %v1183
    %v1185 = vmul.f32 %v1173, 1.442695
    %v1186 = vpow.pop %v1185
    %v1187 = vmul.f32 %v1174, 1.442695
    %v1188 = vpow.pop %v1187
    %v1189 = vmul.f32 %v1175, 1.442695
    %v1190 = vpow.pop %v1189
    %v1191 = vmul.f32 %v1176, 1.442695
    %v1192 = vpow.pop %v1191
    %v1193 = vadd.f32 %v1178, 1.0
    %v1194 = vadd.f32 %v1180, 1.0
    %v1195 = vadd.f32 %v1182, 1.0
    %v1196 = vadd.f32 %v1184, 1.0
    %v1197 = vadd.f32 %v1186, 1.0
    %v1198 = vadd.f32 %v1188, 1.0
    %v1199 = vadd.f32 %v1190, 1.0
    %v1200 = vadd.f32 %v1192, 1.0
    %v1201 = vrcp.pop %v1193
    %v1202 = vmul.f32 %v1193, %v1201
    %v1203 = vsub.f32 1.0, %v1202
    %v1204 = vmul.f32 %v1201, %v1203
    %v1205 = vadd.f32 %v1201, %v1204
    %vm1206 = vweird.f32 %v1193
    %vm1207 = vweird.f32 %v1201
    %vm1208 = vmor %vm1206, %vm1207
    %v1209 = vsel %vm1208, %v1201, %v1205
    %v1210 = vand.u32 2147483647, %v1193
    %vm1211 = vcmp.eq.f32.partialorder %v1210, 8.507059e+37
    %v1212 = vand.u32 %v1193, 2147483648
    %v1213 = vor.u32 1.1754944e-38, %v1212
    %v1214 = vsel %vm1211, %v1213, %v1209
    %v1215 = vmul.f32 1.0, %v1214
    %v1216 = vrcp.pop %v1194
    %v1217 = vmul.f32 %v1194, %v1216
    %v1218 = vsub.f32 1.0, %v1217
    %v1219 = vmul.f32 %v1216, %v1218
    %v1220 = vadd.f32 %v1216, %v1219
    %vm1221 = vweird.f32 %v1194
    %vm1222 = vweird.f32 %v1216
    %vm1223 = vmor %vm1221, %vm1222
    %v1224 = vsel %vm1223, %v1216, %v1220
    %v1225 = vand.u32 2147483647, %v1194
    %vm1226 = vcmp.eq.f32.partialorder %v1225, 8.507059e+37
    %v1227 = vand.u32 %v1194, 2147483648
    %v1228 = vor.u32 1.1754944e-38, %v1227
    %v1229 = vsel %vm1226, %v1228, %v1224
    %v1230 = vmul.f32 1.0, %v1229
    %v1231 = vrcp.pop %v1195
    %v1232 = vmul.f32 %v1195, %v1231
    %v1233 = vsub.f32 1.0, %v1232
    %v1234 = vmul.f32 %v1231, %v1233
    %v1235 = vadd.f32 %v1231, %v1234
    %vm1236 = vweird.f32 %v1195
    %vm1237 = vweird.f32 %v1231
    %vm1238 = vmor %vm1236, %vm1237
    %v1239 = vsel %vm1238, %v1231, %v1235
    %v1240 = vand.u32 2147483647, %v1195
    %vm1241 = vcmp.eq.f32.partialorder %v1240, 8.507059e+37
    %v1242 = vand.u32 %v1195, 2147483648
    %v1243 = vor.u32 1.1754944e-38, %v1242
    %v1244 = vsel %vm1241, %v1243, %v1239
    %v1245 = vmul.f32 1.0, %v1244
    %v1246 = vrcp.pop %v1196
    %v1247 = vmul.f32 %v1196, %v1246
    %v1248 = vsub.f32 1.0, %v1247
    %v1249 = vmul.f32 %v1246, %v1248
    %v1250 = vadd.f32 %v1246, %v1249
    %vm1251 = vweird.f32 %v1196
    %vm1252 = vweird.f32 %v1246
    %vm1253 = vmor %vm1251, %vm1252
    %v1254 = vsel %vm1253, %v1246, %v1250
    %v1255 = vand.u32 2147483647, %v1196
    %vm1256 = vcmp.eq.f32.partialorder %v1255, 8.507059e+37
    %v1257 = vand.u32 %v1196, 2147483648
    %v1258 = vor.u32 1.1754944e-38, %v1257
    %v1259 = vsel %vm1256, %v1258, %v1254
    %v1260 = vmul.f32 1.0, %v1259
    %v1261 = vrcp.pop %v1197
    %v1262 = vmul.f32 %v1197, %v1261
    %v1263 = vsub.f32 1.0, %v1262
    %v1264 = vmul.f32 %v1261, %v1263
    %v1265 = vadd.f32 %v1261, %v1264
    %vm1266 = vweird.f32 %v1197
    %vm1267 = vweird.f32 %v1261
    %vm1268 = vmor %vm1266, %vm1267
    %v1269 = vsel %vm1268, %v1261, %v1265
    %v1270 = vand.u32 2147483647, %v1197
    %vm1271 = vcmp.eq.f32.partialorder %v1270, 8.507059e+37
    %v1272 = vand.u32 %v1197, 2147483648
    %v1273 = vor.u32 1.1754944e-38, %v1272
    %v1274 = vsel %vm1271, %v1273, %v1269
    %v1275 = vmul.f32 1.0, %v1274
    %v1276 = vrcp.pop %v1198
    %v1277 = vmul.f32 %v1198, %v1276
    %v1278 = vsub.f32 1.0, %v1277
    %v1279 = vmul.f32 %v1276, %v1278
    %v1280 = vadd.f32 %v1276, %v1279
    %vm1281 = vweird.f32 %v1198
    %vm1282 = vweird.f32 %v1276
    %vm1283 = vmor %vm1281, %vm1282
    %v1284 = vsel %vm1283, %v1276, %v1280
    %v1285 = vand.u32 2147483647, %v1198
    %vm1286 = vcmp.eq.f32.partialorder %v1285, 8.507059e+37
    %v1287 = vand.u32 %v1198, 2147483648
    %v1288 = vor.u32 1.1754944e-38, %v1287
    %v1289 = vsel %vm1286, %v1288, %v1284
    %v1290 = vmul.f32 1.0, %v1289
    %v1291 = vrcp.pop %v1199
    %v1292 = vmul.f32 %v1199, %v1291
    %v1293 = vsub.f32 1.0, %v1292
    %v1294 = vmul.f32 %v1291, %v1293
    %v1295 = vadd.f32 %v1291, %v1294
    %vm1296 = vweird.f32 %v1199
    %vm1297 = vweird.f32 %v1291
    %vm1298 = vmor %vm1296, %vm1297
    %v1299 = vsel %vm1298, %v1291, %v1295
    %v1300 = vand.u32 2147483647, %v1199
    %vm1301 = vcmp.eq.f32.partialorder %v1300, 8.507059e+37
    %v1302 = vand.u32 %v1199, 2147483648
    %v1303 = vor.u32 1.1754944e-38, %v1302
    %v1304 = vsel %vm1301, %v1303, %v1299
    %v1305 = vmul.f32 1.0, %v1304
    %v1306 = vrcp.pop %v1200
    %v1307 = vmul.f32 %v1200, %v1306
    %v1308 = vsub.f32 1.0, %v1307
    %v1309 = vmul.f32 %v1306, %v1308
    %v1310 = vadd.f32 %v1306, %v1309
    %vm1311 = vweird.f32 %v1200
    %vm1312 = vweird.f32 %v1306
    %vm1313 = vmor %vm1311, %vm1312
    %v1314 = vsel %vm1313, %v1306, %v1310
    %v1315 = vand.u32 2147483647, %v1200
    %vm1316 = vcmp.eq.f32.partialorder %v1315, 8.507059e+37
    %v1317 = vand.u32 %v1200, 2147483648
    %v1318 = vor.u32 1.1754944e-38, %v1317
    %v1319 = vsel %vm1316, %v1318, %v1314
    %v1320 = vmul.f32 1.0, %v1319
    %v1321 = vmul.f32 %v1245, 2.0
    %v1322 = vmul.f32 %v1305, 2.0
    %v1323 = vsub.f32 %v1321, 1.0
    %v1324 = vsub.f32 %v1322, 1.0
    %v1325 = vmul.f32 %v1230, %v1052
    %v1326 = vmul.f32 %v1290, %v1053
    %v1327 = vmul.f32 %v1215, %v1323
    %v1328 = vmul.f32 %v1275, %v1324
    %v1329 = vadd.f32 %v1325, %v1327
    %v1330 = vadd.f32 %v1326, %v1328
    %v1331 = vtanh.pop %v1329
    %v1332 = vtanh.pop %v1330
    %v1333 = vmul.f32 %v1260, %v1331
    %v1334 = vmul.f32 %v1320, %v1332
    %s1335 = smul.u32 6, 4
    %s1336 = smul.addr %s1335, 8
    %s1337 = scalar_lea.vmem [#allocation2], %s1336
    %v1338 = vld [vmem:[%s1337] sm:$0xff]
    %v1339 = vld [vmem:[%s1337 + $0x8] sm:$0xff]
    %v1340 = vld [vmem:[%s1337 + $0x10] sm:$0xff]
    %v1341 = vld [vmem:[%s1337 + $0x18] sm:$0xff]
    %v1342 = vld [vmem:[%s1337 + $0x20] sm:$0xff]
    %v1343 = vld [vmem:[%s1337 + $0x28] sm:$0xff]
    %v1344 = vld [vmem:[%s1337 + $0x30] sm:$0xff]
    %v1345 = vld [vmem:[%s1337 + $0x38] sm:$0xff]
    %1346 = vmatpush.msra.mxu0 %v511
    %1347 = vmatpush.msra.mxu0 %v507
    %1348 = vmatpush.msra.mxu0 %v503
    %1349 = vmatpush.msra.mxu0 %v499
    %1350 = vmatpush.msra.mxu0 %v495
    %1351 = vmatpush.msra.mxu0 %v491
    %1352 = vmatpush.msra.mxu0 %v487
    %1353 = vmatpush.msra.mxu0 %v483
    %1354 = vmatpush.msra.mxu0 %v479
    %1355 = vmatpush.msra.mxu0 %v475
    %1356 = vmatpush.msra.mxu0 %v471
    %1357 = vmatpush.msra.mxu0 %v467
    %1358 = vmatpush.msra.mxu0 %v463
    %1359 = vmatpush.msra.mxu0 %v459
    %1360 = vmatpush.msra.mxu0 %v455
    %1361 = vmatpush.msra.mxu0 %v451
    %1362 = vmatmul.f32.gmra.mxu0 %v1333
    %v1363 = vpop.f32.mrf.mxu0
    %v1364 = vadd.f32 0.0, %v1363
    %1365 = vmatmul.f32.gmra.mxu0 %v1334
    %v1366 = vpop.f32.mrf.mxu0
    %v1367 = vadd.f32 0.0, %v1366
    %1368 = vdwg.mxu0
    %1369 = vmatpush.msra.mxu0 %v512
    %1370 = vmatpush.msra.mxu0 %v508
    %1371 = vmatpush.msra.mxu0 %v504
    %1372 = vmatpush.msra.mxu0 %v500
    %1373 = vmatpush.msra.mxu0 %v496
    %1374 = vmatpush.msra.mxu0 %v492
    %1375 = vmatpush.msra.mxu0 %v488
    %1376 = vmatpush.msra.mxu0 %v484
    %1377 = vmatpush.msra.mxu0 %v480
    %1378 = vmatpush.msra.mxu0 %v476
    %1379 = vmatpush.msra.mxu0 %v472
    %1380 = vmatpush.msra.mxu0 %v468
    %1381 = vmatpush.msra.mxu0 %v464
    %1382 = vmatpush.msra.mxu0 %v460
    %1383 = vmatpush.msra.mxu0 %v456
    %1384 = vmatpush.msra.mxu0 %v452
    %1385 = vmatmul.f32.gmra.mxu0 %v1333
    %v1386 = vpop.f32.mrf.mxu0
    %v1387 = vadd.f32 0.0, %v1386
    %1388 = vmatmul.f32.gmra.mxu0 %v1334
    %v1389 = vpop.f32.mrf.mxu0
    %v1390 = vadd.f32 0.0, %v1389
    %1391 = vdwg.mxu0
    %1392 = vmatpush.msra.mxu0 %v513
    %1393 = vmatpush.msra.mxu0 %v509
    %1394 = vmatpush.msra.mxu0 %v505
    %1395 = vmatpush.msra.mxu0 %v501
    %1396 = vmatpush.msra.mxu0 %v497
    %1397 = vmatpush.msra.mxu0 %v493
    %1398 = vmatpush.msra.mxu0 %v489
    %1399 = vmatpush.msra.mxu0 %v485
    %1400 = vmatpush.msra.mxu0 %v481
    %1401 = vmatpush.msra.mxu0 %v477
    %1402 = vmatpush.msra.mxu0 %v473
    %1403 = vmatpush.msra.mxu0 %v469
    %1404 = vmatpush.msra.mxu0 %v465
    %1405 = vmatpush.msra.mxu0 %v461
    %1406 = vmatpush.msra.mxu0 %v457
    %1407 = vmatpush.msra.mxu0 %v453
    %1408 = vmatmul.f32.gmra.mxu0 %v1333
    %v1409 = vpop.f32.mrf.mxu0
    %v1410 = vadd.f32 0.0, %v1409
    %1411 = vmatmul.f32.gmra.mxu0 %v1334
    %v1412 = vpop.f32.mrf.mxu0
    %v1413 = vadd.f32 0.0, %v1412
    %1414 = vdwg.mxu0
    %1415 = vmatpush.msra.mxu0 %v514
    %1416 = vmatpush.msra.mxu0 %v510
    %1417 = vmatpush.msra.mxu0 %v506
    %1418 = vmatpush.msra.mxu0 %v502
    %1419 = vmatpush.msra.mxu0 %v498
    %1420 = vmatpush.msra.mxu0 %v494
    %1421 = vmatpush.msra.mxu0 %v490
    %1422 = vmatpush.msra.mxu0 %v486
    %1423 = vmatpush.msra.mxu0 %v482
    %1424 = vmatpush.msra.mxu0 %v478
    %1425 = vmatpush.msra.mxu0 %v474
    %1426 = vmatpush.msra.mxu0 %v470
    %1427 = vmatpush.msra.mxu0 %v466
    %1428 = vmatpush.msra.mxu0 %v462
    %1429 = vmatpush.msra.mxu0 %v458
    %1430 = vmatpush.msra.mxu0 %v454
    %1431 = vmatmul.f32.gmra.mxu0 %v1333
    %v1432 = vpop.f32.mrf.mxu0
    %v1433 = vadd.f32 0.0, %v1432
    %1434 = vmatmul.f32.gmra.mxu0 %v1334
    %v1435 = vpop.f32.mrf.mxu0
    %v1436 = vadd.f32 0.0, %v1435
    %1437 = vdwg.mxu0
    %v1438 = vadd.f32 %v1338, %v1364
    %v1439 = vadd.f32 %v1339, %v1387
    %v1440 = vadd.f32 %v1340, %v1410
    %v1441 = vadd.f32 %v1341, %v1433
    %v1442 = vadd.f32 %v1342, %v1367
    %v1443 = vadd.f32 %v1343, %v1390
    %v1444 = vadd.f32 %v1344, %v1413
    %v1445 = vadd.f32 %v1345, %v1436
    %v1446 = vxor.u32 %v1438, 2147483648
    %v1447 = vxor.u32 %v1439, 2147483648
    %v1448 = vxor.u32 %v1440, 2147483648
    %v1449 = vxor.u32 %v1441, 2147483648
    %v1450 = vxor.u32 %v1442, 2147483648
    %v1451 = vxor.u32 %v1443, 2147483648
    %v1452 = vxor.u32 %v1444, 2147483648
    %v1453 = vxor.u32 %v1445, 2147483648
    %v1454 = vmul.f32 %v1446, 1.442695
    %v1455 = vpow.pop %v1454
    %v1456 = vmul.f32 %v1447, 1.442695
    %v1457 = vpow.pop %v1456
    %v1458 = vmul.f32 %v1448, 1.442695
    %v1459 = vpow.pop %v1458
    %v1460 = vmul.f32 %v1449, 1.442695
    %v1461 = vpow.pop %v1460
    %v1462 = vmul.f32 %v1450, 1.442695
    %v1463 = vpow.pop %v1462
    %v1464 = vmul.f32 %v1451, 1.442695
    %v1465 = vpow.pop %v1464
    %v1466 = vmul.f32 %v1452, 1.442695
    %v1467 = vpow.pop %v1466
    %v1468 = vmul.f32 %v1453, 1.442695
    %v1469 = vpow.pop %v1468
    %v1470 = vadd.f32 %v1455, 1.0
    %v1471 = vadd.f32 %v1457, 1.0
    %v1472 = vadd.f32 %v1459, 1.0
    %v1473 = vadd.f32 %v1461, 1.0
    %v1474 = vadd.f32 %v1463, 1.0
    %v1475 = vadd.f32 %v1465, 1.0
    %v1476 = vadd.f32 %v1467, 1.0
    %v1477 = vadd.f32 %v1469, 1.0
    %v1478 = vrcp.pop %v1470
    %v1479 = vmul.f32 %v1470, %v1478
    %v1480 = vsub.f32 1.0, %v1479
    %v1481 = vmul.f32 %v1478, %v1480
    %v1482 = vadd.f32 %v1478, %v1481
    %vm1483 = vweird.f32 %v1470
    %vm1484 = vweird.f32 %v1478
    %vm1485 = vmor %vm1483, %vm1484
    %v1486 = vsel %vm1485, %v1478, %v1482
    %v1487 = vand.u32 2147483647, %v1470
    %vm1488 = vcmp.eq.f32.partialorder %v1487, 8.507059e+37
    %v1489 = vand.u32 %v1470, 2147483648
    %v1490 = vor.u32 1.1754944e-38, %v1489
    %v1491 = vsel %vm1488, %v1490, %v1486
    %v1492 = vmul.f32 1.0, %v1491
    %v1493 = vrcp.pop %v1471
    %v1494 = vmul.f32 %v1471, %v1493
    %v1495 = vsub.f32 1.0, %v1494
    %v1496 = vmul.f32 %v1493, %v1495
    %v1497 = vadd.f32 %v1493, %v1496
    %vm1498 = vweird.f32 %v1471
    %vm1499 = vweird.f32 %v1493
    %vm1500 = vmor %vm1498, %vm1499
    %v1501 = vsel %vm1500, %v1493, %v1497
    %v1502 = vand.u32 2147483647, %v1471
    %vm1503 = vcmp.eq.f32.partialorder %v1502, 8.507059e+37
    %v1504 = vand.u32 %v1471, 2147483648
    %v1505 = vor.u32 1.1754944e-38, %v1504
    %v1506 = vsel %vm1503, %v1505, %v1501
    %v1507 = vmul.f32 1.0, %v1506
    %v1508 = vrcp.pop %v1472
    %v1509 = vmul.f32 %v1472, %v1508
    %v1510 = vsub.f32 1.0, %v1509
    %v1511 = vmul.f32 %v1508, %v1510
    %v1512 = vadd.f32 %v1508, %v1511
    %vm1513 = vweird.f32 %v1472
    %vm1514 = vweird.f32 %v1508
    %vm1515 = vmor %vm1513, %vm1514
    %v1516 = vsel %vm1515, %v1508, %v1512
    %v1517 = vand.u32 2147483647, %v1472
    %vm1518 = vcmp.eq.f32.partialorder %v1517, 8.507059e+37
    %v1519 = vand.u32 %v1472, 2147483648
    %v1520 = vor.u32 1.1754944e-38, %v1519
    %v1521 = vsel %vm1518, %v1520, %v1516
    %v1522 = vmul.f32 1.0, %v1521
    %v1523 = vrcp.pop %v1473
    %v1524 = vmul.f32 %v1473, %v1523
    %v1525 = vsub.f32 1.0, %v1524
    %v1526 = vmul.f32 %v1523, %v1525
    %v1527 = vadd.f32 %v1523, %v1526
    %vm1528 = vweird.f32 %v1473
    %vm1529 = vweird.f32 %v1523
    %vm1530 = vmor %vm1528, %vm1529
    %v1531 = vsel %vm1530, %v1523, %v1527
    %v1532 = vand.u32 2147483647, %v1473
    %vm1533 = vcmp.eq.f32.partialorder %v1532, 8.507059e+37
    %v1534 = vand.u32 %v1473, 2147483648
    %v1535 = vor.u32 1.1754944e-38, %v1534
    %v1536 = vsel %vm1533, %v1535, %v1531
    %v1537 = vmul.f32 1.0, %v1536
    %v1538 = vrcp.pop %v1474
    %v1539 = vmul.f32 %v1474, %v1538
    %v1540 = vsub.f32 1.0, %v1539
    %v1541 = vmul.f32 %v1538, %v1540
    %v1542 = vadd.f32 %v1538, %v1541
    %vm1543 = vweird.f32 %v1474
    %vm1544 = vweird.f32 %v1538
    %vm1545 = vmor %vm1543, %vm1544
    %v1546 = vsel %vm1545, %v1538, %v1542
    %v1547 = vand.u32 2147483647, %v1474
    %vm1548 = vcmp.eq.f32.partialorder %v1547, 8.507059e+37
    %v1549 = vand.u32 %v1474, 2147483648
    %v1550 = vor.u32 1.1754944e-38, %v1549
    %v1551 = vsel %vm1548, %v1550, %v1546
    %v1552 = vmul.f32 1.0, %v1551
    %v1553 = vrcp.pop %v1475
    %v1554 = vmul.f32 %v1475, %v1553
    %v1555 = vsub.f32 1.0, %v1554
    %v1556 = vmul.f32 %v1553, %v1555
    %v1557 = vadd.f32 %v1553, %v1556
    %vm1558 = vweird.f32 %v1475
    %vm1559 = vweird.f32 %v1553
    %vm1560 = vmor %vm1558, %vm1559
    %v1561 = vsel %vm1560, %v1553, %v1557
    %v1562 = vand.u32 2147483647, %v1475
    %vm1563 = vcmp.eq.f32.partialorder %v1562, 8.507059e+37
    %v1564 = vand.u32 %v1475, 2147483648
    %v1565 = vor.u32 1.1754944e-38, %v1564
    %v1566 = vsel %vm1563, %v1565, %v1561
    %v1567 = vmul.f32 1.0, %v1566
    %v1568 = vrcp.pop %v1476
    %v1569 = vmul.f32 %v1476, %v1568
    %v1570 = vsub.f32 1.0, %v1569
    %v1571 = vmul.f32 %v1568, %v1570
    %v1572 = vadd.f32 %v1568, %v1571
    %vm1573 = vweird.f32 %v1476
    %vm1574 = vweird.f32 %v1568
    %vm1575 = vmor %vm1573, %vm1574
    %v1576 = vsel %vm1575, %v1568, %v1572
    %v1577 = vand.u32 2147483647, %v1476
    %vm1578 = vcmp.eq.f32.partialorder %v1577, 8.507059e+37
    %v1579 = vand.u32 %v1476, 2147483648
    %v1580 = vor.u32 1.1754944e-38, %v1579
    %v1581 = vsel %vm1578, %v1580, %v1576
    %v1582 = vmul.f32 1.0, %v1581
    %v1583 = vrcp.pop %v1477
    %v1584 = vmul.f32 %v1477, %v1583
    %v1585 = vsub.f32 1.0, %v1584
    %v1586 = vmul.f32 %v1583, %v1585
    %v1587 = vadd.f32 %v1583, %v1586
    %vm1588 = vweird.f32 %v1477
    %vm1589 = vweird.f32 %v1583
    %vm1590 = vmor %vm1588, %vm1589
    %v1591 = vsel %vm1590, %v1583, %v1587
    %v1592 = vand.u32 2147483647, %v1477
    %vm1593 = vcmp.eq.f32.partialorder %v1592, 8.507059e+37
    %v1594 = vand.u32 %v1477, 2147483648
    %v1595 = vor.u32 1.1754944e-38, %v1594
    %v1596 = vsel %vm1593, %v1595, %v1591
    %v1597 = vmul.f32 1.0, %v1596
    %v1598 = vmul.f32 %v1522, 2.0
    %v1599 = vmul.f32 %v1582, 2.0
    %v1600 = vsub.f32 %v1598, 1.0
    %v1601 = vsub.f32 %v1599, 1.0
    %v1602 = vmul.f32 %v1507, %v1329
    %v1603 = vmul.f32 %v1567, %v1330
    %v1604 = vmul.f32 %v1492, %v1600
    %v1605 = vmul.f32 %v1552, %v1601
    %v1606 = vadd.f32 %v1602, %v1604
    %v1607 = vadd.f32 %v1603, %v1605
    %v1608 = vtanh.pop %v1606
    %v1609 = vtanh.pop %v1607
    %v1610 = vmul.f32 %v1537, %v1608
    %v1611 = vmul.f32 %v1597, %v1609
    %s1612 = smul.u32 8, 4
    %s1613 = smul.addr %s1612, 8
    %s1614 = scalar_lea.vmem [#allocation2], %s1613
    %v1615 = vld [vmem:[%s1614] sm:$0xff]
    %v1616 = vld [vmem:[%s1614 + $0x8] sm:$0xff]
    %v1617 = vld [vmem:[%s1614 + $0x10] sm:$0xff]
    %v1618 = vld [vmem:[%s1614 + $0x18] sm:$0xff]
    %v1619 = vld [vmem:[%s1614 + $0x20] sm:$0xff]
    %v1620 = vld [vmem:[%s1614 + $0x28] sm:$0xff]
    %v1621 = vld [vmem:[%s1614 + $0x30] sm:$0xff]
    %v1622 = vld [vmem:[%s1614 + $0x38] sm:$0xff]
    %1623 = vmatpush.msra.mxu0 %v511
    %1624 = vmatpush.msra.mxu0 %v507
    %1625 = vmatpush.msra.mxu0 %v503
    %1626 = vmatpush.msra.mxu0 %v499
    %1627 = vmatpush.msra.mxu0 %v495
    %1628 = vmatpush.msra.mxu0 %v491
    %1629 = vmatpush.msra.mxu0 %v487
    %1630 = vmatpush.msra.mxu0 %v483
    %1631 = vmatpush.msra.mxu0 %v479
    %1632 = vmatpush.msra.mxu0 %v475
    %1633 = vmatpush.msra.mxu0 %v471
    %1634 = vmatpush.msra.mxu0 %v467
    %1635 = vmatpush.msra.mxu0 %v463
    %1636 = vmatpush.msra.mxu0 %v459
    %1637 = vmatpush.msra.mxu0 %v455
    %1638 = vmatpush.msra.mxu0 %v451
    %1639 = vmatmul.f32.gmra.mxu0 %v1610
    %v1640 = vpop.f32.mrf.mxu0
    %v1641 = vadd.f32 0.0, %v1640
    %1642 = vmatmul.f32.gmra.mxu0 %v1611
    %v1643 = vpop.f32.mrf.mxu0
    %v1644 = vadd.f32 0.0, %v1643
    %1645 = vdwg.mxu0
    %1646 = vmatpush.msra.mxu0 %v512
    %1647 = vmatpush.msra.mxu0 %v508
    %1648 = vmatpush.msra.mxu0 %v504
    %1649 = vmatpush.msra.mxu0 %v500
    %1650 = vmatpush.msra.mxu0 %v496
    %1651 = vmatpush.msra.mxu0 %v492
    %1652 = vmatpush.msra.mxu0 %v488
    %1653 = vmatpush.msra.mxu0 %v484
    %1654 = vmatpush.msra.mxu0 %v480
    %1655 = vmatpush.msra.mxu0 %v476
    %1656 = vmatpush.msra.mxu0 %v472
    %1657 = vmatpush.msra.mxu0 %v468
    %1658 = vmatpush.msra.mxu0 %v464
    %1659 = vmatpush.msra.mxu0 %v460
    %1660 = vmatpush.msra.mxu0 %v456
    %1661 = vmatpush.msra.mxu0 %v452
    %1662 = vmatmul.f32.gmra.mxu0 %v1610
    %v1663 = vpop.f32.mrf.mxu0
    %v1664 = vadd.f32 0.0, %v1663
    %1665 = vmatmul.f32.gmra.mxu0 %v1611
    %v1666 = vpop.f32.mrf.mxu0
    %v1667 = vadd.f32 0.0, %v1666
    %1668 = vdwg.mxu0
    %1669 = vmatpush.msra.mxu0 %v513
    %1670 = vmatpush.msra.mxu0 %v509
    %1671 = vmatpush.msra.mxu0 %v505
    %1672 = vmatpush.msra.mxu0 %v501
    %1673 = vmatpush.msra.mxu0 %v497
    %1674 = vmatpush.msra.mxu0 %v493
    %1675 = vmatpush.msra.mxu0 %v489
    %1676 = vmatpush.msra.mxu0 %v485
    %1677 = vmatpush.msra.mxu0 %v481
    %1678 = vmatpush.msra.mxu0 %v477
    %1679 = vmatpush.msra.mxu0 %v473
    %1680 = vmatpush.msra.mxu0 %v469
    %1681 = vmatpush.msra.mxu0 %v465
    %1682 = vmatpush.msra.mxu0 %v461
    %1683 = vmatpush.msra.mxu0 %v457
    %1684 = vmatpush.msra.mxu0 %v453
    %1685 = vmatmul.f32.gmra.mxu0 %v1610
    %v1686 = vpop.f32.mrf.mxu0
    %v1687 = vadd.f32 0.0, %v1686
    %1688 = vmatmul.f32.gmra.mxu0 %v1611
    %v1689 = vpop.f32.mrf.mxu0
    %v1690 = vadd.f32 0.0, %v1689
    %1691 = vdwg.mxu0
    %1692 = vmatpush.msra.mxu0 %v514
    %1693 = vmatpush.msra.mxu0 %v510
    %1694 = vmatpush.msra.mxu0 %v506
    %1695 = vmatpush.msra.mxu0 %v502
    %1696 = vmatpush.msra.mxu0 %v498
    %1697 = vmatpush.msra.mxu0 %v494
    %1698 = vmatpush.msra.mxu0 %v490
    %1699 = vmatpush.msra.mxu0 %v486
    %1700 = vmatpush.msra.mxu0 %v482
    %1701 = vmatpush.msra.mxu0 %v478
    %1702 = vmatpush.msra.mxu0 %v474
    %1703 = vmatpush.msra.mxu0 %v470
    %1704 = vmatpush.msra.mxu0 %v466
    %1705 = vmatpush.msra.mxu0 %v462
    %1706 = vmatpush.msra.mxu0 %v458
    %1707 = vmatpush.msra.mxu0 %v454
    %1708 = vmatmul.f32.gmra.mxu0 %v1610
    %v1709 = vpop.f32.mrf.mxu0
    %v1710 = vadd.f32 0.0, %v1709
    %1711 = vmatmul.f32.gmra.mxu0 %v1611
    %v1712 = vpop.f32.mrf.mxu0
    %v1713 = vadd.f32 0.0, %v1712
    %1714 = vdwg.mxu0
    %v1715 = vadd.f32 %v1615, %v1641
    %v1716 = vadd.f32 %v1616, %v1664
    %v1717 = vadd.f32 %v1617, %v1687
    %v1718 = vadd.f32 %v1618, %v1710
    %v1719 = vadd.f32 %v1619, %v1644
    %v1720 = vadd.f32 %v1620, %v1667
    %v1721 = vadd.f32 %v1621, %v1690
    %v1722 = vadd.f32 %v1622, %v1713
    %v1723 = vxor.u32 %v1715, 2147483648
    %v1724 = vxor.u32 %v1716, 2147483648
    %v1725 = vxor.u32 %v1717, 2147483648
    %v1726 = vxor.u32 %v1718, 2147483648
    %v1727 = vxor.u32 %v1719, 2147483648
    %v1728 = vxor.u32 %v1720, 2147483648
    %v1729 = vxor.u32 %v1721, 2147483648
    %v1730 = vxor.u32 %v1722, 2147483648
    %v1731 = vmul.f32 %v1723, 1.442695
    %v1732 = vpow.pop %v1731
    %v1733 = vmul.f32 %v1724, 1.442695
    %v1734 = vpow.pop %v1733
    %v1735 = vmul.f32 %v1725, 1.442695
    %v1736 = vpow.pop %v1735
    %v1737 = vmul.f32 %v1726, 1.442695
    %v1738 = vpow.pop %v1737
    %v1739 = vmul.f32 %v1727, 1.442695
    %v1740 = vpow.pop %v1739
    %v1741 = vmul.f32 %v1728, 1.442695
    %v1742 = vpow.pop %v1741
    %v1743 = vmul.f32 %v1729, 1.442695
    %v1744 = vpow.pop %v1743
    %v1745 = vmul.f32 %v1730, 1.442695
    %v1746 = vpow.pop %v1745
    %v1747 = vadd.f32 %v1732, 1.0
    %v1748 = vadd.f32 %v1734, 1.0
    %v1749 = vadd.f32 %v1736, 1.0
    %v1750 = vadd.f32 %v1738, 1.0
    %v1751 = vadd.f32 %v1740, 1.0
    %v1752 = vadd.f32 %v1742, 1.0
    %v1753 = vadd.f32 %v1744, 1.0
    %v1754 = vadd.f32 %v1746, 1.0
    %v1755 = vrcp.pop %v1747
    %v1756 = vmul.f32 %v1747, %v1755
    %v1757 = vsub.f32 1.0, %v1756
    %v1758 = vmul.f32 %v1755, %v1757
    %v1759 = vadd.f32 %v1755, %v1758
    %vm1760 = vweird.f32 %v1747
    %vm1761 = vweird.f32 %v1755
    %vm1762 = vmor %vm1760, %vm1761
    %v1763 = vsel %vm1762, %v1755, %v1759
    %v1764 = vand.u32 2147483647, %v1747
    %vm1765 = vcmp.eq.f32.partialorder %v1764, 8.507059e+37
    %v1766 = vand.u32 %v1747, 2147483648
    %v1767 = vor.u32 1.1754944e-38, %v1766
    %v1768 = vsel %vm1765, %v1767, %v1763
    %v1769 = vmul.f32 1.0, %v1768
    %v1770 = vrcp.pop %v1748
    %v1771 = vmul.f32 %v1748, %v1770
    %v1772 = vsub.f32 1.0, %v1771
    %v1773 = vmul.f32 %v1770, %v1772
    %v1774 = vadd.f32 %v1770, %v1773
    %vm1775 = vweird.f32 %v1748
    %vm1776 = vweird.f32 %v1770
    %vm1777 = vmor %vm1775, %vm1776
    %v1778 = vsel %vm1777, %v1770, %v1774
    %v1779 = vand.u32 2147483647, %v1748
    %vm1780 = vcmp.eq.f32.partialorder %v1779, 8.507059e+37
    %v1781 = vand.u32 %v1748, 2147483648
    %v1782 = vor.u32 1.1754944e-38, %v1781
    %v1783 = vsel %vm1780, %v1782, %v1778
    %v1784 = vmul.f32 1.0, %v1783
    %v1785 = vrcp.pop %v1749
    %v1786 = vmul.f32 %v1749, %v1785
    %v1787 = vsub.f32 1.0, %v1786
    %v1788 = vmul.f32 %v1785, %v1787
    %v1789 = vadd.f32 %v1785, %v1788
    %vm1790 = vweird.f32 %v1749
    %vm1791 = vweird.f32 %v1785
    %vm1792 = vmor %vm1790, %vm1791
    %v1793 = vsel %vm1792, %v1785, %v1789
    %v1794 = vand.u32 2147483647, %v1749
    %vm1795 = vcmp.eq.f32.partialorder %v1794, 8.507059e+37
    %v1796 = vand.u32 %v1749, 2147483648
    %v1797 = vor.u32 1.1754944e-38, %v1796
    %v1798 = vsel %vm1795, %v1797, %v1793
    %v1799 = vmul.f32 1.0, %v1798
    %v1800 = vrcp.pop %v1750
    %v1801 = vmul.f32 %v1750, %v1800
    %v1802 = vsub.f32 1.0, %v1801
    %v1803 = vmul.f32 %v1800, %v1802
    %v1804 = vadd.f32 %v1800, %v1803
    %vm1805 = vweird.f32 %v1750
    %vm1806 = vweird.f32 %v1800
    %vm1807 = vmor %vm1805, %vm1806
    %v1808 = vsel %vm1807, %v1800, %v1804
    %v1809 = vand.u32 2147483647, %v1750
    %vm1810 = vcmp.eq.f32.partialorder %v1809, 8.507059e+37
    %v1811 = vand.u32 %v1750, 2147483648
    %v1812 = vor.u32 1.1754944e-38, %v1811
    %v1813 = vsel %vm1810, %v1812, %v1808
    %v1814 = vmul.f32 1.0, %v1813
    %v1815 = vrcp.pop %v1751
    %v1816 = vmul.f32 %v1751, %v1815
    %v1817 = vsub.f32 1.0, %v1816
    %v1818 = vmul.f32 %v1815, %v1817
    %v1819 = vadd.f32 %v1815, %v1818
    %vm1820 = vweird.f32 %v1751
    %vm1821 = vweird.f32 %v1815
    %vm1822 = vmor %vm1820, %vm1821
    %v1823 = vsel %vm1822, %v1815, %v1819
    %v1824 = vand.u32 2147483647, %v1751
    %vm1825 = vcmp.eq.f32.partialorder %v1824, 8.507059e+37
    %v1826 = vand.u32 %v1751, 2147483648
    %v1827 = vor.u32 1.1754944e-38, %v1826
    %v1828 = vsel %vm1825, %v1827, %v1823
    %v1829 = vmul.f32 1.0, %v1828
    %v1830 = vrcp.pop %v1752
    %v1831 = vmul.f32 %v1752, %v1830
    %v1832 = vsub.f32 1.0, %v1831
    %v1833 = vmul.f32 %v1830, %v1832
    %v1834 = vadd.f32 %v1830, %v1833
    %vm1835 = vweird.f32 %v1752
    %vm1836 = vweird.f32 %v1830
    %vm1837 = vmor %vm1835, %vm1836
    %v1838 = vsel %vm1837, %v1830, %v1834
    %v1839 = vand.u32 2147483647, %v1752
    %vm1840 = vcmp.eq.f32.partialorder %v1839, 8.507059e+37
    %v1841 = vand.u32 %v1752, 2147483648
    %v1842 = vor.u32 1.1754944e-38, %v1841
    %v1843 = vsel %vm1840, %v1842, %v1838
    %v1844 = vmul.f32 1.0, %v1843
    %v1845 = vrcp.pop %v1753
    %v1846 = vmul.f32 %v1753, %v1845
    %v1847 = vsub.f32 1.0, %v1846
    %v1848 = vmul.f32 %v1845, %v1847
    %v1849 = vadd.f32 %v1845, %v1848
    %vm1850 = vweird.f32 %v1753
    %vm1851 = vweird.f32 %v1845
    %vm1852 = vmor %vm1850, %vm1851
    %v1853 = vsel %vm1852, %v1845, %v1849
    %v1854 = vand.u32 2147483647, %v1753
    %vm1855 = vcmp.eq.f32.partialorder %v1854, 8.507059e+37
    %v1856 = vand.u32 %v1753, 2147483648
    %v1857 = vor.u32 1.1754944e-38, %v1856
    %v1858 = vsel %vm1855, %v1857, %v1853
    %v1859 = vmul.f32 1.0, %v1858
    %v1860 = vrcp.pop %v1754
    %v1861 = vmul.f32 %v1754, %v1860
    %v1862 = vsub.f32 1.0, %v1861
    %v1863 = vmul.f32 %v1860, %v1862
    %v1864 = vadd.f32 %v1860, %v1863
    %vm1865 = vweird.f32 %v1754
    %vm1866 = vweird.f32 %v1860
    %vm1867 = vmor %vm1865, %vm1866
    %v1868 = vsel %vm1867, %v1860, %v1864
    %v1869 = vand.u32 2147483647, %v1754
    %vm1870 = vcmp.eq.f32.partialorder %v1869, 8.507059e+37
    %v1871 = vand.u32 %v1754, 2147483648
    %v1872 = vor.u32 1.1754944e-38, %v1871
    %v1873 = vsel %vm1870, %v1872, %v1868
    %v1874 = vmul.f32 1.0, %v1873
    %v1875 = vmul.f32 %v1799, 2.0
    %v1876 = vmul.f32 %v1859, 2.0
    %v1877 = vsub.f32 %v1875, 1.0
    %v1878 = vsub.f32 %v1876, 1.0
    %v1879 = vmul.f32 %v1784, %v1606
    %v1880 = vmul.f32 %v1844, %v1607
    %v1881 = vmul.f32 %v1769, %v1877
    %v1882 = vmul.f32 %v1829, %v1878
    %v1883 = vadd.f32 %v1879, %v1881
    %v1884 = vadd.f32 %v1880, %v1882
    %v1885 = vtanh.pop %v1883
    %v1886 = vtanh.pop %v1884
    %v1887 = vmul.f32 %v1814, %v1885
    %v1888 = vmul.f32 %v1874, %v1886
    %s1889 = smul.u32 10, 4
    %s1890 = smul.addr %s1889, 8
    %s1891 = scalar_lea.vmem [#allocation2], %s1890
    %v1892 = vld [vmem:[%s1891] sm:$0xff]
    %v1893 = vld [vmem:[%s1891 + $0x8] sm:$0xff]
    %v1894 = vld [vmem:[%s1891 + $0x10] sm:$0xff]
    %v1895 = vld [vmem:[%s1891 + $0x18] sm:$0xff]
    %v1896 = vld [vmem:[%s1891 + $0x20] sm:$0xff]
    %v1897 = vld [vmem:[%s1891 + $0x28] sm:$0xff]
    %v1898 = vld [vmem:[%s1891 + $0x30] sm:$0xff]
    %v1899 = vld [vmem:[%s1891 + $0x38] sm:$0xff]
    %1900 = vmatpush.msra.mxu0 %v511
    %1901 = vmatpush.msra.mxu0 %v507
    %1902 = vmatpush.msra.mxu0 %v503
    %1903 = vmatpush.msra.mxu0 %v499
    %1904 = vmatpush.msra.mxu0 %v495
    %1905 = vmatpush.msra.mxu0 %v491
    %1906 = vmatpush.msra.mxu0 %v487
    %1907 = vmatpush.msra.mxu0 %v483
    %1908 = vmatpush.msra.mxu0 %v479
    %1909 = vmatpush.msra.mxu0 %v475
    %1910 = vmatpush.msra.mxu0 %v471
    %1911 = vmatpush.msra.mxu0 %v467
    %1912 = vmatpush.msra.mxu0 %v463
    %1913 = vmatpush.msra.mxu0 %v459
    %1914 = vmatpush.msra.mxu0 %v455
    %1915 = vmatpush.msra.mxu0 %v451
    %1916 = vmatmul.f32.gmra.mxu0 %v1887
    %v1917 = vpop.f32.mrf.mxu0
    %v1918 = vadd.f32 0.0, %v1917
    %1919 = vmatmul.f32.gmra.mxu0 %v1888
    %v1920 = vpop.f32.mrf.mxu0
    %v1921 = vadd.f32 0.0, %v1920
    %1922 = vdwg.mxu0
    %1923 = vmatpush.msra.mxu0 %v512
    %1924 = vmatpush.msra.mxu0 %v508
    %1925 = vmatpush.msra.mxu0 %v504
    %1926 = vmatpush.msra.mxu0 %v500
    %1927 = vmatpush.msra.mxu0 %v496
    %1928 = vmatpush.msra.mxu0 %v492
    %1929 = vmatpush.msra.mxu0 %v488
    %1930 = vmatpush.msra.mxu0 %v484
    %1931 = vmatpush.msra.mxu0 %v480
    %1932 = vmatpush.msra.mxu0 %v476
    %1933 = vmatpush.msra.mxu0 %v472
    %1934 = vmatpush.msra.mxu0 %v468
    %1935 = vmatpush.msra.mxu0 %v464
    %1936 = vmatpush.msra.mxu0 %v460
    %1937 = vmatpush.msra.mxu0 %v456
    %1938 = vmatpush.msra.mxu0 %v452
    %1939 = vmatmul.f32.gmra.mxu0 %v1887
    %v1940 = vpop.f32.mrf.mxu0
    %v1941 = vadd.f32 0.0, %v1940
    %1942 = vmatmul.f32.gmra.mxu0 %v1888
    %v1943 = vpop.f32.mrf.mxu0
    %v1944 = vadd.f32 0.0, %v1943
    %1945 = vdwg.mxu0
    %1946 = vmatpush.msra.mxu0 %v513
    %1947 = vmatpush.msra.mxu0 %v509
    %1948 = vmatpush.msra.mxu0 %v505
    %1949 = vmatpush.msra.mxu0 %v501
    %1950 = vmatpush.msra.mxu0 %v497
    %1951 = vmatpush.msra.mxu0 %v493
    %1952 = vmatpush.msra.mxu0 %v489
    %1953 = vmatpush.msra.mxu0 %v485
    %1954 = vmatpush.msra.mxu0 %v481
    %1955 = vmatpush.msra.mxu0 %v477
    %1956 = vmatpush.msra.mxu0 %v473
    %1957 = vmatpush.msra.mxu0 %v469
    %1958 = vmatpush.msra.mxu0 %v465
    %1959 = vmatpush.msra.mxu0 %v461
    %1960 = vmatpush.msra.mxu0 %v457
    %1961 = vmatpush.msra.mxu0 %v453
    %1962 = vmatmul.f32.gmra.mxu0 %v1887
    %v1963 = vpop.f32.mrf.mxu0
    %v1964 = vadd.f32 0.0, %v1963
    %1965 = vmatmul.f32.gmra.mxu0 %v1888
    %v1966 = vpop.f32.mrf.mxu0
    %v1967 = vadd.f32 0.0, %v1966
    %1968 = vdwg.mxu0
    %1969 = vmatpush.msra.mxu0 %v514
    %1970 = vmatpush.msra.mxu0 %v510
    %1971 = vmatpush.msra.mxu0 %v506
    %1972 = vmatpush.msra.mxu0 %v502
    %1973 = vmatpush.msra.mxu0 %v498
    %1974 = vmatpush.msra.mxu0 %v494
    %1975 = vmatpush.msra.mxu0 %v490
    %1976 = vmatpush.msra.mxu0 %v486
    %1977 = vmatpush.msra.mxu0 %v482
    %1978 = vmatpush.msra.mxu0 %v478
    %1979 = vmatpush.msra.mxu0 %v474
    %1980 = vmatpush.msra.mxu0 %v470
    %1981 = vmatpush.msra.mxu0 %v466
    %1982 = vmatpush.msra.mxu0 %v462
    %1983 = vmatpush.msra.mxu0 %v458
    %1984 = vmatpush.msra.mxu0 %v454
    %1985 = vmatmul.f32.gmra.mxu0 %v1887
    %v1986 = vpop.f32.mrf.mxu0
    %v1987 = vadd.f32 0.0, %v1986
    %1988 = vmatmul.f32.gmra.mxu0 %v1888
    %v1989 = vpop.f32.mrf.mxu0
    %v1990 = vadd.f32 0.0, %v1989
    %1991 = vdwg.mxu0
    %v1992 = vadd.f32 %v1892, %v1918
    %v1993 = vadd.f32 %v1893, %v1941
    %v1994 = vadd.f32 %v1894, %v1964
    %v1995 = vadd.f32 %v1895, %v1987
    %v1996 = vadd.f32 %v1896, %v1921
    %v1997 = vadd.f32 %v1897, %v1944
    %v1998 = vadd.f32 %v1898, %v1967
    %v1999 = vadd.f32 %v1899, %v1990
    %v2000 = vxor.u32 %v1992, 2147483648
    %v2001 = vxor.u32 %v1993, 2147483648
    %v2002 = vxor.u32 %v1994, 2147483648
    %v2003 = vxor.u32 %v1995, 2147483648
    %v2004 = vxor.u32 %v1996, 2147483648
    %v2005 = vxor.u32 %v1997, 2147483648
    %v2006 = vxor.u32 %v1998, 2147483648
    %v2007 = vxor.u32 %v1999, 2147483648
    %v2008 = vmul.f32 %v2000, 1.442695
    %v2009 = vpow.pop %v2008
    %v2010 = vmul.f32 %v2001, 1.442695
    %v2011 = vpow.pop %v2010
    %v2012 = vmul.f32 %v2002, 1.442695
    %v2013 = vpow.pop %v2012
    %v2014 = vmul.f32 %v2003, 1.442695
    %v2015 = vpow.pop %v2014
    %v2016 = vmul.f32 %v2004, 1.442695
    %v2017 = vpow.pop %v2016
    %v2018 = vmul.f32 %v2005, 1.442695
    %v2019 = vpow.pop %v2018
    %v2020 = vmul.f32 %v2006, 1.442695
    %v2021 = vpow.pop %v2020
    %v2022 = vmul.f32 %v2007, 1.442695
    %v2023 = vpow.pop %v2022
    %v2024 = vadd.f32 %v2009, 1.0
    %v2025 = vadd.f32 %v2011, 1.0
    %v2026 = vadd.f32 %v2013, 1.0
    %v2027 = vadd.f32 %v2015, 1.0
    %v2028 = vadd.f32 %v2017, 1.0
    %v2029 = vadd.f32 %v2019, 1.0
    %v2030 = vadd.f32 %v2021, 1.0
    %v2031 = vadd.f32 %v2023, 1.0
    %v2032 = vrcp.pop %v2024
    %v2033 = vmul.f32 %v2024, %v2032
    %v2034 = vsub.f32 1.0, %v2033
    %v2035 = vmul.f32 %v2032, %v2034
    %v2036 = vadd.f32 %v2032, %v2035
    %vm2037 = vweird.f32 %v2024
    %vm2038 = vweird.f32 %v2032
    %vm2039 = vmor %vm2037, %vm2038
    %v2040 = vsel %vm2039, %v2032, %v2036
    %v2041 = vand.u32 2147483647, %v2024
    %vm2042 = vcmp.eq.f32.partialorder %v2041, 8.507059e+37
    %v2043 = vand.u32 %v2024, 2147483648
    %v2044 = vor.u32 1.1754944e-38, %v2043
    %v2045 = vsel %vm2042, %v2044, %v2040
    %v2046 = vmul.f32 1.0, %v2045
    %v2047 = vrcp.pop %v2025
    %v2048 = vmul.f32 %v2025, %v2047
    %v2049 = vsub.f32 1.0, %v2048
    %v2050 = vmul.f32 %v2047, %v2049
    %v2051 = vadd.f32 %v2047, %v2050
    %vm2052 = vweird.f32 %v2025
    %vm2053 = vweird.f32 %v2047
    %vm2054 = vmor %vm2052, %vm2053
    %v2055 = vsel %vm2054, %v2047, %v2051
    %v2056 = vand.u32 2147483647, %v2025
    %vm2057 = vcmp.eq.f32.partialorder %v2056, 8.507059e+37
    %v2058 = vand.u32 %v2025, 2147483648
    %v2059 = vor.u32 1.1754944e-38, %v2058
    %v2060 = vsel %vm2057, %v2059, %v2055
    %v2061 = vmul.f32 1.0, %v2060
    %v2062 = vrcp.pop %v2026
    %v2063 = vmul.f32 %v2026, %v2062
    %v2064 = vsub.f32 1.0, %v2063
    %v2065 = vmul.f32 %v2062, %v2064
    %v2066 = vadd.f32 %v2062, %v2065
    %vm2067 = vweird.f32 %v2026
    %vm2068 = vweird.f32 %v2062
    %vm2069 = vmor %vm2067, %vm2068
    %v2070 = vsel %vm2069, %v2062, %v2066
    %v2071 = vand.u32 2147483647, %v2026
    %vm2072 = vcmp.eq.f32.partialorder %v2071, 8.507059e+37
    %v2073 = vand.u32 %v2026, 2147483648
    %v2074 = vor.u32 1.1754944e-38, %v2073
    %v2075 = vsel %vm2072, %v2074, %v2070
    %v2076 = vmul.f32 1.0, %v2075
    %v2077 = vrcp.pop %v2027
    %v2078 = vmul.f32 %v2027, %v2077
    %v2079 = vsub.f32 1.0, %v2078
    %v2080 = vmul.f32 %v2077, %v2079
    %v2081 = vadd.f32 %v2077, %v2080
    %vm2082 = vweird.f32 %v2027
    %vm2083 = vweird.f32 %v2077
    %vm2084 = vmor %vm2082, %vm2083
    %v2085 = vsel %vm2084, %v2077, %v2081
    %v2086 = vand.u32 2147483647, %v2027
    %vm2087 = vcmp.eq.f32.partialorder %v2086, 8.507059e+37
    %v2088 = vand.u32 %v2027, 2147483648
    %v2089 = vor.u32 1.1754944e-38, %v2088
    %v2090 = vsel %vm2087, %v2089, %v2085
    %v2091 = vmul.f32 1.0, %v2090
    %v2092 = vrcp.pop %v2028
    %v2093 = vmul.f32 %v2028, %v2092
    %v2094 = vsub.f32 1.0, %v2093
    %v2095 = vmul.f32 %v2092, %v2094
    %v2096 = vadd.f32 %v2092, %v2095
    %vm2097 = vweird.f32 %v2028
    %vm2098 = vweird.f32 %v2092
    %vm2099 = vmor %vm2097, %vm2098
    %v2100 = vsel %vm2099, %v2092, %v2096
    %v2101 = vand.u32 2147483647, %v2028
    %vm2102 = vcmp.eq.f32.partialorder %v2101, 8.507059e+37
    %v2103 = vand.u32 %v2028, 2147483648
    %v2104 = vor.u32 1.1754944e-38, %v2103
    %v2105 = vsel %vm2102, %v2104, %v2100
    %v2106 = vmul.f32 1.0, %v2105
    %v2107 = vrcp.pop %v2029
    %v2108 = vmul.f32 %v2029, %v2107
    %v2109 = vsub.f32 1.0, %v2108
    %v2110 = vmul.f32 %v2107, %v2109
    %v2111 = vadd.f32 %v2107, %v2110
    %vm2112 = vweird.f32 %v2029
    %vm2113 = vweird.f32 %v2107
    %vm2114 = vmor %vm2112, %vm2113
    %v2115 = vsel %vm2114, %v2107, %v2111
    %v2116 = vand.u32 2147483647, %v2029
    %vm2117 = vcmp.eq.f32.partialorder %v2116, 8.507059e+37
    %v2118 = vand.u32 %v2029, 2147483648
    %v2119 = vor.u32 1.1754944e-38, %v2118
    %v2120 = vsel %vm2117, %v2119, %v2115
    %v2121 = vmul.f32 1.0, %v2120
    %v2122 = vrcp.pop %v2030
    %v2123 = vmul.f32 %v2030, %v2122
    %v2124 = vsub.f32 1.0, %v2123
    %v2125 = vmul.f32 %v2122, %v2124
    %v2126 = vadd.f32 %v2122, %v2125
    %vm2127 = vweird.f32 %v2030
    %vm2128 = vweird.f32 %v2122
    %vm2129 = vmor %vm2127, %vm2128
    %v2130 = vsel %vm2129, %v2122, %v2126
    %v2131 = vand.u32 2147483647, %v2030
    %vm2132 = vcmp.eq.f32.partialorder %v2131, 8.507059e+37
    %v2133 = vand.u32 %v2030, 2147483648
    %v2134 = vor.u32 1.1754944e-38, %v2133
    %v2135 = vsel %vm2132, %v2134, %v2130
    %v2136 = vmul.f32 1.0, %v2135
    %v2137 = vrcp.pop %v2031
    %v2138 = vmul.f32 %v2031, %v2137
    %v2139 = vsub.f32 1.0, %v2138
    %v2140 = vmul.f32 %v2137, %v2139
    %v2141 = vadd.f32 %v2137, %v2140
    %vm2142 = vweird.f32 %v2031
    %vm2143 = vweird.f32 %v2137
    %vm2144 = vmor %vm2142, %vm2143
    %v2145 = vsel %vm2144, %v2137, %v2141
    %v2146 = vand.u32 2147483647, %v2031
    %vm2147 = vcmp.eq.f32.partialorder %v2146, 8.507059e+37
    %v2148 = vand.u32 %v2031, 2147483648
    %v2149 = vor.u32 1.1754944e-38, %v2148
    %v2150 = vsel %vm2147, %v2149, %v2145
    %v2151 = vmul.f32 1.0, %v2150
    %v2152 = vmul.f32 %v2076, 2.0
    %v2153 = vmul.f32 %v2136, 2.0
    %v2154 = vsub.f32 %v2152, 1.0
    %v2155 = vsub.f32 %v2153, 1.0
    %v2156 = vmul.f32 %v2061, %v1883
    %v2157 = vmul.f32 %v2121, %v1884
    %v2158 = vmul.f32 %v2046, %v2154
    %v2159 = vmul.f32 %v2106, %v2155
    %v2160 = vadd.f32 %v2156, %v2158
    %v2161 = vadd.f32 %v2157, %v2159
    %v2162 = vtanh.pop %v2160
    %v2163 = vtanh.pop %v2161
    %v2164 = vmul.f32 %v2091, %v2162
    %v2165 = vmul.f32 %v2151, %v2163
    %s2166 = smul.u32 12, 4
    %s2167 = smul.addr %s2166, 8
    %s2168 = scalar_lea.vmem [#allocation2], %s2167
    %v2169 = vld [vmem:[%s2168] sm:$0xff]
    %v2170 = vld [vmem:[%s2168 + $0x8] sm:$0xff]
    %v2171 = vld [vmem:[%s2168 + $0x10] sm:$0xff]
    %v2172 = vld [vmem:[%s2168 + $0x18] sm:$0xff]
    %v2173 = vld [vmem:[%s2168 + $0x20] sm:$0xff]
    %v2174 = vld [vmem:[%s2168 + $0x28] sm:$0xff]
    %v2175 = vld [vmem:[%s2168 + $0x30] sm:$0xff]
    %v2176 = vld [vmem:[%s2168 + $0x38] sm:$0xff]
    %2177 = vmatpush.msra.mxu0 %v511
    %2178 = vmatpush.msra.mxu0 %v507
    %2179 = vmatpush.msra.mxu0 %v503
    %2180 = vmatpush.msra.mxu0 %v499
    %2181 = vmatpush.msra.mxu0 %v495
    %2182 = vmatpush.msra.mxu0 %v491
    %2183 = vmatpush.msra.mxu0 %v487
    %2184 = vmatpush.msra.mxu0 %v483
    %2185 = vmatpush.msra.mxu0 %v479
    %2186 = vmatpush.msra.mxu0 %v475
    %2187 = vmatpush.msra.mxu0 %v471
    %2188 = vmatpush.msra.mxu0 %v467
    %2189 = vmatpush.msra.mxu0 %v463
    %2190 = vmatpush.msra.mxu0 %v459
    %2191 = vmatpush.msra.mxu0 %v455
    %2192 = vmatpush.msra.mxu0 %v451
    %2193 = vmatmul.f32.gmra.mxu0 %v2164
    %v2194 = vpop.f32.mrf.mxu0
    %v2195 = vadd.f32 0.0, %v2194
    %2196 = vmatmul.f32.gmra.mxu0 %v2165
    %v2197 = vpop.f32.mrf.mxu0
    %v2198 = vadd.f32 0.0, %v2197
    %2199 = vdwg.mxu0
    %2200 = vmatpush.msra.mxu0 %v512
    %2201 = vmatpush.msra.mxu0 %v508
    %2202 = vmatpush.msra.mxu0 %v504
    %2203 = vmatpush.msra.mxu0 %v500
    %2204 = vmatpush.msra.mxu0 %v496
    %2205 = vmatpush.msra.mxu0 %v492
    %2206 = vmatpush.msra.mxu0 %v488
    %2207 = vmatpush.msra.mxu0 %v484
    %2208 = vmatpush.msra.mxu0 %v480
    %2209 = vmatpush.msra.mxu0 %v476
    %2210 = vmatpush.msra.mxu0 %v472
    %2211 = vmatpush.msra.mxu0 %v468
    %2212 = vmatpush.msra.mxu0 %v464
    %2213 = vmatpush.msra.mxu0 %v460
    %2214 = vmatpush.msra.mxu0 %v456
    %2215 = vmatpush.msra.mxu0 %v452
    %2216 = vmatmul.f32.gmra.mxu0 %v2164
    %v2217 = vpop.f32.mrf.mxu0
    %v2218 = vadd.f32 0.0, %v2217
    %2219 = vmatmul.f32.gmra.mxu0 %v2165
    %v2220 = vpop.f32.mrf.mxu0
    %v2221 = vadd.f32 0.0, %v2220
    %2222 = vdwg.mxu0
    %2223 = vmatpush.msra.mxu0 %v513
    %2224 = vmatpush.msra.mxu0 %v509
    %2225 = vmatpush.msra.mxu0 %v505
    %2226 = vmatpush.msra.mxu0 %v501
    %2227 = vmatpush.msra.mxu0 %v497
    %2228 = vmatpush.msra.mxu0 %v493
    %2229 = vmatpush.msra.mxu0 %v489
    %2230 = vmatpush.msra.mxu0 %v485
    %2231 = vmatpush.msra.mxu0 %v481
    %2232 = vmatpush.msra.mxu0 %v477
    %2233 = vmatpush.msra.mxu0 %v473
    %2234 = vmatpush.msra.mxu0 %v469
    %2235 = vmatpush.msra.mxu0 %v465
    %2236 = vmatpush.msra.mxu0 %v461
    %2237 = vmatpush.msra.mxu0 %v457
    %2238 = vmatpush.msra.mxu0 %v453
    %2239 = vmatmul.f32.gmra.mxu0 %v2164
    %v2240 = vpop.f32.mrf.mxu0
    %v2241 = vadd.f32 0.0, %v2240
    %2242 = vmatmul.f32.gmra.mxu0 %v2165
    %v2243 = vpop.f32.mrf.mxu0
    %v2244 = vadd.f32 0.0, %v2243
    %2245 = vdwg.mxu0
    %2246 = vmatpush.msra.mxu0 %v514
    %2247 = vmatpush.msra.mxu0 %v510
    %2248 = vmatpush.msra.mxu0 %v506
    %2249 = vmatpush.msra.mxu0 %v502
    %2250 = vmatpush.msra.mxu0 %v498
    %2251 = vmatpush.msra.mxu0 %v494
    %2252 = vmatpush.msra.mxu0 %v490
    %2253 = vmatpush.msra.mxu0 %v486
    %2254 = vmatpush.msra.mxu0 %v482
    %2255 = vmatpush.msra.mxu0 %v478
    %2256 = vmatpush.msra.mxu0 %v474
    %2257 = vmatpush.msra.mxu0 %v470
    %2258 = vmatpush.msra.mxu0 %v466
    %2259 = vmatpush.msra.mxu0 %v462
    %2260 = vmatpush.msra.mxu0 %v458
    %2261 = vmatpush.msra.mxu0 %v454
    %2262 = vmatmul.f32.gmra.mxu0 %v2164
    %v2263 = vpop.f32.mrf.mxu0
    %v2264 = vadd.f32 0.0, %v2263
    %2265 = vmatmul.f32.gmra.mxu0 %v2165
    %v2266 = vpop.f32.mrf.mxu0
    %v2267 = vadd.f32 0.0, %v2266
    %2268 = vdwg.mxu0
    %v2269 = vadd.f32 %v2169, %v2195
    %v2270 = vadd.f32 %v2170, %v2218
    %v2271 = vadd.f32 %v2171, %v2241
    %v2272 = vadd.f32 %v2172, %v2264
    %v2273 = vadd.f32 %v2173, %v2198
    %v2274 = vadd.f32 %v2174, %v2221
    %v2275 = vadd.f32 %v2175, %v2244
    %v2276 = vadd.f32 %v2176, %v2267
    %v2277 = vxor.u32 %v2269, 2147483648
    %v2278 = vxor.u32 %v2270, 2147483648
    %v2279 = vxor.u32 %v2271, 2147483648
    %v2280 = vxor.u32 %v2272, 2147483648
    %v2281 = vxor.u32 %v2273, 2147483648
    %v2282 = vxor.u32 %v2274, 2147483648
    %v2283 = vxor.u32 %v2275, 2147483648
    %v2284 = vxor.u32 %v2276, 2147483648
    %v2285 = vmul.f32 %v2277, 1.442695
    %v2286 = vpow.pop %v2285
    %v2287 = vmul.f32 %v2278, 1.442695
    %v2288 = vpow.pop %v2287
    %v2289 = vmul.f32 %v2279, 1.442695
    %v2290 = vpow.pop %v2289
    %v2291 = vmul.f32 %v2280, 1.442695
    %v2292 = vpow.pop %v2291
    %v2293 = vmul.f32 %v2281, 1.442695
    %v2294 = vpow.pop %v2293
    %v2295 = vmul.f32 %v2282, 1.442695
    %v2296 = vpow.pop %v2295
    %v2297 = vmul.f32 %v2283, 1.442695
    %v2298 = vpow.pop %v2297
    %v2299 = vmul.f32 %v2284, 1.442695
    %v2300 = vpow.pop %v2299
    %v2301 = vadd.f32 %v2286, 1.0
    %v2302 = vadd.f32 %v2288, 1.0
    %v2303 = vadd.f32 %v2290, 1.0
    %v2304 = vadd.f32 %v2292, 1.0
    %v2305 = vadd.f32 %v2294, 1.0
    %v2306 = vadd.f32 %v2296, 1.0
    %v2307 = vadd.f32 %v2298, 1.0
    %v2308 = vadd.f32 %v2300, 1.0
    %v2309 = vrcp.pop %v2301
    %v2310 = vmul.f32 %v2301, %v2309
    %v2311 = vsub.f32 1.0, %v2310
    %v2312 = vmul.f32 %v2309, %v2311
    %v2313 = vadd.f32 %v2309, %v2312
    %vm2314 = vweird.f32 %v2301
    %vm2315 = vweird.f32 %v2309
    %vm2316 = vmor %vm2314, %vm2315
    %v2317 = vsel %vm2316, %v2309, %v2313
    %v2318 = vand.u32 2147483647, %v2301
    %vm2319 = vcmp.eq.f32.partialorder %v2318, 8.507059e+37
    %v2320 = vand.u32 %v2301, 2147483648
    %v2321 = vor.u32 1.1754944e-38, %v2320
    %v2322 = vsel %vm2319, %v2321, %v2317
    %v2323 = vmul.f32 1.0, %v2322
    %v2324 = vrcp.pop %v2302
    %v2325 = vmul.f32 %v2302, %v2324
    %v2326 = vsub.f32 1.0, %v2325
    %v2327 = vmul.f32 %v2324, %v2326
    %v2328 = vadd.f32 %v2324, %v2327
    %vm2329 = vweird.f32 %v2302
    %vm2330 = vweird.f32 %v2324
    %vm2331 = vmor %vm2329, %vm2330
    %v2332 = vsel %vm2331, %v2324, %v2328
    %v2333 = vand.u32 2147483647, %v2302
    %vm2334 = vcmp.eq.f32.partialorder %v2333, 8.507059e+37
    %v2335 = vand.u32 %v2302, 2147483648
    %v2336 = vor.u32 1.1754944e-38, %v2335
    %v2337 = vsel %vm2334, %v2336, %v2332
    %v2338 = vmul.f32 1.0, %v2337
    %v2339 = vrcp.pop %v2303
    %v2340 = vmul.f32 %v2303, %v2339
    %v2341 = vsub.f32 1.0, %v2340
    %v2342 = vmul.f32 %v2339, %v2341
    %v2343 = vadd.f32 %v2339, %v2342
    %vm2344 = vweird.f32 %v2303
    %vm2345 = vweird.f32 %v2339
    %vm2346 = vmor %vm2344, %vm2345
    %v2347 = vsel %vm2346, %v2339, %v2343
    %v2348 = vand.u32 2147483647, %v2303
    %vm2349 = vcmp.eq.f32.partialorder %v2348, 8.507059e+37
    %v2350 = vand.u32 %v2303, 2147483648
    %v2351 = vor.u32 1.1754944e-38, %v2350
    %v2352 = vsel %vm2349, %v2351, %v2347
    %v2353 = vmul.f32 1.0, %v2352
    %v2354 = vrcp.pop %v2304
    %v2355 = vmul.f32 %v2304, %v2354
    %v2356 = vsub.f32 1.0, %v2355
    %v2357 = vmul.f32 %v2354, %v2356
    %v2358 = vadd.f32 %v2354, %v2357
    %vm2359 = vweird.f32 %v2304
    %vm2360 = vweird.f32 %v2354
    %vm2361 = vmor %vm2359, %vm2360
    %v2362 = vsel %vm2361, %v2354, %v2358
    %v2363 = vand.u32 2147483647, %v2304
    %vm2364 = vcmp.eq.f32.partialorder %v2363, 8.507059e+37
    %v2365 = vand.u32 %v2304, 2147483648
    %v2366 = vor.u32 1.1754944e-38, %v2365
    %v2367 = vsel %vm2364, %v2366, %v2362
    %v2368 = vmul.f32 1.0, %v2367
    %v2369 = vrcp.pop %v2305
    %v2370 = vmul.f32 %v2305, %v2369
    %v2371 = vsub.f32 1.0, %v2370
    %v2372 = vmul.f32 %v2369, %v2371
    %v2373 = vadd.f32 %v2369, %v2372
    %vm2374 = vweird.f32 %v2305
    %vm2375 = vweird.f32 %v2369
    %vm2376 = vmor %vm2374, %vm2375
    %v2377 = vsel %vm2376, %v2369, %v2373
    %v2378 = vand.u32 2147483647, %v2305
    %vm2379 = vcmp.eq.f32.partialorder %v2378, 8.507059e+37
    %v2380 = vand.u32 %v2305, 2147483648
    %v2381 = vor.u32 1.1754944e-38, %v2380
    %v2382 = vsel %vm2379, %v2381, %v2377
    %v2383 = vmul.f32 1.0, %v2382
    %v2384 = vrcp.pop %v2306
    %v2385 = vmul.f32 %v2306, %v2384
    %v2386 = vsub.f32 1.0, %v2385
    %v2387 = vmul.f32 %v2384, %v2386
    %v2388 = vadd.f32 %v2384, %v2387
    %vm2389 = vweird.f32 %v2306
    %vm2390 = vweird.f32 %v2384
    %vm2391 = vmor %vm2389, %vm2390
    %v2392 = vsel %vm2391, %v2384, %v2388
    %v2393 = vand.u32 2147483647, %v2306
    %vm2394 = vcmp.eq.f32.partialorder %v2393, 8.507059e+37
    %v2395 = vand.u32 %v2306, 2147483648
    %v2396 = vor.u32 1.1754944e-38, %v2395
    %v2397 = vsel %vm2394, %v2396, %v2392
    %v2398 = vmul.f32 1.0, %v2397
    %v2399 = vrcp.pop %v2307
    %v2400 = vmul.f32 %v2307, %v2399
    %v2401 = vsub.f32 1.0, %v2400
    %v2402 = vmul.f32 %v2399, %v2401
    %v2403 = vadd.f32 %v2399, %v2402
    %vm2404 = vweird.f32 %v2307
    %vm2405 = vweird.f32 %v2399
    %vm2406 = vmor %vm2404, %vm2405
    %v2407 = vsel %vm2406, %v2399, %v2403
    %v2408 = vand.u32 2147483647, %v2307
    %vm2409 = vcmp.eq.f32.partialorder %v2408, 8.507059e+37
    %v2410 = vand.u32 %v2307, 2147483648
    %v2411 = vor.u32 1.1754944e-38, %v2410
    %v2412 = vsel %vm2409, %v2411, %v2407
    %v2413 = vmul.f32 1.0, %v2412
    %v2414 = vrcp.pop %v2308
    %v2415 = vmul.f32 %v2308, %v2414
    %v2416 = vsub.f32 1.0, %v2415
    %v2417 = vmul.f32 %v2414, %v2416
    %v2418 = vadd.f32 %v2414, %v2417
    %vm2419 = vweird.f32 %v2308
    %vm2420 = vweird.f32 %v2414
    %vm2421 = vmor %vm2419, %vm2420
    %v2422 = vsel %vm2421, %v2414, %v2418
    %v2423 = vand.u32 2147483647, %v2308
    %vm2424 = vcmp.eq.f32.partialorder %v2423, 8.507059e+37
    %v2425 = vand.u32 %v2308, 2147483648
    %v2426 = vor.u32 1.1754944e-38, %v2425
    %v2427 = vsel %vm2424, %v2426, %v2422
    %v2428 = vmul.f32 1.0, %v2427
    %v2429 = vmul.f32 %v2353, 2.0
    %v2430 = vmul.f32 %v2413, 2.0
    %v2431 = vsub.f32 %v2429, 1.0
    %v2432 = vsub.f32 %v2430, 1.0
    %v2433 = vmul.f32 %v2338, %v2160
    %v2434 = vmul.f32 %v2398, %v2161
    %v2435 = vmul.f32 %v2323, %v2431
    %v2436 = vmul.f32 %v2383, %v2432
    %v2437 = vadd.f32 %v2433, %v2435
    %v2438 = vadd.f32 %v2434, %v2436
    %v2439 = vtanh.pop %v2437
    %v2440 = vtanh.pop %v2438
    %v2441 = vmul.f32 %v2368, %v2439
    %v2442 = vmul.f32 %v2428, %v2440
    %s2443 = smul.u32 14, 4
    %s2444 = smul.addr %s2443, 8
    %s2445 = scalar_lea.vmem [#allocation2], %s2444
    %v2446 = vld [vmem:[%s2445] sm:$0xff]
    %v2447 = vld [vmem:[%s2445 + $0x8] sm:$0xff]
    %v2448 = vld [vmem:[%s2445 + $0x10] sm:$0xff]
    %v2449 = vld [vmem:[%s2445 + $0x18] sm:$0xff]
    %v2450 = vld [vmem:[%s2445 + $0x20] sm:$0xff]
    %v2451 = vld [vmem:[%s2445 + $0x28] sm:$0xff]
    %v2452 = vld [vmem:[%s2445 + $0x30] sm:$0xff]
    %v2453 = vld [vmem:[%s2445 + $0x38] sm:$0xff]
    %2454 = vmatpush.msra.mxu0 %v511
    %2455 = vmatpush.msra.mxu0 %v507
    %2456 = vmatpush.msra.mxu0 %v503
    %2457 = vmatpush.msra.mxu0 %v499
    %2458 = vmatpush.msra.mxu0 %v495
    %2459 = vmatpush.msra.mxu0 %v491
    %2460 = vmatpush.msra.mxu0 %v487
    %2461 = vmatpush.msra.mxu0 %v483
    %2462 = vmatpush.msra.mxu0 %v479
    %2463 = vmatpush.msra.mxu0 %v475
    %2464 = vmatpush.msra.mxu0 %v471
    %2465 = vmatpush.msra.mxu0 %v467
    %2466 = vmatpush.msra.mxu0 %v463
    %2467 = vmatpush.msra.mxu0 %v459
    %2468 = vmatpush.msra.mxu0 %v455
    %2469 = vmatpush.msra.mxu0 %v451
    %2470 = vmatmul.f32.gmra.mxu0 %v2441
    %v2471 = vpop.f32.mrf.mxu0
    %v2472 = vadd.f32 0.0, %v2471
    %2473 = vmatmul.f32.gmra.mxu0 %v2442
    %v2474 = vpop.f32.mrf.mxu0
    %v2475 = vadd.f32 0.0, %v2474
    %2476 = vdwg.mxu0
    %2477 = vmatpush.msra.mxu0 %v512
    %2478 = vmatpush.msra.mxu0 %v508
    %2479 = vmatpush.msra.mxu0 %v504
    %2480 = vmatpush.msra.mxu0 %v500
    %2481 = vmatpush.msra.mxu0 %v496
    %2482 = vmatpush.msra.mxu0 %v492
    %2483 = vmatpush.msra.mxu0 %v488
    %2484 = vmatpush.msra.mxu0 %v484
    %2485 = vmatpush.msra.mxu0 %v480
    %2486 = vmatpush.msra.mxu0 %v476
    %2487 = vmatpush.msra.mxu0 %v472
    %2488 = vmatpush.msra.mxu0 %v468
    %2489 = vmatpush.msra.mxu0 %v464
    %2490 = vmatpush.msra.mxu0 %v460
    %2491 = vmatpush.msra.mxu0 %v456
    %2492 = vmatpush.msra.mxu0 %v452
    %2493 = vmatmul.f32.gmra.mxu0 %v2441
    %v2494 = vpop.f32.mrf.mxu0
    %v2495 = vadd.f32 0.0, %v2494
    %2496 = vmatmul.f32.gmra.mxu0 %v2442
    %v2497 = vpop.f32.mrf.mxu0
    %v2498 = vadd.f32 0.0, %v2497
    %2499 = vdwg.mxu0
    %2500 = vmatpush.msra.mxu0 %v513
    %2501 = vmatpush.msra.mxu0 %v509
    %2502 = vmatpush.msra.mxu0 %v505
    %2503 = vmatpush.msra.mxu0 %v501
    %2504 = vmatpush.msra.mxu0 %v497
    %2505 = vmatpush.msra.mxu0 %v493
    %2506 = vmatpush.msra.mxu0 %v489
    %2507 = vmatpush.msra.mxu0 %v485
    %2508 = vmatpush.msra.mxu0 %v481
    %2509 = vmatpush.msra.mxu0 %v477
    %2510 = vmatpush.msra.mxu0 %v473
    %2511 = vmatpush.msra.mxu0 %v469
    %2512 = vmatpush.msra.mxu0 %v465
    %2513 = vmatpush.msra.mxu0 %v461
    %2514 = vmatpush.msra.mxu0 %v457
    %2515 = vmatpush.msra.mxu0 %v453
    %2516 = vmatmul.f32.gmra.mxu0 %v2441
    %v2517 = vpop.f32.mrf.mxu0
    %v2518 = vadd.f32 0.0, %v2517
    %2519 = vmatmul.f32.gmra.mxu0 %v2442
    %v2520 = vpop.f32.mrf.mxu0
    %v2521 = vadd.f32 0.0, %v2520
    %2522 = vdwg.mxu0
    %2523 = vmatpush.msra.mxu0 %v514
    %2524 = vmatpush.msra.mxu0 %v510
    %2525 = vmatpush.msra.mxu0 %v506
    %2526 = vmatpush.msra.mxu0 %v502
    %2527 = vmatpush.msra.mxu0 %v498
    %2528 = vmatpush.msra.mxu0 %v494
    %2529 = vmatpush.msra.mxu0 %v490
    %2530 = vmatpush.msra.mxu0 %v486
    %2531 = vmatpush.msra.mxu0 %v482
    %2532 = vmatpush.msra.mxu0 %v478
    %2533 = vmatpush.msra.mxu0 %v474
    %2534 = vmatpush.msra.mxu0 %v470
    %2535 = vmatpush.msra.mxu0 %v466
    %2536 = vmatpush.msra.mxu0 %v462
    %2537 = vmatpush.msra.mxu0 %v458
    %2538 = vmatpush.msra.mxu0 %v454
    %2539 = vmatmul.f32.gmra.mxu0 %v2441
    %v2540 = vpop.f32.mrf.mxu0
    %v2541 = vadd.f32 0.0, %v2540
    %2542 = vmatmul.f32.gmra.mxu0 %v2442
    %v2543 = vpop.f32.mrf.mxu0
    %v2544 = vadd.f32 0.0, %v2543
    %2545 = vdwg.mxu0
    %v2546 = vadd.f32 %v2446, %v2472
    %v2547 = vadd.f32 %v2447, %v2495
    %v2548 = vadd.f32 %v2448, %v2518
    %v2549 = vadd.f32 %v2449, %v2541
    %v2550 = vadd.f32 %v2450, %v2475
    %v2551 = vadd.f32 %v2451, %v2498
    %v2552 = vadd.f32 %v2452, %v2521
    %v2553 = vadd.f32 %v2453, %v2544
    %v2554 = vxor.u32 %v2546, 2147483648
    %v2555 = vxor.u32 %v2547, 2147483648
    %v2556 = vxor.u32 %v2548, 2147483648
    %v2557 = vxor.u32 %v2549, 2147483648
    %v2558 = vxor.u32 %v2550, 2147483648
    %v2559 = vxor.u32 %v2551, 2147483648
    %v2560 = vxor.u32 %v2552, 2147483648
    %v2561 = vxor.u32 %v2553, 2147483648
    %v2562 = vmul.f32 %v2554, 1.442695
    %v2563 = vpow.pop %v2562
    %v2564 = vmul.f32 %v2555, 1.442695
    %v2565 = vpow.pop %v2564
    %v2566 = vmul.f32 %v2556, 1.442695
    %v2567 = vpow.pop %v2566
    %v2568 = vmul.f32 %v2557, 1.442695
    %v2569 = vpow.pop %v2568
    %v2570 = vmul.f32 %v2558, 1.442695
    %v2571 = vpow.pop %v2570
    %v2572 = vmul.f32 %v2559, 1.442695
    %v2573 = vpow.pop %v2572
    %v2574 = vmul.f32 %v2560, 1.442695
    %v2575 = vpow.pop %v2574
    %v2576 = vmul.f32 %v2561, 1.442695
    %v2577 = vpow.pop %v2576
    %v2578 = vadd.f32 %v2563, 1.0
    %v2579 = vadd.f32 %v2565, 1.0
    %v2580 = vadd.f32 %v2567, 1.0
    %v2581 = vadd.f32 %v2569, 1.0
    %v2582 = vadd.f32 %v2571, 1.0
    %v2583 = vadd.f32 %v2573, 1.0
    %v2584 = vadd.f32 %v2575, 1.0
    %v2585 = vadd.f32 %v2577, 1.0
    %v2586 = vrcp.pop %v2578
    %v2587 = vmul.f32 %v2578, %v2586
    %v2588 = vsub.f32 1.0, %v2587
    %v2589 = vmul.f32 %v2586, %v2588
    %v2590 = vadd.f32 %v2586, %v2589
    %vm2591 = vweird.f32 %v2578
    %vm2592 = vweird.f32 %v2586
    %vm2593 = vmor %vm2591, %vm2592
    %v2594 = vsel %vm2593, %v2586, %v2590
    %v2595 = vand.u32 2147483647, %v2578
    %vm2596 = vcmp.eq.f32.partialorder %v2595, 8.507059e+37
    %v2597 = vand.u32 %v2578, 2147483648
    %v2598 = vor.u32 1.1754944e-38, %v2597
    %v2599 = vsel %vm2596, %v2598, %v2594
    %v2600 = vmul.f32 1.0, %v2599
    %v2601 = vrcp.pop %v2579
    %v2602 = vmul.f32 %v2579, %v2601
    %v2603 = vsub.f32 1.0, %v2602
    %v2604 = vmul.f32 %v2601, %v2603
    %v2605 = vadd.f32 %v2601, %v2604
    %vm2606 = vweird.f32 %v2579
    %vm2607 = vweird.f32 %v2601
    %vm2608 = vmor %vm2606, %vm2607
    %v2609 = vsel %vm2608, %v2601, %v2605
    %v2610 = vand.u32 2147483647, %v2579
    %vm2611 = vcmp.eq.f32.partialorder %v2610, 8.507059e+37
    %v2612 = vand.u32 %v2579, 2147483648
    %v2613 = vor.u32 1.1754944e-38, %v2612
    %v2614 = vsel %vm2611, %v2613, %v2609
    %v2615 = vmul.f32 1.0, %v2614
    %v2616 = vrcp.pop %v2580
    %v2617 = vmul.f32 %v2580, %v2616
    %v2618 = vsub.f32 1.0, %v2617
    %v2619 = vmul.f32 %v2616, %v2618
    %v2620 = vadd.f32 %v2616, %v2619
    %vm2621 = vweird.f32 %v2580
    %vm2622 = vweird.f32 %v2616
    %vm2623 = vmor %vm2621, %vm2622
    %v2624 = vsel %vm2623, %v2616, %v2620
    %v2625 = vand.u32 2147483647, %v2580
    %vm2626 = vcmp.eq.f32.partialorder %v2625, 8.507059e+37
    %v2627 = vand.u32 %v2580, 2147483648
    %v2628 = vor.u32 1.1754944e-38, %v2627
    %v2629 = vsel %vm2626, %v2628, %v2624
    %v2630 = vmul.f32 1.0, %v2629
    %v2631 = vrcp.pop %v2581
    %v2632 = vmul.f32 %v2581, %v2631
    %v2633 = vsub.f32 1.0, %v2632
    %v2634 = vmul.f32 %v2631, %v2633
    %v2635 = vadd.f32 %v2631, %v2634
    %vm2636 = vweird.f32 %v2581
    %vm2637 = vweird.f32 %v2631
    %vm2638 = vmor %vm2636, %vm2637
    %v2639 = vsel %vm2638, %v2631, %v2635
    %v2640 = vand.u32 2147483647, %v2581
    %vm2641 = vcmp.eq.f32.partialorder %v2640, 8.507059e+37
    %v2642 = vand.u32 %v2581, 2147483648
    %v2643 = vor.u32 1.1754944e-38, %v2642
    %v2644 = vsel %vm2641, %v2643, %v2639
    %v2645 = vmul.f32 1.0, %v2644
    %v2646 = vrcp.pop %v2582
    %v2647 = vmul.f32 %v2582, %v2646
    %v2648 = vsub.f32 1.0, %v2647
    %v2649 = vmul.f32 %v2646, %v2648
    %v2650 = vadd.f32 %v2646, %v2649
    %vm2651 = vweird.f32 %v2582
    %vm2652 = vweird.f32 %v2646
    %vm2653 = vmor %vm2651, %vm2652
    %v2654 = vsel %vm2653, %v2646, %v2650
    %v2655 = vand.u32 2147483647, %v2582
    %vm2656 = vcmp.eq.f32.partialorder %v2655, 8.507059e+37
    %v2657 = vand.u32 %v2582, 2147483648
    %v2658 = vor.u32 1.1754944e-38, %v2657
    %v2659 = vsel %vm2656, %v2658, %v2654
    %v2660 = vmul.f32 1.0, %v2659
    %v2661 = vrcp.pop %v2583
    %v2662 = vmul.f32 %v2583, %v2661
    %v2663 = vsub.f32 1.0, %v2662
    %v2664 = vmul.f32 %v2661, %v2663
    %v2665 = vadd.f32 %v2661, %v2664
    %vm2666 = vweird.f32 %v2583
    %vm2667 = vweird.f32 %v2661
    %vm2668 = vmor %vm2666, %vm2667
    %v2669 = vsel %vm2668, %v2661, %v2665
    %v2670 = vand.u32 2147483647, %v2583
    %vm2671 = vcmp.eq.f32.partialorder %v2670, 8.507059e+37
    %v2672 = vand.u32 %v2583, 2147483648
    %v2673 = vor.u32 1.1754944e-38, %v2672
    %v2674 = vsel %vm2671, %v2673, %v2669
    %v2675 = vmul.f32 1.0, %v2674
    %v2676 = vrcp.pop %v2584
    %v2677 = vmul.f32 %v2584, %v2676
    %v2678 = vsub.f32 1.0, %v2677
    %v2679 = vmul.f32 %v2676, %v2678
    %v2680 = vadd.f32 %v2676, %v2679
    %vm2681 = vweird.f32 %v2584
    %vm2682 = vweird.f32 %v2676
    %vm2683 = vmor %vm2681, %vm2682
    %v2684 = vsel %vm2683, %v2676, %v2680
    %v2685 = vand.u32 2147483647, %v2584
    %vm2686 = vcmp.eq.f32.partialorder %v2685, 8.507059e+37
    %v2687 = vand.u32 %v2584, 2147483648
    %v2688 = vor.u32 1.1754944e-38, %v2687
    %v2689 = vsel %vm2686, %v2688, %v2684
    %v2690 = vmul.f32 1.0, %v2689
    %v2691 = vrcp.pop %v2585
    %v2692 = vmul.f32 %v2585, %v2691
    %v2693 = vsub.f32 1.0, %v2692
    %v2694 = vmul.f32 %v2691, %v2693
    %v2695 = vadd.f32 %v2691, %v2694
    %vm2696 = vweird.f32 %v2585
    %vm2697 = vweird.f32 %v2691
    %vm2698 = vmor %vm2696, %vm2697
    %v2699 = vsel %vm2698, %v2691, %v2695
    %v2700 = vand.u32 2147483647, %v2585
    %vm2701 = vcmp.eq.f32.partialorder %v2700, 8.507059e+37
    %v2702 = vand.u32 %v2585, 2147483648
    %v2703 = vor.u32 1.1754944e-38, %v2702
    %v2704 = vsel %vm2701, %v2703, %v2699
    %v2705 = vmul.f32 1.0, %v2704
    %v2706 = vmul.f32 %v2630, 2.0
    %v2707 = vmul.f32 %v2690, 2.0
    %v2708 = vsub.f32 %v2706, 1.0
    %v2709 = vsub.f32 %v2707, 1.0
    %v2710 = vmul.f32 %v2615, %v2437
    %v2711 = vmul.f32 %v2675, %v2438
    %v2712 = vmul.f32 %v2600, %v2708
    %v2713 = vmul.f32 %v2660, %v2709
    %v2714 = vadd.f32 %v2710, %v2712
    %v2715 = vadd.f32 %v2711, %v2713
    %v2716 = vtanh.pop %v2714
    %v2717 = vtanh.pop %v2715
    %v2718 = vmul.f32 %v2645, %v2716
    %v2719 = vmul.f32 %v2705, %v2717
    %2720 = vst [vmem:[%s4] sm:$0xff] %v2718
    %2721 = vst [vmem:[%s4 + $0x8] sm:$0xff] %v2719
    // Predicated region
    $region22: #{user_forward.2} parent=1 // pred_check
      _
    $region23: #{user_forward.2} parent=1 // pred_check_branch
      %2723 = sbr.rel (0) target = $region25
    $region24: #{user_forward.2} parent=1 // pred_region
      _
    $region25: #{user_forward.2} parent=1 // pred_fallthru
      _
    // Predicated region
    $region26: #{user_forward.2} parent=1 // pred_check
      _
    $region27: #{user_forward.2} parent=1 // pred_check_branch
      %2725 = sbr.rel (0) target = $region29
    $region28: #{user_forward.2} parent=1 // pred_region
      _
    $region29: #{user_forward.2} parent=1 // pred_fallthru
      _
    %2726 = vsyncpa [#allocation4], 1

</llo_original>
